<compile_context>
chip_gen: v7x
topology: tpu7x:2x2x1
jax: 0.10.0
libtpu: 0.0.40
codegen_flags: <defaults>
</compile_context>

<pallas_src>
import jax
import jax.numpy as jnp
import numpy as np
from jax.experimental import pallas as pl
from jax.experimental.pallas import tpu as pltpu

IN_FEATURES = 30720
H1 = 128
H2, H3 = 64, 64
NUM_CLASSES = 11
HP = 128                                   # lane-dense padded width (tail + out)

# ---- fused (single-kernel) path: K reduction only -------------------------
TK_FUSED = 7680
NK_FUSED = IN_FEATURES // TK_FUSED         # 4 K steps
assert NK_FUSED * TK_FUSED == IN_FEATURES

# ---- split (v7x) path: 2-way "parallel" K split, each half tiled ----------
N_SPLIT = 2
TK_SPLIT = 7680
K_PER_SPLIT = IN_FEATURES // N_SPLIT
NK_SPLIT = K_PER_SPLIT // TK_SPLIT         # 2 K steps per split
assert N_SPLIT * NK_SPLIT * TK_SPLIT == IN_FEATURES


def _is_v7x():
    """Build-time chip detection: only v7x (2 TensorCores/chip) benefits from
    the 2-way 'parallel' K split; everything else takes the fused path."""
    try:
        kind = jax.devices()[0].device_kind.lower()
        return ("v7" in kind) or ("7x" in kind)
    except Exception:  # pragma: no cover - conservative fallback
        return False


# ----------------------------------------------------------------------------
# Fused kernel (v5e / v6e default): layer-1 K reduction accumulated straight
# into the output block; tail (bias + tanh + 3 small matmuls) fused into the
# finalize on the last K step.
# ----------------------------------------------------------------------------
def fused_mlp_kernel(x_ref, w1_ref, b1_ref, w2_ref, b2_ref, w3_ref, b3_ref,
                     w4_ref, b4_ref, out_ref):
    k = pl.program_id(0)

    @pl.when(k == 0)
    def _():
        out_ref[...] = jnp.zeros_like(out_ref)

    # bf16 cast of the f32 x tile happens in-kernel (free on the VPU; the
    # kernel is bound on the w1 HBM stream).
    out_ref[...] += jnp.dot(x_ref[...].astype(jnp.bfloat16), w1_ref[...],
                            preferred_element_type=jnp.float32)

    @pl.when(k == pl.num_programs(0) - 1)
    def _():
        h = jnp.tanh(out_ref[...] + b1_ref[...])                          # (B,128)
        h = jnp.tanh(jnp.dot(h, w2_ref[...],
                             preferred_element_type=jnp.float32) + b2_ref[...])
        h = jnp.tanh(jnp.dot(h, w3_ref[...],
                             preferred_element_type=jnp.float32) + b3_ref[...])
        out_ref[...] = (jnp.dot(h, w4_ref[...],
                                preferred_element_type=jnp.float32)
                        + b4_ref[...]).astype(out_ref.dtype)              # (B,128)


# ----------------------------------------------------------------------------
# v7x kernels: layer-1 split over the two TensorCores, tiny tail kernel sums
# the partials and runs the small layers.
# ----------------------------------------------------------------------------
def layer1_split_kernel(x_ref, w1_ref, part_ref):
    k = pl.program_id(1)

    @pl.when(k == 0)
    def _():
        part_ref[...] = jnp.zeros_like(part_ref)

    part_ref[...] += jnp.dot(x_ref[...].astype(jnp.bfloat16), w1_ref[...],
                             preferred_element_type=jnp.float32)


def tail_kernel(part_ref, b1_ref, w2_ref, b2_ref, w3_ref, b3_ref,
                w4_ref, b4_ref, out_ref):
    h = jnp.tanh(part_ref[...].sum(axis=0) + b1_ref[...])                 # (B,128)
    h = jnp.tanh(jnp.dot(h, w2_ref[...],
                         preferred_element_type=jnp.float32) + b2_ref[...])
    h = jnp.tanh(jnp.dot(h, w3_ref[...],
                         preferred_element_type=jnp.float32) + b3_ref[...])
    out_ref[...] = (jnp.dot(h, w4_ref[...],
                            preferred_element_type=jnp.float32)
                    + b4_ref[...]).astype(out_ref.dtype)                   # (B,128)


def prepare_params(params):
    """One-time conversion of f32 (in,out)/(1,out) params to kernel layout.

    w1 -> bf16 (halves the dominant HBM stream). All tail weights/biases are
    zero-padded to 128-wide lane-dense slabs; padding is semantics-preserving
    (padded activations are tanh(0)=0 and meet zero weights downstream)."""
    def pad_mat(w, rows, cols):
        return jnp.pad(w, ((0, rows - w.shape[0]), (0, cols - w.shape[1])))

    def pad_vec(b, cols):
        return jnp.pad(b, ((0, 0), (0, cols - b.shape[1])))

    return {
        "w1": params["w1"].astype(jnp.bfloat16),           # (30720,128) bf16
        "b1": params["b1"],                                 # (1,128)
        "w2": pad_mat(params["w2"], H1, HP),                # (128,128)
        "b2": pad_vec(params["b2"], HP),                    # (1,128)
        "w3": pad_mat(params["w3"], HP, HP),                # (128,128)
        "b3": pad_vec(params["b3"], HP),                    # (1,128)
        "w4": pad_mat(params["w4"], HP, HP),                # (128,128)
        "b4": pad_vec(params["b4"], HP),                    # (1,128)
    }


@jax.jit
def _mlp_forward_fused(x, kp):
    """Single fused kernel: layer-1 reduction + tail. Default (v5e/v6e) path."""
    B = x.shape[0]
    xf = x.reshape(B, -1)                      # f32; cast to bf16 inside kernel
    assert xf.shape[1] == IN_FEATURES

    cost = pl.CostEstimate(
        flops=2 * B * IN_FEATURES * H1 + 3 * 2 * B * HP * HP,
        transcendentals=3 * B * HP,
        bytes_accessed=(B * IN_FEATURES * 4          # x (f32)
                        + IN_FEATURES * H1 * 2       # w1 (bf16) -- dominant
                        + 3 * HP * HP * 4            # tail weights
                        + B * HP * 4))               # output

    out_pad = pl.pallas_call(
        fused_mlp_kernel,
        out_shape=jax.ShapeDtypeStruct((B, HP), jnp.float32),
        grid_spec=pltpu.PrefetchScalarGridSpec(
            num_scalar_prefetch=0,
            grid=(NK_FUSED,),
            in_specs=[
                pl.BlockSpec((B, TK_FUSED), lambda k: (0, k)),     # x tile
                pl.BlockSpec((TK_FUSED, H1), lambda k: (k, 0)),    # w1 tile
                pl.BlockSpec((1, H1), lambda k: (0, 0)),           # b1
                pl.BlockSpec((H1, HP), lambda k: (0, 0)),          # w2 (padded)
                pl.BlockSpec((1, HP), lambda k: (0, 0)),           # b2
                pl.BlockSpec((HP, HP), lambda k: (0, 0)),          # w3
                pl.BlockSpec((1, HP), lambda k: (0, 0)),           # b3
                pl.BlockSpec((HP, HP), lambda k: (0, 0)),          # w4
                pl.BlockSpec((1, HP), lambda k: (0, 0)),           # b4
            ],
            out_specs=pl.BlockSpec((B, HP), lambda k: (0, 0)),
        ),
        compiler_params=pltpu.CompilerParams(
            dimension_semantics=("arbitrary",),
            vmem_limit_bytes=32 * 1024 * 1024,
        ),
        cost_estimate=cost,
    )(xf, kp["w1"], kp["b1"], kp["w2"], kp["b2"], kp["w3"], kp["b3"],
      kp["w4"], kp["b4"])

    return out_pad[:, :NUM_CLASSES]


@jax.jit
def _mlp_forward_split(x, kp):
    """v7x path: 2-way 'parallel' K split (one w1 half per TensorCore) + tiny
    tail kernel that sums the partials and runs the small layers."""
    B = x.shape[0]
    xf = x.reshape(B, -1)
    assert xf.shape[1] == IN_FEATURES

    cost1 = pl.CostEstimate(
        flops=2 * B * IN_FEATURES * H1,
        transcendentals=0,
        bytes_accessed=(B * IN_FEATURES * 4
                        + IN_FEATURES * H1 * 2
                        + N_SPLIT * B * H1 * 4))

    partial = pl.pallas_call(
        layer1_split_kernel,
        out_shape=jax.ShapeDtypeStruct((N_SPLIT, B, H1), jnp.float32),
        grid_spec=pltpu.PrefetchScalarGridSpec(
            num_scalar_prefetch=0,
            grid=(N_SPLIT, NK_SPLIT),
            in_specs=[
                pl.BlockSpec((B, TK_SPLIT), lambda c, k: (0, c * NK_SPLIT + k)),
                pl.BlockSpec((TK_SPLIT, H1), lambda c, k: (c * NK_SPLIT + k, 0)),
            ],
            out_specs=pl.BlockSpec((None, B, H1), lambda c, k: (c, 0, 0)),
        ),
        compiler_params=pltpu.CompilerParams(
            dimension_semantics=("parallel", "arbitrary"),
            vmem_limit_bytes=32 * 1024 * 1024,
        ),
        cost_estimate=cost1,
    )(xf, kp["w1"])

    out_pad = pl.pallas_call(
        tail_kernel,
        out_shape=jax.ShapeDtypeStruct((B, HP), jnp.float32),
        grid_spec=pltpu.PrefetchScalarGridSpec(
            num_scalar_prefetch=0,
            grid=(1,),
            in_specs=[
                pl.BlockSpec((N_SPLIT, B, H1), lambda i: (0, 0, 0)),  # partials
                pl.BlockSpec((1, H1), lambda i: (0, 0)),              # b1
                pl.BlockSpec((H1, HP), lambda i: (0, 0)),             # w2
                pl.BlockSpec((1, HP), lambda i: (0, 0)),              # b2
                pl.BlockSpec((HP, HP), lambda i: (0, 0)),             # w3
                pl.BlockSpec((1, HP), lambda i: (0, 0)),              # b3
                pl.BlockSpec((HP, HP), lambda i: (0, 0)),             # w4
                pl.BlockSpec((1, HP), lambda i: (0, 0)),              # b4
            ],
            out_specs=pl.BlockSpec((B, HP), lambda i: (0, 0)),
        ),
        compiler_params=pltpu.CompilerParams(
            dimension_semantics=("arbitrary",)),
    )(partial, kp["b1"], kp["w2"], kp["b2"], kp["w3"], kp["b3"],
      kp["w4"], kp["b4"])

    return out_pad[:, :NUM_CLASSES]


_IS_V7X = _is_v7x()


def mlp_forward(x, kp):
    return _mlp_forward_split(x, kp) if _IS_V7X else _mlp_forward_fused(x, kp)


def init_params(key):
    """PyTorch nn.Linear default init: U[-1/sqrt(fan_in), 1/sqrt(fan_in)]."""
    dims = [(IN_FEATURES, H1), (H1, H2), (H2, H3), (H3, NUM_CLASSES)]
    params = {}
    for i, (fan_in, fan_out) in enumerate(dims, start=1):
        key, kw, kb = jax.random.split(key, 3)
        bound = 1.0 / np.sqrt(fan_in)
        params[f"w{i}"] = jax.random.uniform(
            kw, (fan_in, fan_out), jnp.float32, -bound, bound)
        params[f"b{i}"] = jax.random.uniform(
            kb, (1, fan_out), jnp.float32, -bound, bound)
    return params


def mlp_reference(x, params):
    """Reference with the same mixed precision as the kernel (bf16 layer-1
    operands, f32 accumulation, f32 tail)."""
    xf = x.reshape(x.shape[0], -1)
    h = jnp.tanh(jnp.dot(xf.astype(jnp.bfloat16),
                         params["w1"].astype(jnp.bfloat16),
                         preferred_element_type=jnp.float32) + params["b1"])
    h = jnp.tanh(h @ params["w2"] + params["b2"])
    h = jnp.tanh(h @ params["w3"] + params["b3"])
    return h @ params["w4"] + params["b4"]


if __name__ == "__main__":
    key = jax.random.PRNGKey(0)
    key, kx = jax.random.split(key)
    B = 2
    # Any (B, C, H, W) with C*H*W = 30720 works; forward flattens it.
    x = jax.random.normal(kx, (B, 30, 32, 32), jnp.float32)   # 30*32*32 = 30720
    params = init_params(key)
    kparams = prepare_params(params)

    out = mlp_forward(x, kparams)
    out = jax.block_until_ready(out)

    ref = mlp_reference(x, params)
    np.testing.assert_allclose(np.asarray(out), np.asarray(ref),
                               rtol=5e-3, atol=5e-3)

    print("KERNEL_OK")
</pallas_src>

<mosaic_0001>
module attributes {stable_mosaic.version = 11 : i64} {
  func.func @fused_mlp_kernel(%arg0: i32, %arg1: memref<2x7680xf32, #tpu.memory_space<vmem>>, %arg2: memref<7680x128xbf16, #tpu.memory_space<vmem>>, %arg3: memref<1x128xf32, #tpu.memory_space<vmem>>, %arg4: memref<128x128xf32, #tpu.memory_space<vmem>>, %arg5: memref<1x128xf32, #tpu.memory_space<vmem>>, %arg6: memref<128x128xf32, #tpu.memory_space<vmem>>, %arg7: memref<1x128xf32, #tpu.memory_space<vmem>>, %arg8: memref<128x128xf32, #tpu.memory_space<vmem>>, %arg9: memref<1x128xf32, #tpu.memory_space<vmem>>, %arg10: memref<2x128xf32, #tpu.memory_space<vmem>>) attributes {dimension_semantics = [#tpu.dimension_semantics<arbitrary>], iteration_bounds = array<i64: 4>, scalar_prefetch = 0 : i64, scratch_operands = 0 : i64, tpu.core_type = #tpu.core_type<tc>, window_params = [{transform_indices = @transform_0, window_bounds = array<i64: 2, 7680>}, {transform_indices = @transform_1, window_bounds = array<i64: 7680, 128>}, {pipeline_mode = #tpu.pipeline_mode<synchronous>, transform_indices = @transform_2, window_bounds = array<i64: 1, 128>}, {pipeline_mode = #tpu.pipeline_mode<synchronous>, transform_indices = @transform_3, window_bounds = array<i64: 128, 128>}, {pipeline_mode = #tpu.pipeline_mode<synchronous>, transform_indices = @transform_4, window_bounds = array<i64: 1, 128>}, {pipeline_mode = #tpu.pipeline_mode<synchronous>, transform_indices = @transform_5, window_bounds = array<i64: 128, 128>}, {pipeline_mode = #tpu.pipeline_mode<synchronous>, transform_indices = @transform_6, window_bounds = array<i64: 1, 128>}, {pipeline_mode = #tpu.pipeline_mode<synchronous>, transform_indices = @transform_7, window_bounds = array<i64: 128, 128>}, {pipeline_mode = #tpu.pipeline_mode<synchronous>, transform_indices = @transform_8, window_bounds = array<i64: 1, 128>}, {pipeline_mode = #tpu.pipeline_mode<synchronous>, transform_indices = @transform_9, window_bounds = array<i64: 2, 128>}]} {
    %c0_i32 = arith.constant 0 : i32
    %0 = arith.cmpi eq, %arg0, %c0_i32 : i32
    %1 = arith.extui %0 : i1 to i32
    %c0_i32_0 = arith.constant 0 : i32
    %2 = arith.cmpi ne, %1, %c0_i32_0 : i32
    scf.if %2 {
      %cst_9 = arith.constant 0.000000e+00 : f32
      %13 = vector.broadcast %cst_9 : f32 to vector<2x128xf32>
      %c0_10 = arith.constant 0 : index
      %c0_11 = arith.constant 0 : index
      %14 = vector.load %arg10[%c0_10, %c0_11] : memref<2x128xf32, #tpu.memory_space<vmem>>, vector<2x128xf32>
      tpu.vector_store %arg10[%c0_10, %c0_11], %13 {strides = array<i32>} : memref<2x128xf32, #tpu.memory_space<vmem>>, vector<2x128xf32>,
    } else {
    }
    %c0 = arith.constant 0 : index
    %c0_1 = arith.constant 0 : index
    %3 = vector.load %arg10[%c0, %c0_1] : memref<2x128xf32, #tpu.memory_space<vmem>>, vector<2x128xf32>
    %c0_2 = arith.constant 0 : index
    %c0_3 = arith.constant 0 : index
    %4 = vector.load %arg1[%c0_2, %c0_3] : memref<2x7680xf32, #tpu.memory_space<vmem>>, vector<2x7680xf32>
    %5 = arith.truncf %4 : vector<2x7680xf32> to vector<2x7680xbf16>
    %c0_4 = arith.constant 0 : index
    %c0_5 = arith.constant 0 : index
    %6 = vector.load %arg2[%c0_4, %c0_5] : memref<7680x128xbf16, #tpu.memory_space<vmem>>, vector<7680x128xbf16>
    %cst = arith.constant dense<0.000000e+00> : vector<2x128xf32>
    %7 = tpu.matmul %5, %6, %cst {dimension_numbers = #tpu.dot_dimension_numbers<[1], [0], [0], [1], [0, 0, 1, 1], [], []>} : vector<2x7680xbf16>, vector<7680x128xbf16>, vector<2x128xf32> -> vector<2x128xf32>
    %8 = arith.addf %3, %7 : vector<2x128xf32>
    %c0_6 = arith.constant 0 : index
    %c0_7 = arith.constant 0 : index
    %9 = vector.load %arg10[%c0_6, %c0_7] : memref<2x128xf32, #tpu.memory_space<vmem>>, vector<2x128xf32>
    tpu.vector_store %arg10[%c0_6, %c0_7], %8 {strides = array<i32>} : memref<2x128xf32, #tpu.memory_space<vmem>>, vector<2x128xf32>,
    %c3_i32 = arith.constant 3 : i32
    %10 = arith.cmpi eq, %arg0, %c3_i32 : i32
    %11 = arith.extui %10 : i1 to i32
    %c0_i32_8 = arith.constant 0 : i32
    %12 = arith.cmpi ne, %11, %c0_i32_8 : i32
    scf.if %12 {
      %c0_9 = arith.constant 0 : index
      %c0_10 = arith.constant 0 : index
      %13 = vector.load %arg10[%c0_9, %c0_10] : memref<2x128xf32, #tpu.memory_space<vmem>>, vector<2x128xf32>
      %c0_11 = arith.constant 0 : index
      %c0_12 = arith.constant 0 : index
      %14 = vector.load %arg3[%c0_11, %c0_12] : memref<1x128xf32, #tpu.memory_space<vmem>>, vector<1x128xf32>
      %15 = vector.broadcast %14 : vector<1x128xf32> to vector<2x128xf32>
      %16 = arith.addf %13, %15 : vector<2x128xf32>
      %17 = math.tanh %16 : vector<2x128xf32>
      %c0_13 = arith.constant 0 : index
      %c0_14 = arith.constant 0 : index
      %18 = vector.load %arg4[%c0_13, %c0_14] : memref<128x128xf32, #tpu.memory_space<vmem>>, vector<128x128xf32>
      %cst_15 = arith.constant dense<0.000000e+00> : vector<2x128xf32>
      %19 = tpu.matmul %17, %18, %cst_15 {dimension_numbers = #tpu.dot_dimension_numbers<[1], [0], [0], [1], [0, 0, 1, 1], [], []>} : vector<2x128xf32>, vector<128x128xf32>, vector<2x128xf32> -> vector<2x128xf32>
      %c0_16 = arith.constant 0 : index
      %c0_17 = arith.constant 0 : index
      %20 = vector.load %arg5[%c0_16, %c0_17] : memref<1x128xf32, #tpu.memory_space<vmem>>, vector<1x128xf32>
      %21 = vector.broadcast %20 : vector<1x128xf32> to vector<2x128xf32>
      %22 = arith.addf %19, %21 : vector<2x128xf32>
      %23 = math.tanh %22 : vector<2x128xf32>
      %c0_18 = arith.constant 0 : index
      %c0_19 = arith.constant 0 : index
      %24 = vector.load %arg6[%c0_18, %c0_19] : memref<128x128xf32, #tpu.memory_space<vmem>>, vector<128x128xf32>
      %cst_20 = arith.constant dense<0.000000e+00> : vector<2x128xf32>
      %25 = tpu.matmul %23, %24, %cst_20 {dimension_numbers = #tpu.dot_dimension_numbers<[1], [0], [0], [1], [0, 0, 1, 1], [], []>} : vector<2x128xf32>, vector<128x128xf32>, vector<2x128xf32> -> vector<2x128xf32>
      %c0_21 = arith.constant 0 : index
      %c0_22 = arith.constant 0 : index
      %26 = vector.load %arg7[%c0_21, %c0_22] : memref<1x128xf32, #tpu.memory_space<vmem>>, vector<1x128xf32>
      %27 = vector.broadcast %26 : vector<1x128xf32> to vector<2x128xf32>
      %28 = arith.addf %25, %27 : vector<2x128xf32>
      %29 = math.tanh %28 : vector<2x128xf32>
      %c0_23 = arith.constant 0 : index
      %c0_24 = arith.constant 0 : index
      %30 = vector.load %arg8[%c0_23, %c0_24] : memref<128x128xf32, #tpu.memory_space<vmem>>, vector<128x128xf32>
      %cst_25 = arith.constant dense<0.000000e+00> : vector<2x128xf32>
      %31 = tpu.matmul %29, %30, %cst_25 {dimension_numbers = #tpu.dot_dimension_numbers<[1], [0], [0], [1], [0, 0, 1, 1], [], []>} : vector<2x128xf32>, vector<128x128xf32>, vector<2x128xf32> -> vector<2x128xf32>
      %c0_26 = arith.constant 0 : index
      %c0_27 = arith.constant 0 : index
      %32 = vector.load %arg9[%c0_26, %c0_27] : memref<1x128xf32, #tpu.memory_space<vmem>>, vector<1x128xf32>
      %33 = vector.broadcast %32 : vector<1x128xf32> to vector<2x128xf32>
      %34 = arith.addf %31, %33 : vector<2x128xf32>
      %c0_28 = arith.constant 0 : index
      %c0_29 = arith.constant 0 : index
      %35 = vector.load %arg10[%c0_28, %c0_29] : memref<2x128xf32, #tpu.memory_space<vmem>>, vector<2x128xf32>
      tpu.vector_store %arg10[%c0_28, %c0_29], %34 {strides = array<i32>} : memref<2x128xf32, #tpu.memory_space<vmem>>, vector<2x128xf32>,
    } else {
    }
    return
  }
  func.func @transform_0(%arg0: i32) -> (i32, i32) {
    %c0_i32 = arith.constant 0 : i32
    %c0_i32_0 = arith.constant 0 : i32
    return %c0_i32, %arg0 : i32, i32
  }
  func.func @transform_1(%arg0: i32) -> (i32, i32) {
    %c0_i32 = arith.constant 0 : i32
    %c0_i32_0 = arith.constant 0 : i32
    return %arg0, %c0_i32 : i32, i32
  }
  func.func @transform_2(%arg0: i32) -> (i32, i32) {
    %c0_i32 = arith.constant 0 : i32
    %c0_i32_0 = arith.constant 0 : i32
    %c0_i32_1 = arith.constant 0 : i32
    return %c0_i32, %c0_i32_0 : i32, i32
  }
  func.func @transform_3(%arg0: i32) -> (i32, i32) {
    %c0_i32 = arith.constant 0 : i32
    %c0_i32_0 = arith.constant 0 : i32
    %c0_i32_1 = arith.constant 0 : i32
    return %c0_i32, %c0_i32_0 : i32, i32
  }
  func.func @transform_4(%arg0: i32) -> (i32, i32) {
    %c0_i32 = arith.constant 0 : i32
    %c0_i32_0 = arith.constant 0 : i32
    %c0_i32_1 = arith.constant 0 : i32
    return %c0_i32, %c0_i32_0 : i32, i32
  }
  func.func @transform_5(%arg0: i32) -> (i32, i32) {
    %c0_i32 = arith.constant 0 : i32
    %c0_i32_0 = arith.constant 0 : i32
    %c0_i32_1 = arith.constant 0 : i32
    return %c0_i32, %c0_i32_0 : i32, i32
  }
  func.func @transform_6(%arg0: i32) -> (i32, i32) {
    %c0_i32 = arith.constant 0 : i32
    %c0_i32_0 = arith.constant 0 : i32
    %c0_i32_1 = arith.constant 0 : i32
    return %c0_i32, %c0_i32_0 : i32, i32
  }
  func.func @transform_7(%arg0: i32) -> (i32, i32) {
    %c0_i32 = arith.constant 0 : i32
    %c0_i32_0 = arith.constant 0 : i32
    %c0_i32_1 = arith.constant 0 : i32
    return %c0_i32, %c0_i32_0 : i32, i32
  }
  func.func @transform_8(%arg0: i32) -> (i32, i32) {
    %c0_i32 = arith.constant 0 : i32
    %c0_i32_0 = arith.constant 0 : i32
    %c0_i32_1 = arith.constant 0 : i32
    return %c0_i32, %c0_i32_0 : i32, i32
  }
  func.func @transform_9(%arg0: i32) -> (i32, i32) {
    %c0_i32 = arith.constant 0 : i32
    %c0_i32_0 = arith.constant 0 : i32
    %c0_i32_1 = arith.constant 0 : i32
    return %c0_i32, %c0_i32_0 : i32, i32
  }
}

</mosaic_0001>

<llo_original>
// kernel: _mlp_forward_fused.1
$region0: #{_mlp_forward_fused.1}
  #allocation0 [shape = 'u32[]', space=smem, size = 0x4, offset = 0x4, fixed_abs, tag = 'smem constant byte address 0x4 - core index']
  #allocation1 [shape = 'u32[144,128]{1,0:T(1,128)}', space=vmem, size = 0x12000, scoped, tag = 'internal scratch']
  %s0 = inlined_call_operand.vmem [shape: f32[2,30720], index: 0, kind: input, shape index: {}]
  %s1 = inlined_call_operand.hbm [shape: bf16[30720,128], index: 1, kind: input, shape index: {}]
  %s2 = inlined_call_operand.hbm [shape: f32[1,128], index: 2, kind: input, shape index: {}]
  %s3 = inlined_call_operand.hbm [shape: f32[128,128], index: 3, kind: input, shape index: {}]
  %s4 = inlined_call_operand.hbm [shape: f32[1,128], index: 4, kind: input, shape index: {}]
  %s5 = inlined_call_operand.hbm [shape: f32[128,128], index: 5, kind: input, shape index: {}]
  %s6 = inlined_call_operand.hbm [shape: f32[1,128], index: 6, kind: input, shape index: {}]
  %s7 = inlined_call_operand.hbm [shape: f32[128,128], index: 7, kind: input, shape index: {}]
  %s8 = inlined_call_operand.hbm [shape: f32[1,128], index: 8, kind: input, shape index: {}]
  %s9 = inlined_call_operand.hbm [shape: f32[2,128], index: 9, kind: output, shape index: {}]
  %s10 = sld [smem:[#allocation0]]
  $region109: #{_mlp_forward_fused.1} parent=0
    _
  %s12 = ssub.s32 1, %s10
  %s13 = scalar_select 0, %s12, %s10
  $region1: #{_mlp_forward_fused.1} parent=0
    #allocation2 [shape = 'u8[3932160]{0}', space=vmem, size = 0x3c0000, scoped, tag = 'input window, operand 1']
    #allocation3 [shape = 's32[2]{0}', space=sflag, size = 0x8, scoped, tag = 'scoped memory for _mlp_forward_fused.1']
    #allocation4 [shape = 's32[2]{0}', space=sflag, size = 0x8, scoped, tag = 'scoped memory for _mlp_forward_fused.1']
    #allocation5 [shape = 'u8[512]{0}', space=vmem, size = 0x400, scoped, tag = 'input window, operand 2, single buffered']
    #allocation6 [shape = 's32[1]{0}', space=sflag, size = 0x4, scoped, tag = 'scoped memory for _mlp_forward_fused.1']
    #allocation7 [shape = 'u8[65536]{0}', space=vmem, size = 0x10000, scoped, tag = 'input window, operand 3, single buffered']
    #allocation8 [shape = 'u8[512]{0}', space=vmem, size = 0x400, scoped, tag = 'input window, operand 4, single buffered']
    #allocation9 [shape = 's32[1]{0}', space=sflag, size = 0x4, scoped, tag = 'scoped memory for _mlp_forward_fused.1']
    #allocation10 [shape = 'u8[65536]{0}', space=vmem, size = 0x10000, scoped, tag = 'input window, operand 5, single buffered']
    #allocation11 [shape = 'u8[512]{0}', space=vmem, size = 0x400, scoped, tag = 'input window, operand 6, single buffered']
    #allocation12 [shape = 's32[1]{0}', space=sflag, size = 0x4, scoped, tag = 'scoped memory for _mlp_forward_fused.1']
    #allocation13 [shape = 'u8[65536]{0}', space=vmem, size = 0x10000, scoped, tag = 'input window, operand 7, single buffered']
    #allocation14 [shape = 'u8[512]{0}', space=vmem, size = 0x400, scoped, tag = 'input window, operand 8, single buffered']
    #allocation15 [shape = 's32[1]{0}', space=sflag, size = 0x4, scoped, tag = 'scoped memory for _mlp_forward_fused.1']
    #allocation16 [shape = 'u8[1024]{0}', space=vmem, size = 0x400, scoped, tag = 'output window, operand 0, single buffered']
    %14 = vsyncpa [#allocation3], 0
    %s15 = scalar_lea.sflag [#allocation3], 1
    %16 = vsyncpa %s15, 0
    %17 = vsyncpa [#allocation6], 0
    %18 = vsyncpa [#allocation9], 0
    %19 = vsyncpa [#allocation12], 0
    %20 = vsyncpa [#allocation15], 0
    %21 = vsyncpa [#allocation4], 0
    loop: start=0, step=1, limit=6
    $region2: #{_mlp_forward_fused.1} parent=1 // loop_pre_header
      _
    $region3: #{_mlp_forward_fused.1} parent=1 // loop_header
      %s23 = sphi 0, %s27
      %p24 = scmp.ge.s32.totalorder %s23, 6
      %s33 = sphi 0, %s35
      %s36 = sphi 0, %s33
      %s37 = sphi 0, %s36
      %s53 = sphi 0, %s37
      %s59 = sphi 0, %s61
      %s62 = sphi 0, %s59
      %s63 = sphi 0, %s62
      %s79 = sphi 0, %s63
      %s83 = sphi 0, %s83
      %s85 = sphi 0, %s83
      %s86 = sphi 0, %s85
      %s100 = sphi 0, %s86
      %s104 = sphi 0, %s104
      %s106 = sphi 0, %s104
      %s107 = sphi 0, %s106
      %s121 = sphi 0, %s107
      %s125 = sphi 0, %s125
      %s127 = sphi 0, %s125
      %s128 = sphi 0, %s127
      %s142 = sphi 0, %s128
      %s146 = sphi 0, %s146
      %s148 = sphi 0, %s146
      %s149 = sphi 0, %s148
      %s163 = sphi 0, %s149
      %s167 = sphi 0, %s167
      %s169 = sphi 0, %s167
      %s170 = sphi 0, %s169
      %s184 = sphi 0, %s170
      %s188 = sphi 0, %s188
      %s190 = sphi 0, %s188
      %s191 = sphi 0, %s190
      %s205 = sphi 0, %s191
      %s209 = sphi 0, %s209
      %s211 = sphi 0, %s209
      %s212 = sphi 0, %s211
      %s226 = sphi 0, %s212
      %s230 = sphi 0, %s230
      %s232 = sphi 0, %s230
      %s233 = sphi 0, %s232
      %s247 = sphi 0, %s233
    $region4: #{_mlp_forward_fused.1} parent=1 // loop_header_branch
      %26 = sbr.rel (%p24) target = $region8
    $region5: #{_mlp_forward_fused.1} parent=1 // loop_body
      %s28 = ssub.s32 %s23, 1
      %s29 = ssub.s32 %s23, 2
      %s30 = sadd.s32 %s23, 1
      %s31 = ssub.s32 %s23, %s30
      %p32 = scmp.eq.s32.totalorder %s31, 0
      %s34 = sadd.s32 %s33, 1
      %s35 = scalar_select %p32, %s33, %s34
      %p38 = pneg %p32
      %p39 = scmp.eq.s32.totalorder %s23, 3
      %p40 = por %p38, %p39
      %p41 = scmp.ne.s32.totalorder %s33, %s36
      %p42 = scmp.eq.s32.totalorder %s23, 0
      %p43 = por %p41, %p42
      %p44 = scmp.ne.s32.totalorder %s33, %s36
      %p45 = scmp.eq.s32.totalorder %s28, 3
      %p46 = por %p44, %p45
      %p47 = scmp.ne.s32.totalorder %s36, %s37
      %p48 = scmp.eq.s32.totalorder %s28, 0
      %p49 = por %p47, %p48
      %p50 = scmp.ne.s32.totalorder %s36, %s37
      %p51 = scmp.eq.s32.totalorder %s29, 3
      %p52 = por %p50, %p51
      %p54 = scmp.ne.s32.totalorder %s37, %s53
      %p55 = scmp.eq.s32.totalorder %s29, 0
      %p56 = por %p54, %p55
      %s57 = ssub.s32 %s23, %s30
      %p58 = scmp.eq.s32.totalorder %s57, 0
      %s60 = sadd.s32 %s59, 1
      %s61 = scalar_select %p58, %s59, %s60
      %p64 = pneg %p58
      %p65 = scmp.eq.s32.totalorder %s23, 3
      %p66 = por %p64, %p65
      %p67 = scmp.ne.s32.totalorder %s59, %s62
      %p68 = scmp.eq.s32.totalorder %s23, 0
      %p69 = por %p67, %p68
      %p70 = scmp.ne.s32.totalorder %s59, %s62
      %p71 = scmp.eq.s32.totalorder %s28, 3
      %p72 = por %p70, %p71
      %p73 = scmp.ne.s32.totalorder %s62, %s63
      %p74 = scmp.eq.s32.totalorder %s28, 0
      %p75 = por %p73, %p74
      %p76 = scmp.ne.s32.totalorder %s62, %s63
      %p77 = scmp.eq.s32.totalorder %s29, 3
      %p78 = por %p76, %p77
      %p80 = scmp.ne.s32.totalorder %s63, %s79
      %p81 = scmp.eq.s32.totalorder %s29, 0
      %p82 = por %p80, %p81
      %s84 = sadd.s32 %s83, 1
      %p87 = scmp.eq.s32.totalorder %s23, 3
      %p88 = scmp.ne.s32.totalorder %s83, %s85
      %p89 = scmp.eq.s32.totalorder %s23, 0
      %p90 = por %p88, %p89
      %p91 = scmp.ne.s32.totalorder %s83, %s85
      %p92 = scmp.eq.s32.totalorder %s28, 3
      %p93 = por %p91, %p92
      %p94 = scmp.ne.s32.totalorder %s85, %s86
      %p95 = scmp.eq.s32.totalorder %s28, 0
      %p96 = por %p94, %p95
      %p97 = scmp.ne.s32.totalorder %s85, %s86
      %p98 = scmp.eq.s32.totalorder %s29, 3
      %p99 = por %p97, %p98
      %p101 = scmp.ne.s32.totalorder %s86, %s100
      %p102 = scmp.eq.s32.totalorder %s29, 0
      %p103 = por %p101, %p102
      %s105 = sadd.s32 %s104, 1
      %p108 = scmp.eq.s32.totalorder %s23, 3
      %p109 = scmp.ne.s32.totalorder %s104, %s106
      %p110 = scmp.eq.s32.totalorder %s23, 0
      %p111 = por %p109, %p110
      %p112 = scmp.ne.s32.totalorder %s104, %s106
      %p113 = scmp.eq.s32.totalorder %s28, 3
      %p114 = por %p112, %p113
      %p115 = scmp.ne.s32.totalorder %s106, %s107
      %p116 = scmp.eq.s32.totalorder %s28, 0
      %p117 = por %p115, %p116
      %p118 = scmp.ne.s32.totalorder %s106, %s107
      %p119 = scmp.eq.s32.totalorder %s29, 3
      %p120 = por %p118, %p119
      %p122 = scmp.ne.s32.totalorder %s107, %s121
      %p123 = scmp.eq.s32.totalorder %s29, 0
      %p124 = por %p122, %p123
      %s126 = sadd.s32 %s125, 1
      %p129 = scmp.eq.s32.totalorder %s23, 3
      %p130 = scmp.ne.s32.totalorder %s125, %s127
      %p131 = scmp.eq.s32.totalorder %s23, 0
      %p132 = por %p130, %p131
      %p133 = scmp.ne.s32.totalorder %s125, %s127
      %p134 = scmp.eq.s32.totalorder %s28, 3
      %p135 = por %p133, %p134
      %p136 = scmp.ne.s32.totalorder %s127, %s128
      %p137 = scmp.eq.s32.totalorder %s28, 0
      %p138 = por %p136, %p137
      %p139 = scmp.ne.s32.totalorder %s127, %s128
      %p140 = scmp.eq.s32.totalorder %s29, 3
      %p141 = por %p139, %p140
      %p143 = scmp.ne.s32.totalorder %s128, %s142
      %p144 = scmp.eq.s32.totalorder %s29, 0
      %p145 = por %p143, %p144
      %s147 = sadd.s32 %s146, 1
      %p150 = scmp.eq.s32.totalorder %s23, 3
      %p151 = scmp.ne.s32.totalorder %s146, %s148
      %p152 = scmp.eq.s32.totalorder %s23, 0
      %p153 = por %p151, %p152
      %p154 = scmp.ne.s32.totalorder %s146, %s148
      %p155 = scmp.eq.s32.totalorder %s28, 3
      %p156 = por %p154, %p155
      %p157 = scmp.ne.s32.totalorder %s148, %s149
      %p158 = scmp.eq.s32.totalorder %s28, 0
      %p159 = por %p157, %p158
      %p160 = scmp.ne.s32.totalorder %s148, %s149
      %p161 = scmp.eq.s32.totalorder %s29, 3
      %p162 = por %p160, %p161
      %p164 = scmp.ne.s32.totalorder %s149, %s163
      %p165 = scmp.eq.s32.totalorder %s29, 0
      %p166 = por %p164, %p165
      %s168 = sadd.s32 %s167, 1
      %p171 = scmp.eq.s32.totalorder %s23, 3
      %p172 = scmp.ne.s32.totalorder %s167, %s169
      %p173 = scmp.eq.s32.totalorder %s23, 0
      %p174 = por %p172, %p173
      %p175 = scmp.ne.s32.totalorder %s167, %s169
      %p176 = scmp.eq.s32.totalorder %s28, 3
      %p177 = por %p175, %p176
      %p178 = scmp.ne.s32.totalorder %s169, %s170
      %p179 = scmp.eq.s32.totalorder %s28, 0
      %p180 = por %p178, %p179
      %p181 = scmp.ne.s32.totalorder %s169, %s170
      %p182 = scmp.eq.s32.totalorder %s29, 3
      %p183 = por %p181, %p182
      %p185 = scmp.ne.s32.totalorder %s170, %s184
      %p186 = scmp.eq.s32.totalorder %s29, 0
      %p187 = por %p185, %p186
      %s189 = sadd.s32 %s188, 1
      %p192 = scmp.eq.s32.totalorder %s23, 3
      %p193 = scmp.ne.s32.totalorder %s188, %s190
      %p194 = scmp.eq.s32.totalorder %s23, 0
      %p195 = por %p193, %p194
      %p196 = scmp.ne.s32.totalorder %s188, %s190
      %p197 = scmp.eq.s32.totalorder %s28, 3
      %p198 = por %p196, %p197
      %p199 = scmp.ne.s32.totalorder %s190, %s191
      %p200 = scmp.eq.s32.totalorder %s28, 0
      %p201 = por %p199, %p200
      %p202 = scmp.ne.s32.totalorder %s190, %s191
      %p203 = scmp.eq.s32.totalorder %s29, 3
      %p204 = por %p202, %p203
      %p206 = scmp.ne.s32.totalorder %s191, %s205
      %p207 = scmp.eq.s32.totalorder %s29, 0
      %p208 = por %p206, %p207
      %s210 = sadd.s32 %s209, 1
      %p213 = scmp.eq.s32.totalorder %s23, 3
      %p214 = scmp.ne.s32.totalorder %s209, %s211
      %p215 = scmp.eq.s32.totalorder %s23, 0
      %p216 = por %p214, %p215
      %p217 = scmp.ne.s32.totalorder %s209, %s211
      %p218 = scmp.eq.s32.totalorder %s28, 3
      %p219 = por %p217, %p218
      %p220 = scmp.ne.s32.totalorder %s211, %s212
      %p221 = scmp.eq.s32.totalorder %s28, 0
      %p222 = por %p220, %p221
      %p223 = scmp.ne.s32.totalorder %s211, %s212
      %p224 = scmp.eq.s32.totalorder %s29, 3
      %p225 = por %p223, %p224
      %p227 = scmp.ne.s32.totalorder %s212, %s226
      %p228 = scmp.eq.s32.totalorder %s29, 0
      %p229 = por %p227, %p228
      %s231 = sadd.s32 %s230, 1
      %p234 = scmp.eq.s32.totalorder %s23, 3
      %p235 = scmp.ne.s32.totalorder %s230, %s232
      %p236 = scmp.eq.s32.totalorder %s23, 0
      %p237 = por %p235, %p236
      %p238 = scmp.ne.s32.totalorder %s230, %s232
      %p239 = scmp.eq.s32.totalorder %s28, 3
      %p240 = por %p238, %p239
      %p241 = scmp.ne.s32.totalorder %s232, %s233
      %p242 = scmp.eq.s32.totalorder %s28, 0
      %p243 = por %p241, %p242
      %p244 = scmp.ne.s32.totalorder %s232, %s233
      %p245 = scmp.eq.s32.totalorder %s29, 3
      %p246 = por %p244, %p245
      %p248 = scmp.ne.s32.totalorder %s233, %s247
      %p249 = scmp.eq.s32.totalorder %s29, 0
      %p250 = por %p248, %p249
      %p251 = scmp.le.s32.totalorder 1, %s23
      %p252 = scmp.lt.s32.totalorder %s23, 5
      %p253 = pnand %p251, %p252
      %p254 = pneg %p253
      // Predicated region
      $region9: #{_mlp_forward_fused.1} parent=5 // pred_check
        _
      $region10: #{_mlp_forward_fused.1} parent=5 // pred_check_branch
        %256 = sbr.rel (%p253) target = $region12
      $region11: #{_mlp_forward_fused.1} parent=5 // pred_region
        %s257 = ssub.s32 %s23, 1
        // Predicated region
        $region13: #{_mlp_forward_fused.1} parent=11 // pred_check
          %p258 = pneg %p96
        $region14: #{_mlp_forward_fused.1} parent=11 // pred_check_branch
          %260 = sbr.rel (%p258) target = $region16
        $region15: #{_mlp_forward_fused.1} parent=11 // pred_region
          %s262 = ssub.s32 16, 16
          %263 = vsyncadd [#allocation6], %s262
          %s265 = sshll.u32 [#allocation5], 4
          %s266 = int_to_ptr.vmem [resolvable:$true] %s265
          %268 = dma.hbm_to_vmem [thread:$0]  %s2, 16, %s266, [#allocation6]
        $region16: #{_mlp_forward_fused.1} parent=11 // pred_fallthru
          _
        // Predicated region
        $region17: #{_mlp_forward_fused.1} parent=11 // pred_check
          %p269 = pneg %p117
        $region18: #{_mlp_forward_fused.1} parent=11 // pred_check_branch
          %271 = sbr.rel (%p269) target = $region20
        $region19: #{_mlp_forward_fused.1} parent=11 // pred_region
          %s273 = ssub.s32 2048, 2048
          %274 = vsyncadd [#allocation6], %s273
          %s275 = sshll.u32 [#allocation7], 4
          %s276 = int_to_ptr.vmem [resolvable:$true] %s275
          %281 = dma.hbm_to_vmem [thread:$0]  %s3, 2048, %s276, [#allocation6], 128, 128, 8
        $region20: #{_mlp_forward_fused.1} parent=11 // pred_fallthru
          _
        // Predicated region
        $region21: #{_mlp_forward_fused.1} parent=11 // pred_check
          %p282 = pneg %p138
        $region22: #{_mlp_forward_fused.1} parent=11 // pred_check_branch
          %284 = sbr.rel (%p282) target = $region24
        $region23: #{_mlp_forward_fused.1} parent=11 // pred_region
          %s286 = ssub.s32 16, 16
          %287 = vsyncadd [#allocation9], %s286
          %s289 = sshll.u32 [#allocation8], 4
          %s290 = int_to_ptr.vmem [resolvable:$true] %s289
          %292 = dma.hbm_to_vmem [thread:$0]  %s4, 16, %s290, [#allocation9]
        $region24: #{_mlp_forward_fused.1} parent=11 // pred_fallthru
          _
        // Predicated region
        $region25: #{_mlp_forward_fused.1} parent=11 // pred_check
          %p293 = pneg %p159
        $region26: #{_mlp_forward_fused.1} parent=11 // pred_check_branch
          %295 = sbr.rel (%p293) target = $region28
        $region27: #{_mlp_forward_fused.1} parent=11 // pred_region
          %s297 = ssub.s32 2048, 2048
          %298 = vsyncadd [#allocation9], %s297
          %s299 = sshll.u32 [#allocation10], 4
          %s300 = int_to_ptr.vmem [resolvable:$true] %s299
          %305 = dma.hbm_to_vmem [thread:$0]  %s5, 2048, %s300, [#allocation9], 128, 128, 8
        $region28: #{_mlp_forward_fused.1} parent=11 // pred_fallthru
          _
        // Predicated region
        $region29: #{_mlp_forward_fused.1} parent=11 // pred_check
          %p306 = pneg %p180
        $region30: #{_mlp_forward_fused.1} parent=11 // pred_check_branch
          %308 = sbr.rel (%p306) target = $region32
        $region31: #{_mlp_forward_fused.1} parent=11 // pred_region
          %s310 = ssub.s32 16, 16
          %311 = vsyncadd [#allocation12], %s310
          %s313 = sshll.u32 [#allocation11], 4
          %s314 = int_to_ptr.vmem [resolvable:$true] %s313
          %316 = dma.hbm_to_vmem [thread:$0]  %s6, 16, %s314, [#allocation12]
        $region32: #{_mlp_forward_fused.1} parent=11 // pred_fallthru
          _
        // Predicated region
        $region33: #{_mlp_forward_fused.1} parent=11 // pred_check
          %p317 = pneg %p201
        $region34: #{_mlp_forward_fused.1} parent=11 // pred_check_branch
          %319 = sbr.rel (%p317) target = $region36
        $region35: #{_mlp_forward_fused.1} parent=11 // pred_region
          %s321 = ssub.s32 2048, 2048
          %322 = vsyncadd [#allocation12], %s321
          %s323 = sshll.u32 [#allocation13], 4
          %s324 = int_to_ptr.vmem [resolvable:$true] %s323
          %329 = dma.hbm_to_vmem [thread:$0]  %s7, 2048, %s324, [#allocation12], 128, 128, 8
        $region36: #{_mlp_forward_fused.1} parent=11 // pred_fallthru
          _
        // Predicated region
        $region37: #{_mlp_forward_fused.1} parent=11 // pred_check
          %p330 = pneg %p222
        $region38: #{_mlp_forward_fused.1} parent=11 // pred_check_branch
          %332 = sbr.rel (%p330) target = $region40
        $region39: #{_mlp_forward_fused.1} parent=11 // pred_region
          %s334 = ssub.s32 16, 16
          %335 = vsyncadd [#allocation15], %s334
          %s337 = sshll.u32 [#allocation14], 4
          %s338 = int_to_ptr.vmem [resolvable:$true] %s337
          %340 = dma.hbm_to_vmem [thread:$0]  %s8, 16, %s338, [#allocation15]
        $region40: #{_mlp_forward_fused.1} parent=11 // pred_fallthru
          _
      $region12: #{_mlp_forward_fused.1} parent=5 // pred_fallthru
        _
      %p341 = scmp.lt.s32.totalorder %s23, 4
      // Predicated region
      $region41: #{_mlp_forward_fused.1} parent=5 // pred_check
        %p342 = pneg %p341
      $region42: #{_mlp_forward_fused.1} parent=5 // pred_check_branch
        %344 = sbr.rel (%p342) target = $region44
      $region43: #{_mlp_forward_fused.1} parent=5 // pred_region
        // Predicated region
        $region45: #{_mlp_forward_fused.1} parent=43 // pred_check
          %p345 = pneg %p43
        $region46: #{_mlp_forward_fused.1} parent=43 // pred_check_branch
          %347 = sbr.rel (%p345) target = $region48
        $region47: #{_mlp_forward_fused.1} parent=43 // pred_region
          %s348 = smul.u32 60, %s23
          %p349 = scmp.lt.s32.totalorder %s348, 239
          %s350 = scalar_select %p349, %s348, 239
          %s351 = smul.addr %s350, 2
          %s352 = scalar_lea.vmem %s0, %s351
          %s353 = smul.u32 60, %s23
        $region48: #{_mlp_forward_fused.1} parent=43 // pred_fallthru
          _
        // Predicated region
        $region49: #{_mlp_forward_fused.1} parent=43 // pred_check
          %p354 = pneg %p69
        $region50: #{_mlp_forward_fused.1} parent=43 // pred_check_branch
          %356 = sbr.rel (%p354) target = $region52
        $region51: #{_mlp_forward_fused.1} parent=43 // pred_region
          %s357 = sand.u32 %s59, 1
          %s358 = scalar_lea.sflag [#allocation3], %s357
          %s359 = sand.u32 %s59, 1
          %s360 = smul.addr %s359, 3840
          %s361 = scalar_lea.vmem [#allocation2], %s360
          %s362 = smul.u32 960, %s23
          %s364 = ssub.s32 61440, 61440
          %365 = vsyncadd %s358, %s364
          %s366 = smul.addr %s362, 64
          %s367 = scalar_lea.hbm %s1, %s366
          %s368 = sshll.u32 %s361, 4
          %s369 = int_to_ptr.vmem [resolvable:$true] %s368
          %374 = dma.hbm_to_vmem [thread:$0]  %s367, 61440, %s369, %s358, 64, 64, 4
        $region52: #{_mlp_forward_fused.1} parent=43 // pred_fallthru
          _
      $region44: #{_mlp_forward_fused.1} parent=5 // pred_fallthru
        _
      %p375 = scmp.le.s32.totalorder 1, %s23
      %p376 = scmp.lt.s32.totalorder %s23, 5
      %p377 = pnand %p375, %p376
      %p378 = pneg %p377
      // Predicated region
      $region53: #{_mlp_forward_fused.1} parent=5 // pred_check
        _
      $region54: #{_mlp_forward_fused.1} parent=5 // pred_check_branch
        %380 = sbr.rel (%p377) target = $region56
      $region55: #{_mlp_forward_fused.1} parent=5 // pred_region
        %s381 = ssub.s32 %s23, 1
        %s382 = sand.u32 %s62, 1
        %s383 = scalar_lea.sflag [#allocation3], %s382
        %s384 = sand.u32 %s62, 1
        %s385 = smul.addr %s384, 3840
        %s386 = scalar_lea.vmem [#allocation2], %s385
        // Predicated region
        $region57: #{_mlp_forward_fused.1} parent=55 // pred_check
          %p387 = pneg %p75
        $region58: #{_mlp_forward_fused.1} parent=55 // pred_check_branch
          %389 = sbr.rel (%p387) target = $region60
        $region59: #{_mlp_forward_fused.1} parent=55 // pred_region
          %390 = dma.done %s383, 61440
        $region60: #{_mlp_forward_fused.1} parent=55 // pred_fallthru
          _
        // Predicated region
        $region61: #{_mlp_forward_fused.1} parent=55 // pred_check
          %p391 = pneg %p96
        $region62: #{_mlp_forward_fused.1} parent=55 // pred_check_branch
          %393 = sbr.rel (%p391) target = $region64
        $region63: #{_mlp_forward_fused.1} parent=55 // pred_region
          %394 = dma.done [#allocation6], 16
        $region64: #{_mlp_forward_fused.1} parent=55 // pred_fallthru
          _
        // Predicated region
        $region65: #{_mlp_forward_fused.1} parent=55 // pred_check
          %p395 = pneg %p117
        $region66: #{_mlp_forward_fused.1} parent=55 // pred_check_branch
          %397 = sbr.rel (%p395) target = $region68
        $region67: #{_mlp_forward_fused.1} parent=55 // pred_region
          %398 = dma.done [#allocation6], 2048
        $region68: #{_mlp_forward_fused.1} parent=55 // pred_fallthru
          _
        // Predicated region
        $region69: #{_mlp_forward_fused.1} parent=55 // pred_check
          %p399 = pneg %p138
        $region70: #{_mlp_forward_fused.1} parent=55 // pred_check_branch
          %401 = sbr.rel (%p399) target = $region72
        $region71: #{_mlp_forward_fused.1} parent=55 // pred_region
          %402 = dma.done [#allocation9], 16
        $region72: #{_mlp_forward_fused.1} parent=55 // pred_fallthru
          _
        // Predicated region
        $region73: #{_mlp_forward_fused.1} parent=55 // pred_check
          %p403 = pneg %p159
        $region74: #{_mlp_forward_fused.1} parent=55 // pred_check_branch
          %405 = sbr.rel (%p403) target = $region76
        $region75: #{_mlp_forward_fused.1} parent=55 // pred_region
          %406 = dma.done [#allocation9], 2048
        $region76: #{_mlp_forward_fused.1} parent=55 // pred_fallthru
          _
        // Predicated region
        $region77: #{_mlp_forward_fused.1} parent=55 // pred_check
          %p407 = pneg %p180
        $region78: #{_mlp_forward_fused.1} parent=55 // pred_check_branch
          %409 = sbr.rel (%p407) target = $region80
        $region79: #{_mlp_forward_fused.1} parent=55 // pred_region
          %410 = dma.done [#allocation12], 16
        $region80: #{_mlp_forward_fused.1} parent=55 // pred_fallthru
          _
        // Predicated region
        $region81: #{_mlp_forward_fused.1} parent=55 // pred_check
          %p411 = pneg %p201
        $region82: #{_mlp_forward_fused.1} parent=55 // pred_check_branch
          %413 = sbr.rel (%p411) target = $region84
        $region83: #{_mlp_forward_fused.1} parent=55 // pred_region
          %414 = dma.done [#allocation12], 2048
        $region84: #{_mlp_forward_fused.1} parent=55 // pred_fallthru
          _
        // Predicated region
        $region85: #{_mlp_forward_fused.1} parent=55 // pred_check
          %p415 = pneg %p222
        $region86: #{_mlp_forward_fused.1} parent=55 // pred_check_branch
          %417 = sbr.rel (%p415) target = $region88
        $region87: #{_mlp_forward_fused.1} parent=55 // pred_region
          %418 = dma.done [#allocation15], 16
        $region88: #{_mlp_forward_fused.1} parent=55 // pred_fallthru
          _
        %s419 = smul.u32 60, %s28
        %p420 = scmp.lt.s32.totalorder %s419, 239
        %s421 = scalar_select %p420, %s419, 239
        %s422 = smul.addr %s421, 2
        %s423 = scalar_lea.vmem %s0, %s422
        %p424 = pneg %p49
        %p425 = pneg %p46
        %s426 = sand.u32 %s62, 1
        %s427 = scalar_lea.sflag [#allocation3], %s426
        %s428 = sand.u32 %s62, 1
        %s429 = smul.addr %s428, 3840
        %s430 = scalar_lea.vmem [#allocation2], %s429
        %p431 = pneg %p75
        %p432 = pneg %p72
        %p433 = pneg %p96
        %p434 = pneg %p93
        %p435 = pneg %p117
        %p436 = pneg %p114
        %p437 = pneg %p138
        %p438 = pneg %p135
        %p439 = pneg %p159
        %p440 = pneg %p156
        %p441 = pneg %p180
        %p442 = pneg %p177
        %p443 = pneg %p201
        %p444 = pneg %p198
        %p445 = pneg %p222
        %p446 = pneg %p219
        %p447 = pneg %p243
        %p448 = pneg %p240
        %s449 = smul.u32 60, %s28
        %p450 = scmp.lt.s32.totalorder %s449, 239
        %s451 = scalar_select %p450, %s449, 239
        %s452 = smul.addr %s451, 2
        %s453 = scalar_lea.vmem %s0, %s452
        %s454 = smul.u32 60, %s28
        %s455 = smul.u32 960, %s28
        %p457 = scmp.eq.s32.totalorder %s28, 0
        // Predicated region
        $region89: #{_mlp_forward_fused.1} parent=55 // pred_check
          %p458 = pneg %p457
        $region90: #{_mlp_forward_fused.1} parent=55 // pred_check_branch
          %460 = sbr.rel (%p458) target = $region92
        $region91: #{_mlp_forward_fused.1} parent=55 // pred_region
          %461 = vst [vmem:[#allocation16] sm:$0x3] 0.0
        $region92: #{_mlp_forward_fused.1} parent=55 // pred_fallthru
          _
        %v462 = vld [vmem:[#allocation16] sm:$0x3]
        %v463 = vld [vmem:[%s453] sm:$0xff]
        %v464 = vld [vmem:[%s453 + $0x8] sm:$0xff]
        %v465 = vld [vmem:[%s453 + $0x10] sm:$0xff]
        %v466 = vld [vmem:[%s453 + $0x18] sm:$0xff]
        %v467 = vld [vmem:[%s453 + $0x20] sm:$0xff]
        %v468 = vld [vmem:[%s453 + $0x28] sm:$0xff]
        %v469 = vld [vmem:[%s453 + $0x30] sm:$0xff]
        %v470 = vld [vmem:[%s453 + $0x38] sm:$0xff]
        %v471 = vld [vmem:[%s453 + $0x40] sm:$0xff]
        %v472 = vld [vmem:[%s453 + $0x48] sm:$0xff]
        %v473 = vld [vmem:[%s453 + $0x50] sm:$0xff]
        %v474 = vld [vmem:[%s453 + $0x58] sm:$0xff]
        %v475 = vld [vmem:[%s453 + $0x60] sm:$0xff]
        %v476 = vld [vmem:[%s453 + $0x68] sm:$0xff]
        %v477 = vld [vmem:[%s453 + $0x70] sm:$0xff]
        %v493 = vcombine.high %v463, %v463
        %v495 = vunpack.c.l.s4 1983009808
        %v496 = vunpack.c.0.s8 %v495
        %v497 = vlaneseq
        %v498 = vshrl.u32 %v497, 7
        %v499 = vsub.s32 %v496, %v498
        %v500 = vrot.slane %v463, %v499
        %v502 = vunpack.c.l.s4 1983009808
        %v503 = vunpack.c.0.s8 %v502
        %v504 = vlaneseq
        %v505 = vshrl.u32 %v504, 7
        %v506 = vsub.s32 %v503, %v505
        %v507 = vrot.slane %v493, %v506
        %v508 = vcombine.high %v500, %v500
        %v509 = vcombine.high %v507, %v507
        %v510 = vcombine.high %v464, %v464
        %v512 = vunpack.c.l.s4 1983009808
        %v513 = vunpack.c.0.s8 %v512
        %v514 = vlaneseq
        %v515 = vshrl.u32 %v514, 7
        %v516 = vsub.s32 %v513, %v515
        %v517 = vrot.slane %v464, %v516
        %v519 = vunpack.c.l.s4 1983009808
        %v520 = vunpack.c.0.s8 %v519
        %v521 = vlaneseq
        %v522 = vshrl.u32 %v521, 7
        %v523 = vsub.s32 %v520, %v522
        %v524 = vrot.slane %v510, %v523
        %v525 = vcombine.high %v517, %v517
        %v526 = vcombine.high %v524, %v524
        %v527 = vcombine.high %v465, %v465
        %v529 = vunpack.c.l.s4 1983009808
        %v530 = vunpack.c.0.s8 %v529
        %v531 = vlaneseq
        %v532 = vshrl.u32 %v531, 7
        %v533 = vsub.s32 %v530, %v532
        %v534 = vrot.slane %v465, %v533
        %v536 = vunpack.c.l.s4 1983009808
        %v537 = vunpack.c.0.s8 %v536
        %v538 = vlaneseq
        %v539 = vshrl.u32 %v538, 7
        %v540 = vsub.s32 %v537, %v539
        %v541 = vrot.slane %v527, %v540
        %v542 = vcombine.high %v534, %v534
        %v543 = vcombine.high %v541, %v541
        %v544 = vcombine.high %v466, %v466
        %v546 = vunpack.c.l.s4 1983009808
        %v547 = vunpack.c.0.s8 %v546
        %v548 = vlaneseq
        %v549 = vshrl.u32 %v548, 7
        %v550 = vsub.s32 %v547, %v549
        %v551 = vrot.slane %v466, %v550
        %v553 = vunpack.c.l.s4 1983009808
        %v554 = vunpack.c.0.s8 %v553
        %v555 = vlaneseq
        %v556 = vshrl.u32 %v555, 7
        %v557 = vsub.s32 %v554, %v556
        %v558 = vrot.slane %v544, %v557
        %v559 = vcombine.high %v551, %v551
        %v560 = vcombine.high %v558, %v558
        %v561 = vcombine.high %v467, %v467
        %v563 = vunpack.c.l.s4 1983009808
        %v564 = vunpack.c.0.s8 %v563
        %v565 = vlaneseq
        %v566 = vshrl.u32 %v565, 7
        %v567 = vsub.s32 %v564, %v566
        %v568 = vrot.slane %v467, %v567
        %v570 = vunpack.c.l.s4 1983009808
        %v571 = vunpack.c.0.s8 %v570
        %v572 = vlaneseq
        %v573 = vshrl.u32 %v572, 7
        %v574 = vsub.s32 %v571, %v573
        %v575 = vrot.slane %v561, %v574
        %v576 = vcombine.high %v568, %v568
        %v577 = vcombine.high %v575, %v575
        %v578 = vcombine.high %v468, %v468
        %v580 = vunpack.c.l.s4 1983009808
        %v581 = vunpack.c.0.s8 %v580
        %v582 = vlaneseq
        %v583 = vshrl.u32 %v582, 7
        %v584 = vsub.s32 %v581, %v583
        %v585 = vrot.slane %v468, %v584
        %v587 = vunpack.c.l.s4 1983009808
        %v588 = vunpack.c.0.s8 %v587
        %v589 = vlaneseq
        %v590 = vshrl.u32 %v589, 7
        %v591 = vsub.s32 %v588, %v590
        %v592 = vrot.slane %v578, %v591
        %v593 = vcombine.high %v585, %v585
        %v594 = vcombine.high %v592, %v592
        %v595 = vcombine.high %v469, %v469
        %v597 = vunpack.c.l.s4 1983009808
        %v598 = vunpack.c.0.s8 %v597
        %v599 = vlaneseq
        %v600 = vshrl.u32 %v599, 7
        %v601 = vsub.s32 %v598, %v600
        %v602 = vrot.slane %v469, %v601
        %v604 = vunpack.c.l.s4 1983009808
        %v605 = vunpack.c.0.s8 %v604
        %v606 = vlaneseq
        %v607 = vshrl.u32 %v606, 7
        %v608 = vsub.s32 %v605, %v607
        %v609 = vrot.slane %v595, %v608
        %v610 = vcombine.high %v602, %v602
        %v611 = vcombine.high %v609, %v609
        %v612 = vcombine.high %v470, %v470
        %v614 = vunpack.c.l.s4 1983009808
        %v615 = vunpack.c.0.s8 %v614
        %v616 = vlaneseq
        %v617 = vshrl.u32 %v616, 7
        %v618 = vsub.s32 %v615, %v617
        %v619 = vrot.slane %v470, %v618
        %v621 = vunpack.c.l.s4 1983009808
        %v622 = vunpack.c.0.s8 %v621
        %v623 = vlaneseq
        %v624 = vshrl.u32 %v623, 7
        %v625 = vsub.s32 %v622, %v624
        %v626 = vrot.slane %v612, %v625
        %v627 = vcombine.high %v619, %v619
        %v628 = vcombine.high %v626, %v626
        %v629 = vcombine.high %v471, %v471
        %v631 = vunpack.c.l.s4 1983009808
        %v632 = vunpack.c.0.s8 %v631
        %v633 = vlaneseq
        %v634 = vshrl.u32 %v633, 7
        %v635 = vsub.s32 %v632, %v634
        %v636 = vrot.slane %v471, %v635
        %v638 = vunpack.c.l.s4 1983009808
        %v639 = vunpack.c.0.s8 %v638
        %v640 = vlaneseq
        %v641 = vshrl.u32 %v640, 7
        %v642 = vsub.s32 %v639, %v641
        %v643 = vrot.slane %v629, %v642
        %v644 = vcombine.high %v636, %v636
        %v645 = vcombine.high %v643, %v643
        %v646 = vcombine.high %v472, %v472
        %v648 = vunpack.c.l.s4 1983009808
        %v649 = vunpack.c.0.s8 %v648
        %v650 = vlaneseq
        %v651 = vshrl.u32 %v650, 7
        %v652 = vsub.s32 %v649, %v651
        %v653 = vrot.slane %v472, %v652
        %v655 = vunpack.c.l.s4 1983009808
        %v656 = vunpack.c.0.s8 %v655
        %v657 = vlaneseq
        %v658 = vshrl.u32 %v657, 7
        %v659 = vsub.s32 %v656, %v658
        %v660 = vrot.slane %v646, %v659
        %v661 = vcombine.high %v653, %v653
        %v662 = vcombine.high %v660, %v660
        %v663 = vcombine.high %v473, %v473
        %v665 = vunpack.c.l.s4 1983009808
        %v666 = vunpack.c.0.s8 %v665
        %v667 = vlaneseq
        %v668 = vshrl.u32 %v667, 7
        %v669 = vsub.s32 %v666, %v668
        %v670 = vrot.slane %v473, %v669
        %v672 = vunpack.c.l.s4 1983009808
        %v673 = vunpack.c.0.s8 %v672
        %v674 = vlaneseq
        %v675 = vshrl.u32 %v674, 7
        %v676 = vsub.s32 %v673, %v675
        %v677 = vrot.slane %v663, %v676
        %v678 = vcombine.high %v670, %v670
        %v679 = vcombine.high %v677, %v677
        %v680 = vcombine.high %v474, %v474
        %v682 = vunpack.c.l.s4 1983009808
        %v683 = vunpack.c.0.s8 %v682
        %v684 = vlaneseq
        %v685 = vshrl.u32 %v684, 7
        %v686 = vsub.s32 %v683, %v685
        %v687 = vrot.slane %v474, %v686
        %v689 = vunpack.c.l.s4 1983009808
        %v690 = vunpack.c.0.s8 %v689
        %v691 = vlaneseq
        %v692 = vshrl.u32 %v691, 7
        %v693 = vsub.s32 %v690, %v692
        %v694 = vrot.slane %v680, %v693
        %v695 = vcombine.high %v687, %v687
        %v696 = vcombine.high %v694, %v694
        %v697 = vcombine.high %v475, %v475
        %v699 = vunpack.c.l.s4 1983009808
        %v700 = vunpack.c.0.s8 %v699
        %v701 = vlaneseq
        %v702 = vshrl.u32 %v701, 7
        %v703 = vsub.s32 %v700, %v702
        %v704 = vrot.slane %v475, %v703
        %v706 = vunpack.c.l.s4 1983009808
        %v707 = vunpack.c.0.s8 %v706
        %v708 = vlaneseq
        %v709 = vshrl.u32 %v708, 7
        %v710 = vsub.s32 %v707, %v709
        %v711 = vrot.slane %v697, %v710
        %v712 = vcombine.high %v704, %v704
        %v713 = vcombine.high %v711, %v711
        %v714 = vcombine.high %v476, %v476
        %v716 = vunpack.c.l.s4 1983009808
        %v717 = vunpack.c.0.s8 %v716
        %v718 = vlaneseq
        %v719 = vshrl.u32 %v718, 7
        %v720 = vsub.s32 %v717, %v719
        %v721 = vrot.slane %v476, %v720
        %v723 = vunpack.c.l.s4 1983009808
        %v724 = vunpack.c.0.s8 %v723
        %v725 = vlaneseq
        %v726 = vshrl.u32 %v725, 7
        %v727 = vsub.s32 %v724, %v726
        %v728 = vrot.slane %v714, %v727
        %v729 = vcombine.high %v721, %v721
        %v730 = vcombine.high %v728, %v728
        %v731 = vcombine.high %v477, %v477
        %v733 = vunpack.c.l.s4 1983009808
        %v734 = vunpack.c.0.s8 %v733
        %v735 = vlaneseq
        %v736 = vshrl.u32 %v735, 7
        %v737 = vsub.s32 %v734, %v736
        %v738 = vrot.slane %v477, %v737
        %v740 = vunpack.c.l.s4 1983009808
        %v741 = vunpack.c.0.s8 %v740
        %v742 = vlaneseq
        %v743 = vshrl.u32 %v742, 7
        %v744 = vsub.s32 %v741, %v743
        %v745 = vrot.slane %v731, %v744
        %v746 = vcombine.high %v738, %v738
        %v747 = vcombine.high %v745, %v745
        %v808 = vpack.c.bf16 %v500, %v500
        %v809 = vpack.c.bf16 %v508, %v508
        %v810 = vpack.c.bf16 %v507, %v507
        %v811 = vpack.c.bf16 %v509, %v509
        %v812 = vpack.c.bf16 %v517, %v517
        %v813 = vpack.c.bf16 %v525, %v525
        %v814 = vpack.c.bf16 %v524, %v524
        %v815 = vpack.c.bf16 %v526, %v526
        %v816 = vpack.c.bf16 %v534, %v534
        %v817 = vpack.c.bf16 %v542, %v542
        %v818 = vpack.c.bf16 %v541, %v541
        %v819 = vpack.c.bf16 %v543, %v543
        %v820 = vpack.c.bf16 %v551, %v551
        %v821 = vpack.c.bf16 %v559, %v559
        %v822 = vpack.c.bf16 %v558, %v558
        %v823 = vpack.c.bf16 %v560, %v560
        %v824 = vpack.c.bf16 %v568, %v568
        %v825 = vpack.c.bf16 %v576, %v576
        %v826 = vpack.c.bf16 %v575, %v575
        %v827 = vpack.c.bf16 %v577, %v577
        %v828 = vpack.c.bf16 %v585, %v585
        %v829 = vpack.c.bf16 %v593, %v593
        %v830 = vpack.c.bf16 %v592, %v592
        %v831 = vpack.c.bf16 %v594, %v594
        %v832 = vpack.c.bf16 %v602, %v602
        %v833 = vpack.c.bf16 %v610, %v610
        %v834 = vpack.c.bf16 %v609, %v609
        %v835 = vpack.c.bf16 %v611, %v611
        %v836 = vpack.c.bf16 %v619, %v619
        %v837 = vpack.c.bf16 %v627, %v627
        %v838 = vpack.c.bf16 %v626, %v626
        %v839 = vpack.c.bf16 %v628, %v628
        %v840 = vpack.c.bf16 %v636, %v636
        %v841 = vpack.c.bf16 %v644, %v644
        %v842 = vpack.c.bf16 %v643, %v643
        %v843 = vpack.c.bf16 %v645, %v645
        %v844 = vpack.c.bf16 %v653, %v653
        %v845 = vpack.c.bf16 %v661, %v661
        %v846 = vpack.c.bf16 %v660, %v660
        %v847 = vpack.c.bf16 %v662, %v662
        %v848 = vpack.c.bf16 %v670, %v670
        %v849 = vpack.c.bf16 %v678, %v678
        %v850 = vpack.c.bf16 %v677, %v677
        %v851 = vpack.c.bf16 %v679, %v679
        %v852 = vpack.c.bf16 %v687, %v687
        %v853 = vpack.c.bf16 %v695, %v695
        %v854 = vpack.c.bf16 %v694, %v694
        %v855 = vpack.c.bf16 %v696, %v696
        %v856 = vpack.c.bf16 %v704, %v704
        %v857 = vpack.c.bf16 %v712, %v712
        %v858 = vpack.c.bf16 %v711, %v711
        %v859 = vpack.c.bf16 %v713, %v713
        %v860 = vpack.c.bf16 %v721, %v721
        %v861 = vpack.c.bf16 %v729, %v729
        %v862 = vpack.c.bf16 %v728, %v728
        %v863 = vpack.c.bf16 %v730, %v730
        %v864 = vpack.c.bf16 %v738, %v738
        %v865 = vpack.c.bf16 %v746, %v746
        %v866 = vpack.c.bf16 %v745, %v745
        %v867 = vpack.c.bf16 %v747, %v747
        %v868 = vld [vmem:[%s386] sm:$0xf]
        %v869 = vld [vmem:[%s386 + $0x4] sm:$0xf]
        %v870 = vld [vmem:[%s386 + $0x8] sm:$0xf]
        %v871 = vld [vmem:[%s386 + $0xc] sm:$0xf]
        %v872 = vld [vmem:[%s386 + $0x10] sm:$0xf]
        %v873 = vld [vmem:[%s386 + $0x14] sm:$0xf]
        %v874 = vld [vmem:[%s386 + $0x18] sm:$0xf]
        %v875 = vld [vmem:[%s386 + $0x1c] sm:$0xf]
        %v876 = vld [vmem:[%s386 + $0x20] sm:$0xf]
        %v877 = vld [vmem:[%s386 + $0x24] sm:$0xf]
        %v878 = vld [vmem:[%s386 + $0x28] sm:$0xf]
        %v879 = vld [vmem:[%s386 + $0x2c] sm:$0xf]
        %v880 = vld [vmem:[%s386 + $0x30] sm:$0xf]
        %v881 = vld [vmem:[%s386 + $0x34] sm:$0xf]
        %v882 = vld [vmem:[%s386 + $0x38] sm:$0xf]
        %v883 = vld [vmem:[%s386 + $0x3c] sm:$0xf]
        %v884 = vld [vmem:[%s386 + $0x40] sm:$0xf]
        %v885 = vld [vmem:[%s386 + $0x44] sm:$0xf]
        %v886 = vld [vmem:[%s386 + $0x48] sm:$0xf]
        %v887 = vld [vmem:[%s386 + $0x4c] sm:$0xf]
        %v888 = vld [vmem:[%s386 + $0x50] sm:$0xf]
        %v889 = vld [vmem:[%s386 + $0x54] sm:$0xf]
        %v890 = vld [vmem:[%s386 + $0x58] sm:$0xf]
        %v891 = vld [vmem:[%s386 + $0x5c] sm:$0xf]
        %v892 = vld [vmem:[%s386 + $0x60] sm:$0xf]
        %v893 = vld [vmem:[%s386 + $0x64] sm:$0xf]
        %v894 = vld [vmem:[%s386 + $0x68] sm:$0xf]
        %v895 = vld [vmem:[%s386 + $0x6c] sm:$0xf]
        %v896 = vld [vmem:[%s386 + $0x70] sm:$0xf]
        %v897 = vld [vmem:[%s386 + $0x74] sm:$0xf]
        %v898 = vld [vmem:[%s386 + $0x78] sm:$0xf]
        %v899 = vld [vmem:[%s386 + $0x7c] sm:$0xf]
        %v900 = vld [vmem:[%s386 + $0x80] sm:$0xf]
        %v901 = vld [vmem:[%s386 + $0x84] sm:$0xf]
        %v902 = vld [vmem:[%s386 + $0x88] sm:$0xf]
        %v903 = vld [vmem:[%s386 + $0x8c] sm:$0xf]
        %v904 = vld [vmem:[%s386 + $0x90] sm:$0xf]
        %v905 = vld [vmem:[%s386 + $0x94] sm:$0xf]
        %v906 = vld [vmem:[%s386 + $0x98] sm:$0xf]
        %v907 = vld [vmem:[%s386 + $0x9c] sm:$0xf]
        %v908 = vld [vmem:[%s386 + $0xa0] sm:$0xf]
        %v909 = vld [vmem:[%s386 + $0xa4] sm:$0xf]
        %v910 = vld [vmem:[%s386 + $0xa8] sm:$0xf]
        %v911 = vld [vmem:[%s386 + $0xac] sm:$0xf]
        %v912 = vld [vmem:[%s386 + $0xb0] sm:$0xf]
        %v913 = vld [vmem:[%s386 + $0xb4] sm:$0xf]
        %v914 = vld [vmem:[%s386 + $0xb8] sm:$0xf]
        %v915 = vld [vmem:[%s386 + $0xbc] sm:$0xf]
        %v916 = vld [vmem:[%s386 + $0xc0] sm:$0xf]
        %v917 = vld [vmem:[%s386 + $0xc4] sm:$0xf]
        %v918 = vld [vmem:[%s386 + $0xc8] sm:$0xf]
        %v919 = vld [vmem:[%s386 + $0xcc] sm:$0xf]
        %v920 = vld [vmem:[%s386 + $0xd0] sm:$0xf]
        %v921 = vld [vmem:[%s386 + $0xd4] sm:$0xf]
        %v922 = vld [vmem:[%s386 + $0xd8] sm:$0xf]
        %v923 = vld [vmem:[%s386 + $0xdc] sm:$0xf]
        %v924 = vld [vmem:[%s386 + $0xe0] sm:$0xf]
        %v925 = vld [vmem:[%s386 + $0xe4] sm:$0xf]
        %v926 = vld [vmem:[%s386 + $0xe8] sm:$0xf]
        %v927 = vld [vmem:[%s386 + $0xec] sm:$0xf]
        %v928 = vld [vmem:[%s386 + $0xf0] sm:$0xf]
        %v929 = vld [vmem:[%s386 + $0xf4] sm:$0xf]
        %v930 = vld [vmem:[%s386 + $0xf8] sm:$0xf]
        %v931 = vld [vmem:[%s386 + $0xfc] sm:$0xf]
        %v932 = vld [vmem:[%s386 + $0x100] sm:$0xf]
        %v933 = vld [vmem:[%s386 + $0x104] sm:$0xf]
        %v934 = vld [vmem:[%s386 + $0x108] sm:$0xf]
        %v935 = vld [vmem:[%s386 + $0x10c] sm:$0xf]
        %v936 = vld [vmem:[%s386 + $0x110] sm:$0xf]
        %v937 = vld [vmem:[%s386 + $0x114] sm:$0xf]
        %v938 = vld [vmem:[%s386 + $0x118] sm:$0xf]
        %v939 = vld [vmem:[%s386 + $0x11c] sm:$0xf]
        %v940 = vld [vmem:[%s386 + $0x120] sm:$0xf]
        %v941 = vld [vmem:[%s386 + $0x124] sm:$0xf]
        %v942 = vld [vmem:[%s386 + $0x128] sm:$0xf]
        %v943 = vld [vmem:[%s386 + $0x12c] sm:$0xf]
        %v944 = vld [vmem:[%s386 + $0x130] sm:$0xf]
        %v945 = vld [vmem:[%s386 + $0x134] sm:$0xf]
        %v946 = vld [vmem:[%s386 + $0x138] sm:$0xf]
        %v947 = vld [vmem:[%s386 + $0x13c] sm:$0xf]
        %v948 = vld [vmem:[%s386 + $0x140] sm:$0xf]
        %v949 = vld [vmem:[%s386 + $0x144] sm:$0xf]
        %v950 = vld [vmem:[%s386 + $0x148] sm:$0xf]
        %v951 = vld [vmem:[%s386 + $0x14c] sm:$0xf]
        %v952 = vld [vmem:[%s386 + $0x150] sm:$0xf]
        %v953 = vld [vmem:[%s386 + $0x154] sm:$0xf]
        %v954 = vld [vmem:[%s386 + $0x158] sm:$0xf]
        %v955 = vld [vmem:[%s386 + $0x15c] sm:$0xf]
        %v956 = vld [vmem:[%s386 + $0x160] sm:$0xf]
        %v957 = vld [vmem:[%s386 + $0x164] sm:$0xf]
        %v958 = vld [vmem:[%s386 + $0x168] sm:$0xf]
        %v959 = vld [vmem:[%s386 + $0x16c] sm:$0xf]
        %v960 = vld [vmem:[%s386 + $0x170] sm:$0xf]
        %v961 = vld [vmem:[%s386 + $0x174] sm:$0xf]
        %v962 = vld [vmem:[%s386 + $0x178] sm:$0xf]
        %v963 = vld [vmem:[%s386 + $0x17c] sm:$0xf]
        %v964 = vld [vmem:[%s386 + $0x180] sm:$0xf]
        %v965 = vld [vmem:[%s386 + $0x184] sm:$0xf]
        %v966 = vld [vmem:[%s386 + $0x188] sm:$0xf]
        %v967 = vld [vmem:[%s386 + $0x18c] sm:$0xf]
        %v968 = vld [vmem:[%s386 + $0x190] sm:$0xf]
        %v969 = vld [vmem:[%s386 + $0x194] sm:$0xf]
        %v970 = vld [vmem:[%s386 + $0x198] sm:$0xf]
        %v971 = vld [vmem:[%s386 + $0x19c] sm:$0xf]
        %v972 = vld [vmem:[%s386 + $0x1a0] sm:$0xf]
        %v973 = vld [vmem:[%s386 + $0x1a4] sm:$0xf]
        %v974 = vld [vmem:[%s386 + $0x1a8] sm:$0xf]
        %v975 = vld [vmem:[%s386 + $0x1ac] sm:$0xf]
        %v976 = vld [vmem:[%s386 + $0x1b0] sm:$0xf]
        %v977 = vld [vmem:[%s386 + $0x1b4] sm:$0xf]
        %v978 = vld [vmem:[%s386 + $0x1b8] sm:$0xf]
        %v979 = vld [vmem:[%s386 + $0x1bc] sm:$0xf]
        %v980 = vld [vmem:[%s386 + $0x1c0] sm:$0xf]
        %v981 = vld [vmem:[%s386 + $0x1c4] sm:$0xf]
        %v982 = vld [vmem:[%s386 + $0x1c8] sm:$0xf]
        %v983 = vld [vmem:[%s386 + $0x1cc] sm:$0xf]
        %v984 = vld [vmem:[%s386 + $0x1d0] sm:$0xf]
        %v985 = vld [vmem:[%s386 + $0x1d4] sm:$0xf]
        %v986 = vld [vmem:[%s386 + $0x1d8] sm:$0xf]
        %v987 = vld [vmem:[%s386 + $0x1dc] sm:$0xf]
        %v988 = vld [vmem:[%s386 + $0x1e0] sm:$0xf]
        %v989 = vld [vmem:[%s386 + $0x1e4] sm:$0xf]
        %v990 = vld [vmem:[%s386 + $0x1e8] sm:$0xf]
        %v991 = vld [vmem:[%s386 + $0x1ec] sm:$0xf]
        %v992 = vld [vmem:[%s386 + $0x1f0] sm:$0xf]
        %v993 = vld [vmem:[%s386 + $0x1f4] sm:$0xf]
        %v994 = vld [vmem:[%s386 + $0x1f8] sm:$0xf]
        %v995 = vld [vmem:[%s386 + $0x1fc] sm:$0xf]
        %v996 = vld [vmem:[%s386 + $0x200] sm:$0xf]
        %v997 = vld [vmem:[%s386 + $0x204] sm:$0xf]
        %v998 = vld [vmem:[%s386 + $0x208] sm:$0xf]
        %v999 = vld [vmem:[%s386 + $0x20c] sm:$0xf]
        %v1000 = vld [vmem:[%s386 + $0x210] sm:$0xf]
        %v1001 = vld [vmem:[%s386 + $0x214] sm:$0xf]
        %v1002 = vld [vmem:[%s386 + $0x218] sm:$0xf]
        %v1003 = vld [vmem:[%s386 + $0x21c] sm:$0xf]
        %v1004 = vld [vmem:[%s386 + $0x220] sm:$0xf]
        %v1005 = vld [vmem:[%s386 + $0x224] sm:$0xf]
        %v1006 = vld [vmem:[%s386 + $0x228] sm:$0xf]
        %v1007 = vld [vmem:[%s386 + $0x22c] sm:$0xf]
        %v1008 = vld [vmem:[%s386 + $0x230] sm:$0xf]
        %v1009 = vld [vmem:[%s386 + $0x234] sm:$0xf]
        %v1010 = vld [vmem:[%s386 + $0x238] sm:$0xf]
        %v1011 = vld [vmem:[%s386 + $0x23c] sm:$0xf]
        %v1012 = vld [vmem:[%s386 + $0x240] sm:$0xf]
        %v1013 = vld [vmem:[%s386 + $0x244] sm:$0xf]
        %v1014 = vld [vmem:[%s386 + $0x248] sm:$0xf]
        %v1015 = vld [vmem:[%s386 + $0x24c] sm:$0xf]
        %v1016 = vld [vmem:[%s386 + $0x250] sm:$0xf]
        %v1017 = vld [vmem:[%s386 + $0x254] sm:$0xf]
        %v1018 = vld [vmem:[%s386 + $0x258] sm:$0xf]
        %v1019 = vld [vmem:[%s386 + $0x25c] sm:$0xf]
        %v1020 = vld [vmem:[%s386 + $0x260] sm:$0xf]
        %v1021 = vld [vmem:[%s386 + $0x264] sm:$0xf]
        %v1022 = vld [vmem:[%s386 + $0x268] sm:$0xf]
        %v1023 = vld [vmem:[%s386 + $0x26c] sm:$0xf]
        %v1024 = vld [vmem:[%s386 + $0x270] sm:$0xf]
        %v1025 = vld [vmem:[%s386 + $0x274] sm:$0xf]
        %v1026 = vld [vmem:[%s386 + $0x278] sm:$0xf]
        %v1027 = vld [vmem:[%s386 + $0x27c] sm:$0xf]
        %v1028 = vld [vmem:[%s386 + $0x280] sm:$0xf]
        %v1029 = vld [vmem:[%s386 + $0x284] sm:$0xf]
        %v1030 = vld [vmem:[%s386 + $0x288] sm:$0xf]
        %v1031 = vld [vmem:[%s386 + $0x28c] sm:$0xf]
        %v1032 = vld [vmem:[%s386 + $0x290] sm:$0xf]
        %v1033 = vld [vmem:[%s386 + $0x294] sm:$0xf]
        %v1034 = vld [vmem:[%s386 + $0x298] sm:$0xf]
        %v1035 = vld [vmem:[%s386 + $0x29c] sm:$0xf]
        %v1036 = vld [vmem:[%s386 + $0x2a0] sm:$0xf]
        %v1037 = vld [vmem:[%s386 + $0x2a4] sm:$0xf]
        %v1038 = vld [vmem:[%s386 + $0x2a8] sm:$0xf]
        %v1039 = vld [vmem:[%s386 + $0x2ac] sm:$0xf]
        %v1040 = vld [vmem:[%s386 + $0x2b0] sm:$0xf]
        %v1041 = vld [vmem:[%s386 + $0x2b4] sm:$0xf]
        %v1042 = vld [vmem:[%s386 + $0x2b8] sm:$0xf]
        %v1043 = vld [vmem:[%s386 + $0x2bc] sm:$0xf]
        %v1044 = vld [vmem:[%s386 + $0x2c0] sm:$0xf]
        %v1045 = vld [vmem:[%s386 + $0x2c4] sm:$0xf]
        %v1046 = vld [vmem:[%s386 + $0x2c8] sm:$0xf]
        %v1047 = vld [vmem:[%s386 + $0x2cc] sm:$0xf]
        %v1048 = vld [vmem:[%s386 + $0x2d0] sm:$0xf]
        %v1049 = vld [vmem:[%s386 + $0x2d4] sm:$0xf]
        %v1050 = vld [vmem:[%s386 + $0x2d8] sm:$0xf]
        %v1051 = vld [vmem:[%s386 + $0x2dc] sm:$0xf]
        %v1052 = vld [vmem:[%s386 + $0x2e0] sm:$0xf]
        %v1053 = vld [vmem:[%s386 + $0x2e4] sm:$0xf]
        %v1054 = vld [vmem:[%s386 + $0x2e8] sm:$0xf]
        %v1055 = vld [vmem:[%s386 + $0x2ec] sm:$0xf]
        %v1056 = vld [vmem:[%s386 + $0x2f0] sm:$0xf]
        %v1057 = vld [vmem:[%s386 + $0x2f4] sm:$0xf]
        %v1058 = vld [vmem:[%s386 + $0x2f8] sm:$0xf]
        %v1059 = vld [vmem:[%s386 + $0x2fc] sm:$0xf]
        %v1060 = vld [vmem:[%s386 + $0x300] sm:$0xf]
        %v1061 = vld [vmem:[%s386 + $0x304] sm:$0xf]
        %v1062 = vld [vmem:[%s386 + $0x308] sm:$0xf]
        %v1063 = vld [vmem:[%s386 + $0x30c] sm:$0xf]
        %v1064 = vld [vmem:[%s386 + $0x310] sm:$0xf]
        %v1065 = vld [vmem:[%s386 + $0x314] sm:$0xf]
        %v1066 = vld [vmem:[%s386 + $0x318] sm:$0xf]
        %v1067 = vld [vmem:[%s386 + $0x31c] sm:$0xf]
        %v1068 = vld [vmem:[%s386 + $0x320] sm:$0xf]
        %v1069 = vld [vmem:[%s386 + $0x324] sm:$0xf]
        %v1070 = vld [vmem:[%s386 + $0x328] sm:$0xf]
        %v1071 = vld [vmem:[%s386 + $0x32c] sm:$0xf]
        %v1072 = vld [vmem:[%s386 + $0x330] sm:$0xf]
        %v1073 = vld [vmem:[%s386 + $0x334] sm:$0xf]
        %v1074 = vld [vmem:[%s386 + $0x338] sm:$0xf]
        %v1075 = vld [vmem:[%s386 + $0x33c] sm:$0xf]
        %v1076 = vld [vmem:[%s386 + $0x340] sm:$0xf]
        %v1077 = vld [vmem:[%s386 + $0x344] sm:$0xf]
        %v1078 = vld [vmem:[%s386 + $0x348] sm:$0xf]
        %v1079 = vld [vmem:[%s386 + $0x34c] sm:$0xf]
        %v1080 = vld [vmem:[%s386 + $0x350] sm:$0xf]
        %v1081 = vld [vmem:[%s386 + $0x354] sm:$0xf]
        %v1082 = vld [vmem:[%s386 + $0x358] sm:$0xf]
        %v1083 = vld [vmem:[%s386 + $0x35c] sm:$0xf]
        %v1084 = vld [vmem:[%s386 + $0x360] sm:$0xf]
        %v1085 = vld [vmem:[%s386 + $0x364] sm:$0xf]
        %v1086 = vld [vmem:[%s386 + $0x368] sm:$0xf]
        %v1087 = vld [vmem:[%s386 + $0x36c] sm:$0xf]
        %v1088 = vld [vmem:[%s386 + $0x370] sm:$0xf]
        %v1089 = vld [vmem:[%s386 + $0x374] sm:$0xf]
        %v1090 = vld [vmem:[%s386 + $0x378] sm:$0xf]
        %v1091 = vld [vmem:[%s386 + $0x37c] sm:$0xf]
        %v1092 = vld [vmem:[%s386 + $0x380] sm:$0xf]
        %v1093 = vld [vmem:[%s386 + $0x384] sm:$0xf]
        %v1094 = vld [vmem:[%s386 + $0x388] sm:$0xf]
        %v1095 = vld [vmem:[%s386 + $0x38c] sm:$0xf]
        %v1096 = vld [vmem:[%s386 + $0x390] sm:$0xf]
        %v1097 = vld [vmem:[%s386 + $0x394] sm:$0xf]
        %v1098 = vld [vmem:[%s386 + $0x398] sm:$0xf]
        %v1099 = vld [vmem:[%s386 + $0x39c] sm:$0xf]
        %v1100 = vld [vmem:[%s386 + $0x3a0] sm:$0xf]
        %v1101 = vld [vmem:[%s386 + $0x3a4] sm:$0xf]
        %v1102 = vld [vmem:[%s386 + $0x3a8] sm:$0xf]
        %v1103 = vld [vmem:[%s386 + $0x3ac] sm:$0xf]
        %v1104 = vld [vmem:[%s386 + $0x3b0] sm:$0xf]
        %v1105 = vld [vmem:[%s386 + $0x3b4] sm:$0xf]
        %v1106 = vld [vmem:[%s386 + $0x3b8] sm:$0xf]
        %v1107 = vld [vmem:[%s386 + $0x3bc] sm:$0xf]
        %v1108 = vld [vmem:[%s386 + $0x3c0] sm:$0xf]
        %v1109 = vld [vmem:[%s386 + $0x3c4] sm:$0xf]
        %v1110 = vld [vmem:[%s386 + $0x3c8] sm:$0xf]
        %v1111 = vld [vmem:[%s386 + $0x3cc] sm:$0xf]
        %v1112 = vld [vmem:[%s386 + $0x3d0] sm:$0xf]
        %v1113 = vld [vmem:[%s386 + $0x3d4] sm:$0xf]
        %v1114 = vld [vmem:[%s386 + $0x3d8] sm:$0xf]
        %v1115 = vld [vmem:[%s386 + $0x3dc] sm:$0xf]
        %v1116 = vld [vmem:[%s386 + $0x3e0] sm:$0xf]
        %v1117 = vld [vmem:[%s386 + $0x3e4] sm:$0xf]
        %v1118 = vld [vmem:[%s386 + $0x3e8] sm:$0xf]
        %v1119 = vld [vmem:[%s386 + $0x3ec] sm:$0xf]
        %v1120 = vld [vmem:[%s386 + $0x3f0] sm:$0xf]
        %v1121 = vld [vmem:[%s386 + $0x3f4] sm:$0xf]
        %v1122 = vld [vmem:[%s386 + $0x3f8] sm:$0xf]
        %v1123 = vld [vmem:[%s386 + $0x3fc] sm:$0xf]
        %v1124 = vld [vmem:[%s386 + $0x400] sm:$0xf]
        %v1125 = vld [vmem:[%s386 + $0x404] sm:$0xf]
        %v1126 = vld [vmem:[%s386 + $0x408] sm:$0xf]
        %v1127 = vld [vmem:[%s386 + $0x40c] sm:$0xf]
        %v1128 = vld [vmem:[%s386 + $0x410] sm:$0xf]
        %v1129 = vld [vmem:[%s386 + $0x414] sm:$0xf]
        %v1130 = vld [vmem:[%s386 + $0x418] sm:$0xf]
        %v1131 = vld [vmem:[%s386 + $0x41c] sm:$0xf]
        %v1132 = vld [vmem:[%s386 + $0x420] sm:$0xf]
        %v1133 = vld [vmem:[%s386 + $0x424] sm:$0xf]
        %v1134 = vld [vmem:[%s386 + $0x428] sm:$0xf]
        %v1135 = vld [vmem:[%s386 + $0x42c] sm:$0xf]
        %v1136 = vld [vmem:[%s386 + $0x430] sm:$0xf]
        %v1137 = vld [vmem:[%s386 + $0x434] sm:$0xf]
        %v1138 = vld [vmem:[%s386 + $0x438] sm:$0xf]
        %v1139 = vld [vmem:[%s386 + $0x43c] sm:$0xf]
        %v1140 = vld [vmem:[%s386 + $0x440] sm:$0xf]
        %v1141 = vld [vmem:[%s386 + $0x444] sm:$0xf]
        %v1142 = vld [vmem:[%s386 + $0x448] sm:$0xf]
        %v1143 = vld [vmem:[%s386 + $0x44c] sm:$0xf]
        %v1144 = vld [vmem:[%s386 + $0x450] sm:$0xf]
        %v1145 = vld [vmem:[%s386 + $0x454] sm:$0xf]
        %v1146 = vld [vmem:[%s386 + $0x458] sm:$0xf]
        %v1147 = vld [vmem:[%s386 + $0x45c] sm:$0xf]
        %v1148 = vld [vmem:[%s386 + $0x460] sm:$0xf]
        %v1149 = vld [vmem:[%s386 + $0x464] sm:$0xf]
        %v1150 = vld [vmem:[%s386 + $0x468] sm:$0xf]
        %v1151 = vld [vmem:[%s386 + $0x46c] sm:$0xf]
        %v1152 = vld [vmem:[%s386 + $0x470] sm:$0xf]
        %v1153 = vld [vmem:[%s386 + $0x474] sm:$0xf]
        %v1154 = vld [vmem:[%s386 + $0x478] sm:$0xf]
        %v1155 = vld [vmem:[%s386 + $0x47c] sm:$0xf]
        %v1156 = vld [vmem:[%s386 + $0x480] sm:$0xf]
        %v1157 = vld [vmem:[%s386 + $0x484] sm:$0xf]
        %v1158 = vld [vmem:[%s386 + $0x488] sm:$0xf]
        %v1159 = vld [vmem:[%s386 + $0x48c] sm:$0xf]
        %v1160 = vld [vmem:[%s386 + $0x490] sm:$0xf]
        %v1161 = vld [vmem:[%s386 + $0x494] sm:$0xf]
        %v1162 = vld [vmem:[%s386 + $0x498] sm:$0xf]
        %v1163 = vld [vmem:[%s386 + $0x49c] sm:$0xf]
        %v1164 = vld [vmem:[%s386 + $0x4a0] sm:$0xf]
        %v1165 = vld [vmem:[%s386 + $0x4a4] sm:$0xf]
        %v1166 = vld [vmem:[%s386 + $0x4a8] sm:$0xf]
        %v1167 = vld [vmem:[%s386 + $0x4ac] sm:$0xf]
        %v1168 = vld [vmem:[%s386 + $0x4b0] sm:$0xf]
        %v1169 = vld [vmem:[%s386 + $0x4b4] sm:$0xf]
        %v1170 = vld [vmem:[%s386 + $0x4b8] sm:$0xf]
        %v1171 = vld [vmem:[%s386 + $0x4bc] sm:$0xf]
        %v1172 = vld [vmem:[%s386 + $0x4c0] sm:$0xf]
        %v1173 = vld [vmem:[%s386 + $0x4c4] sm:$0xf]
        %v1174 = vld [vmem:[%s386 + $0x4c8] sm:$0xf]
        %v1175 = vld [vmem:[%s386 + $0x4cc] sm:$0xf]
        %v1176 = vld [vmem:[%s386 + $0x4d0] sm:$0xf]
        %v1177 = vld [vmem:[%s386 + $0x4d4] sm:$0xf]
        %v1178 = vld [vmem:[%s386 + $0x4d8] sm:$0xf]
        %v1179 = vld [vmem:[%s386 + $0x4dc] sm:$0xf]
        %v1180 = vld [vmem:[%s386 + $0x4e0] sm:$0xf]
        %v1181 = vld [vmem:[%s386 + $0x4e4] sm:$0xf]
        %v1182 = vld [vmem:[%s386 + $0x4e8] sm:$0xf]
        %v1183 = vld [vmem:[%s386 + $0x4ec] sm:$0xf]
        %v1184 = vld [vmem:[%s386 + $0x4f0] sm:$0xf]
        %v1185 = vld [vmem:[%s386 + $0x4f4] sm:$0xf]
        %v1186 = vld [vmem:[%s386 + $0x4f8] sm:$0xf]
        %v1187 = vld [vmem:[%s386 + $0x4fc] sm:$0xf]
        %v1188 = vld [vmem:[%s386 + $0x500] sm:$0xf]
        %v1189 = vld [vmem:[%s386 + $0x504] sm:$0xf]
        %v1190 = vld [vmem:[%s386 + $0x508] sm:$0xf]
        %v1191 = vld [vmem:[%s386 + $0x50c] sm:$0xf]
        %v1192 = vld [vmem:[%s386 + $0x510] sm:$0xf]
        %v1193 = vld [vmem:[%s386 + $0x514] sm:$0xf]
        %v1194 = vld [vmem:[%s386 + $0x518] sm:$0xf]
        %v1195 = vld [vmem:[%s386 + $0x51c] sm:$0xf]
        %v1196 = vld [vmem:[%s386 + $0x520] sm:$0xf]
        %v1197 = vld [vmem:[%s386 + $0x524] sm:$0xf]
        %v1198 = vld [vmem:[%s386 + $0x528] sm:$0xf]
        %v1199 = vld [vmem:[%s386 + $0x52c] sm:$0xf]
        %v1200 = vld [vmem:[%s386 + $0x530] sm:$0xf]
        %v1201 = vld [vmem:[%s386 + $0x534] sm:$0xf]
        %v1202 = vld [vmem:[%s386 + $0x538] sm:$0xf]
        %v1203 = vld [vmem:[%s386 + $0x53c] sm:$0xf]
        %v1204 = vld [vmem:[%s386 + $0x540] sm:$0xf]
        %v1205 = vld [vmem:[%s386 + $0x544] sm:$0xf]
        %v1206 = vld [vmem:[%s386 + $0x548] sm:$0xf]
        %v1207 = vld [vmem:[%s386 + $0x54c] sm:$0xf]
        %v1208 = vld [vmem:[%s386 + $0x550] sm:$0xf]
        %v1209 = vld [vmem:[%s386 + $0x554] sm:$0xf]
        %v1210 = vld [vmem:[%s386 + $0x558] sm:$0xf]
        %v1211 = vld [vmem:[%s386 + $0x55c] sm:$0xf]
        %v1212 = vld [vmem:[%s386 + $0x560] sm:$0xf]
        %v1213 = vld [vmem:[%s386 + $0x564] sm:$0xf]
        %v1214 = vld [vmem:[%s386 + $0x568] sm:$0xf]
        %v1215 = vld [vmem:[%s386 + $0x56c] sm:$0xf]
        %v1216 = vld [vmem:[%s386 + $0x570] sm:$0xf]
        %v1217 = vld [vmem:[%s386 + $0x574] sm:$0xf]
        %v1218 = vld [vmem:[%s386 + $0x578] sm:$0xf]
        %v1219 = vld [vmem:[%s386 + $0x57c] sm:$0xf]
        %v1220 = vld [vmem:[%s386 + $0x580] sm:$0xf]
        %v1221 = vld [vmem:[%s386 + $0x584] sm:$0xf]
        %v1222 = vld [vmem:[%s386 + $0x588] sm:$0xf]
        %v1223 = vld [vmem:[%s386 + $0x58c] sm:$0xf]
        %v1224 = vld [vmem:[%s386 + $0x590] sm:$0xf]
        %v1225 = vld [vmem:[%s386 + $0x594] sm:$0xf]
        %v1226 = vld [vmem:[%s386 + $0x598] sm:$0xf]
        %v1227 = vld [vmem:[%s386 + $0x59c] sm:$0xf]
        %v1228 = vld [vmem:[%s386 + $0x5a0] sm:$0xf]
        %v1229 = vld [vmem:[%s386 + $0x5a4] sm:$0xf]
        %v1230 = vld [vmem:[%s386 + $0x5a8] sm:$0xf]
        %v1231 = vld [vmem:[%s386 + $0x5ac] sm:$0xf]
        %v1232 = vld [vmem:[%s386 + $0x5b0] sm:$0xf]
        %v1233 = vld [vmem:[%s386 + $0x5b4] sm:$0xf]
        %v1234 = vld [vmem:[%s386 + $0x5b8] sm:$0xf]
        %v1235 = vld [vmem:[%s386 + $0x5bc] sm:$0xf]
        %v1236 = vld [vmem:[%s386 + $0x5c0] sm:$0xf]
        %v1237 = vld [vmem:[%s386 + $0x5c4] sm:$0xf]
        %v1238 = vld [vmem:[%s386 + $0x5c8] sm:$0xf]
        %v1239 = vld [vmem:[%s386 + $0x5cc] sm:$0xf]
        %v1240 = vld [vmem:[%s386 + $0x5d0] sm:$0xf]
        %v1241 = vld [vmem:[%s386 + $0x5d4] sm:$0xf]
        %v1242 = vld [vmem:[%s386 + $0x5d8] sm:$0xf]
        %v1243 = vld [vmem:[%s386 + $0x5dc] sm:$0xf]
        %v1244 = vld [vmem:[%s386 + $0x5e0] sm:$0xf]
        %v1245 = vld [vmem:[%s386 + $0x5e4] sm:$0xf]
        %v1246 = vld [vmem:[%s386 + $0x5e8] sm:$0xf]
        %v1247 = vld [vmem:[%s386 + $0x5ec] sm:$0xf]
        %v1248 = vld [vmem:[%s386 + $0x5f0] sm:$0xf]
        %v1249 = vld [vmem:[%s386 + $0x5f4] sm:$0xf]
        %v1250 = vld [vmem:[%s386 + $0x5f8] sm:$0xf]
        %v1251 = vld [vmem:[%s386 + $0x5fc] sm:$0xf]
        %v1252 = vld [vmem:[%s386 + $0x600] sm:$0xf]
        %v1253 = vld [vmem:[%s386 + $0x604] sm:$0xf]
        %v1254 = vld [vmem:[%s386 + $0x608] sm:$0xf]
        %v1255 = vld [vmem:[%s386 + $0x60c] sm:$0xf]
        %v1256 = vld [vmem:[%s386 + $0x610] sm:$0xf]
        %v1257 = vld [vmem:[%s386 + $0x614] sm:$0xf]
        %v1258 = vld [vmem:[%s386 + $0x618] sm:$0xf]
        %v1259 = vld [vmem:[%s386 + $0x61c] sm:$0xf]
        %v1260 = vld [vmem:[%s386 + $0x620] sm:$0xf]
        %v1261 = vld [vmem:[%s386 + $0x624] sm:$0xf]
        %v1262 = vld [vmem:[%s386 + $0x628] sm:$0xf]
        %v1263 = vld [vmem:[%s386 + $0x62c] sm:$0xf]
        %v1264 = vld [vmem:[%s386 + $0x630] sm:$0xf]
        %v1265 = vld [vmem:[%s386 + $0x634] sm:$0xf]
        %v1266 = vld [vmem:[%s386 + $0x638] sm:$0xf]
        %v1267 = vld [vmem:[%s386 + $0x63c] sm:$0xf]
        %v1268 = vld [vmem:[%s386 + $0x640] sm:$0xf]
        %v1269 = vld [vmem:[%s386 + $0x644] sm:$0xf]
        %v1270 = vld [vmem:[%s386 + $0x648] sm:$0xf]
        %v1271 = vld [vmem:[%s386 + $0x64c] sm:$0xf]
        %v1272 = vld [vmem:[%s386 + $0x650] sm:$0xf]
        %v1273 = vld [vmem:[%s386 + $0x654] sm:$0xf]
        %v1274 = vld [vmem:[%s386 + $0x658] sm:$0xf]
        %v1275 = vld [vmem:[%s386 + $0x65c] sm:$0xf]
        %v1276 = vld [vmem:[%s386 + $0x660] sm:$0xf]
        %v1277 = vld [vmem:[%s386 + $0x664] sm:$0xf]
        %v1278 = vld [vmem:[%s386 + $0x668] sm:$0xf]
        %v1279 = vld [vmem:[%s386 + $0x66c] sm:$0xf]
        %v1280 = vld [vmem:[%s386 + $0x670] sm:$0xf]
        %v1281 = vld [vmem:[%s386 + $0x674] sm:$0xf]
        %v1282 = vld [vmem:[%s386 + $0x678] sm:$0xf]
        %v1283 = vld [vmem:[%s386 + $0x67c] sm:$0xf]
        %v1284 = vld [vmem:[%s386 + $0x680] sm:$0xf]
        %v1285 = vld [vmem:[%s386 + $0x684] sm:$0xf]
        %v1286 = vld [vmem:[%s386 + $0x688] sm:$0xf]
        %v1287 = vld [vmem:[%s386 + $0x68c] sm:$0xf]
        %v1288 = vld [vmem:[%s386 + $0x690] sm:$0xf]
        %v1289 = vld [vmem:[%s386 + $0x694] sm:$0xf]
        %v1290 = vld [vmem:[%s386 + $0x698] sm:$0xf]
        %v1291 = vld [vmem:[%s386 + $0x69c] sm:$0xf]
        %v1292 = vld [vmem:[%s386 + $0x6a0] sm:$0xf]
        %v1293 = vld [vmem:[%s386 + $0x6a4] sm:$0xf]
        %v1294 = vld [vmem:[%s386 + $0x6a8] sm:$0xf]
        %v1295 = vld [vmem:[%s386 + $0x6ac] sm:$0xf]
        %v1296 = vld [vmem:[%s386 + $0x6b0] sm:$0xf]
        %v1297 = vld [vmem:[%s386 + $0x6b4] sm:$0xf]
        %v1298 = vld [vmem:[%s386 + $0x6b8] sm:$0xf]
        %v1299 = vld [vmem:[%s386 + $0x6bc] sm:$0xf]
        %v1300 = vld [vmem:[%s386 + $0x6c0] sm:$0xf]
        %v1301 = vld [vmem:[%s386 + $0x6c4] sm:$0xf]
        %v1302 = vld [vmem:[%s386 + $0x6c8] sm:$0xf]
        %v1303 = vld [vmem:[%s386 + $0x6cc] sm:$0xf]
        %v1304 = vld [vmem:[%s386 + $0x6d0] sm:$0xf]
        %v1305 = vld [vmem:[%s386 + $0x6d4] sm:$0xf]
        %v1306 = vld [vmem:[%s386 + $0x6d8] sm:$0xf]
        %v1307 = vld [vmem:[%s386 + $0x6dc] sm:$0xf]
        %v1308 = vld [vmem:[%s386 + $0x6e0] sm:$0xf]
        %v1309 = vld [vmem:[%s386 + $0x6e4] sm:$0xf]
        %v1310 = vld [vmem:[%s386 + $0x6e8] sm:$0xf]
        %v1311 = vld [vmem:[%s386 + $0x6ec] sm:$0xf]
        %v1312 = vld [vmem:[%s386 + $0x6f0] sm:$0xf]
        %v1313 = vld [vmem:[%s386 + $0x6f4] sm:$0xf]
        %v1314 = vld [vmem:[%s386 + $0x6f8] sm:$0xf]
        %v1315 = vld [vmem:[%s386 + $0x6fc] sm:$0xf]
        %v1316 = vld [vmem:[%s386 + $0x700] sm:$0xf]
        %v1317 = vld [vmem:[%s386 + $0x704] sm:$0xf]
        %v1318 = vld [vmem:[%s386 + $0x708] sm:$0xf]
        %v1319 = vld [vmem:[%s386 + $0x70c] sm:$0xf]
        %v1320 = vld [vmem:[%s386 + $0x710] sm:$0xf]
        %v1321 = vld [vmem:[%s386 + $0x714] sm:$0xf]
        %v1322 = vld [vmem:[%s386 + $0x718] sm:$0xf]
        %v1323 = vld [vmem:[%s386 + $0x71c] sm:$0xf]
        %v1324 = vld [vmem:[%s386 + $0x720] sm:$0xf]
        %v1325 = vld [vmem:[%s386 + $0x724] sm:$0xf]
        %v1326 = vld [vmem:[%s386 + $0x728] sm:$0xf]
        %v1327 = vld [vmem:[%s386 + $0x72c] sm:$0xf]
        %v1328 = vld [vmem:[%s386 + $0x730] sm:$0xf]
        %v1329 = vld [vmem:[%s386 + $0x734] sm:$0xf]
        %v1330 = vld [vmem:[%s386 + $0x738] sm:$0xf]
        %v1331 = vld [vmem:[%s386 + $0x73c] sm:$0xf]
        %v1332 = vld [vmem:[%s386 + $0x740] sm:$0xf]
        %v1333 = vld [vmem:[%s386 + $0x744] sm:$0xf]
        %v1334 = vld [vmem:[%s386 + $0x748] sm:$0xf]
        %v1335 = vld [vmem:[%s386 + $0x74c] sm:$0xf]
        %v1336 = vld [vmem:[%s386 + $0x750] sm:$0xf]
        %v1337 = vld [vmem:[%s386 + $0x754] sm:$0xf]
        %v1338 = vld [vmem:[%s386 + $0x758] sm:$0xf]
        %v1339 = vld [vmem:[%s386 + $0x75c] sm:$0xf]
        %v1340 = vld [vmem:[%s386 + $0x760] sm:$0xf]
        %v1341 = vld [vmem:[%s386 + $0x764] sm:$0xf]
        %v1342 = vld [vmem:[%s386 + $0x768] sm:$0xf]
        %v1343 = vld [vmem:[%s386 + $0x76c] sm:$0xf]
        %v1344 = vld [vmem:[%s386 + $0x770] sm:$0xf]
        %v1345 = vld [vmem:[%s386 + $0x774] sm:$0xf]
        %v1346 = vld [vmem:[%s386 + $0x778] sm:$0xf]
        %v1347 = vld [vmem:[%s386 + $0x77c] sm:$0xf]
        %v1348 = vld [vmem:[%s386 + $0x780] sm:$0xf]
        %v1349 = vld [vmem:[%s386 + $0x784] sm:$0xf]
        %v1350 = vld [vmem:[%s386 + $0x788] sm:$0xf]
        %v1351 = vld [vmem:[%s386 + $0x78c] sm:$0xf]
        %v1352 = vld [vmem:[%s386 + $0x790] sm:$0xf]
        %v1353 = vld [vmem:[%s386 + $0x794] sm:$0xf]
        %v1354 = vld [vmem:[%s386 + $0x798] sm:$0xf]
        %v1355 = vld [vmem:[%s386 + $0x79c] sm:$0xf]
        %v1356 = vld [vmem:[%s386 + $0x7a0] sm:$0xf]
        %v1357 = vld [vmem:[%s386 + $0x7a4] sm:$0xf]
        %v1358 = vld [vmem:[%s386 + $0x7a8] sm:$0xf]
        %v1359 = vld [vmem:[%s386 + $0x7ac] sm:$0xf]
        %v1360 = vld [vmem:[%s386 + $0x7b0] sm:$0xf]
        %v1361 = vld [vmem:[%s386 + $0x7b4] sm:$0xf]
        %v1362 = vld [vmem:[%s386 + $0x7b8] sm:$0xf]
        %v1363 = vld [vmem:[%s386 + $0x7bc] sm:$0xf]
        %v1364 = vld [vmem:[%s386 + $0x7c0] sm:$0xf]
        %v1365 = vld [vmem:[%s386 + $0x7c4] sm:$0xf]
        %v1366 = vld [vmem:[%s386 + $0x7c8] sm:$0xf]
        %v1367 = vld [vmem:[%s386 + $0x7cc] sm:$0xf]
        %v1368 = vld [vmem:[%s386 + $0x7d0] sm:$0xf]
        %v1369 = vld [vmem:[%s386 + $0x7d4] sm:$0xf]
        %v1370 = vld [vmem:[%s386 + $0x7d8] sm:$0xf]
        %v1371 = vld [vmem:[%s386 + $0x7dc] sm:$0xf]
        %v1372 = vld [vmem:[%s386 + $0x7e0] sm:$0xf]
        %v1373 = vld [vmem:[%s386 + $0x7e4] sm:$0xf]
        %v1374 = vld [vmem:[%s386 + $0x7e8] sm:$0xf]
        %v1375 = vld [vmem:[%s386 + $0x7ec] sm:$0xf]
        %v1376 = vld [vmem:[%s386 + $0x7f0] sm:$0xf]
        %v1377 = vld [vmem:[%s386 + $0x7f4] sm:$0xf]
        %v1378 = vld [vmem:[%s386 + $0x7f8] sm:$0xf]
        %v1379 = vld [vmem:[%s386 + $0x7fc] sm:$0xf]
        %v1380 = vld [vmem:[%s386 + $0x800] sm:$0xf]
        %v1381 = vld [vmem:[%s386 + $0x804] sm:$0xf]
        %v1382 = vld [vmem:[%s386 + $0x808] sm:$0xf]
        %v1383 = vld [vmem:[%s386 + $0x80c] sm:$0xf]
        %v1384 = vld [vmem:[%s386 + $0x810] sm:$0xf]
        %v1385 = vld [vmem:[%s386 + $0x814] sm:$0xf]
        %v1386 = vld [vmem:[%s386 + $0x818] sm:$0xf]
        %v1387 = vld [vmem:[%s386 + $0x81c] sm:$0xf]
        %v1388 = vld [vmem:[%s386 + $0x820] sm:$0xf]
        %v1389 = vld [vmem:[%s386 + $0x824] sm:$0xf]
        %v1390 = vld [vmem:[%s386 + $0x828] sm:$0xf]
        %v1391 = vld [vmem:[%s386 + $0x82c] sm:$0xf]
        %v1392 = vld [vmem:[%s386 + $0x830] sm:$0xf]
        %v1393 = vld [vmem:[%s386 + $0x834] sm:$0xf]
        %v1394 = vld [vmem:[%s386 + $0x838] sm:$0xf]
        %v1395 = vld [vmem:[%s386 + $0x83c] sm:$0xf]
        %v1396 = vld [vmem:[%s386 + $0x840] sm:$0xf]
        %v1397 = vld [vmem:[%s386 + $0x844] sm:$0xf]
        %v1398 = vld [vmem:[%s386 + $0x848] sm:$0xf]
        %v1399 = vld [vmem:[%s386 + $0x84c] sm:$0xf]
        %v1400 = vld [vmem:[%s386 + $0x850] sm:$0xf]
        %v1401 = vld [vmem:[%s386 + $0x854] sm:$0xf]
        %v1402 = vld [vmem:[%s386 + $0x858] sm:$0xf]
        %v1403 = vld [vmem:[%s386 + $0x85c] sm:$0xf]
        %v1404 = vld [vmem:[%s386 + $0x860] sm:$0xf]
        %v1405 = vld [vmem:[%s386 + $0x864] sm:$0xf]
        %v1406 = vld [vmem:[%s386 + $0x868] sm:$0xf]
        %v1407 = vld [vmem:[%s386 + $0x86c] sm:$0xf]
        %v1408 = vld [vmem:[%s386 + $0x870] sm:$0xf]
        %v1409 = vld [vmem:[%s386 + $0x874] sm:$0xf]
        %v1410 = vld [vmem:[%s386 + $0x878] sm:$0xf]
        %v1411 = vld [vmem:[%s386 + $0x87c] sm:$0xf]
        %v1412 = vld [vmem:[%s386 + $0x880] sm:$0xf]
        %v1413 = vld [vmem:[%s386 + $0x884] sm:$0xf]
        %v1414 = vld [vmem:[%s386 + $0x888] sm:$0xf]
        %v1415 = vld [vmem:[%s386 + $0x88c] sm:$0xf]
        %v1416 = vld [vmem:[%s386 + $0x890] sm:$0xf]
        %v1417 = vld [vmem:[%s386 + $0x894] sm:$0xf]
        %v1418 = vld [vmem:[%s386 + $0x898] sm:$0xf]
        %v1419 = vld [vmem:[%s386 + $0x89c] sm:$0xf]
        %v1420 = vld [vmem:[%s386 + $0x8a0] sm:$0xf]
        %v1421 = vld [vmem:[%s386 + $0x8a4] sm:$0xf]
        %v1422 = vld [vmem:[%s386 + $0x8a8] sm:$0xf]
        %v1423 = vld [vmem:[%s386 + $0x8ac] sm:$0xf]
        %v1424 = vld [vmem:[%s386 + $0x8b0] sm:$0xf]
        %v1425 = vld [vmem:[%s386 + $0x8b4] sm:$0xf]
        %v1426 = vld [vmem:[%s386 + $0x8b8] sm:$0xf]
        %v1427 = vld [vmem:[%s386 + $0x8bc] sm:$0xf]
        %v1428 = vld [vmem:[%s386 + $0x8c0] sm:$0xf]
        %v1429 = vld [vmem:[%s386 + $0x8c4] sm:$0xf]
        %v1430 = vld [vmem:[%s386 + $0x8c8] sm:$0xf]
        %v1431 = vld [vmem:[%s386 + $0x8cc] sm:$0xf]
        %v1432 = vld [vmem:[%s386 + $0x8d0] sm:$0xf]
        %v1433 = vld [vmem:[%s386 + $0x8d4] sm:$0xf]
        %v1434 = vld [vmem:[%s386 + $0x8d8] sm:$0xf]
        %v1435 = vld [vmem:[%s386 + $0x8dc] sm:$0xf]
        %v1436 = vld [vmem:[%s386 + $0x8e0] sm:$0xf]
        %v1437 = vld [vmem:[%s386 + $0x8e4] sm:$0xf]
        %v1438 = vld [vmem:[%s386 + $0x8e8] sm:$0xf]
        %v1439 = vld [vmem:[%s386 + $0x8ec] sm:$0xf]
        %v1440 = vld [vmem:[%s386 + $0x8f0] sm:$0xf]
        %v1441 = vld [vmem:[%s386 + $0x8f4] sm:$0xf]
        %v1442 = vld [vmem:[%s386 + $0x8f8] sm:$0xf]
        %v1443 = vld [vmem:[%s386 + $0x8fc] sm:$0xf]
        %v1444 = vld [vmem:[%s386 + $0x900] sm:$0xf]
        %v1445 = vld [vmem:[%s386 + $0x904] sm:$0xf]
        %v1446 = vld [vmem:[%s386 + $0x908] sm:$0xf]
        %v1447 = vld [vmem:[%s386 + $0x90c] sm:$0xf]
        %v1448 = vld [vmem:[%s386 + $0x910] sm:$0xf]
        %v1449 = vld [vmem:[%s386 + $0x914] sm:$0xf]
        %v1450 = vld [vmem:[%s386 + $0x918] sm:$0xf]
        %v1451 = vld [vmem:[%s386 + $0x91c] sm:$0xf]
        %v1452 = vld [vmem:[%s386 + $0x920] sm:$0xf]
        %v1453 = vld [vmem:[%s386 + $0x924] sm:$0xf]
        %v1454 = vld [vmem:[%s386 + $0x928] sm:$0xf]
        %v1455 = vld [vmem:[%s386 + $0x92c] sm:$0xf]
        %v1456 = vld [vmem:[%s386 + $0x930] sm:$0xf]
        %v1457 = vld [vmem:[%s386 + $0x934] sm:$0xf]
        %v1458 = vld [vmem:[%s386 + $0x938] sm:$0xf]
        %v1459 = vld [vmem:[%s386 + $0x93c] sm:$0xf]
        %v1460 = vld [vmem:[%s386 + $0x940] sm:$0xf]
        %v1461 = vld [vmem:[%s386 + $0x944] sm:$0xf]
        %v1462 = vld [vmem:[%s386 + $0x948] sm:$0xf]
        %v1463 = vld [vmem:[%s386 + $0x94c] sm:$0xf]
        %v1464 = vld [vmem:[%s386 + $0x950] sm:$0xf]
        %v1465 = vld [vmem:[%s386 + $0x954] sm:$0xf]
        %v1466 = vld [vmem:[%s386 + $0x958] sm:$0xf]
        %v1467 = vld [vmem:[%s386 + $0x95c] sm:$0xf]
        %v1468 = vld [vmem:[%s386 + $0x960] sm:$0xf]
        %v1469 = vld [vmem:[%s386 + $0x964] sm:$0xf]
        %v1470 = vld [vmem:[%s386 + $0x968] sm:$0xf]
        %v1471 = vld [vmem:[%s386 + $0x96c] sm:$0xf]
        %v1472 = vld [vmem:[%s386 + $0x970] sm:$0xf]
        %v1473 = vld [vmem:[%s386 + $0x974] sm:$0xf]
        %v1474 = vld [vmem:[%s386 + $0x978] sm:$0xf]
        %v1475 = vld [vmem:[%s386 + $0x97c] sm:$0xf]
        %v1476 = vld [vmem:[%s386 + $0x980] sm:$0xf]
        %v1477 = vld [vmem:[%s386 + $0x984] sm:$0xf]
        %v1478 = vld [vmem:[%s386 + $0x988] sm:$0xf]
        %v1479 = vld [vmem:[%s386 + $0x98c] sm:$0xf]
        %v1480 = vld [vmem:[%s386 + $0x990] sm:$0xf]
        %v1481 = vld [vmem:[%s386 + $0x994] sm:$0xf]
        %v1482 = vld [vmem:[%s386 + $0x998] sm:$0xf]
        %v1483 = vld [vmem:[%s386 + $0x99c] sm:$0xf]
        %v1484 = vld [vmem:[%s386 + $0x9a0] sm:$0xf]
        %v1485 = vld [vmem:[%s386 + $0x9a4] sm:$0xf]
        %v1486 = vld [vmem:[%s386 + $0x9a8] sm:$0xf]
        %v1487 = vld [vmem:[%s386 + $0x9ac] sm:$0xf]
        %v1488 = vld [vmem:[%s386 + $0x9b0] sm:$0xf]
        %v1489 = vld [vmem:[%s386 + $0x9b4] sm:$0xf]
        %v1490 = vld [vmem:[%s386 + $0x9b8] sm:$0xf]
        %v1491 = vld [vmem:[%s386 + $0x9bc] sm:$0xf]
        %v1492 = vld [vmem:[%s386 + $0x9c0] sm:$0xf]
        %v1493 = vld [vmem:[%s386 + $0x9c4] sm:$0xf]
        %v1494 = vld [vmem:[%s386 + $0x9c8] sm:$0xf]
        %v1495 = vld [vmem:[%s386 + $0x9cc] sm:$0xf]
        %v1496 = vld [vmem:[%s386 + $0x9d0] sm:$0xf]
        %v1497 = vld [vmem:[%s386 + $0x9d4] sm:$0xf]
        %v1498 = vld [vmem:[%s386 + $0x9d8] sm:$0xf]
        %v1499 = vld [vmem:[%s386 + $0x9dc] sm:$0xf]
        %v1500 = vld [vmem:[%s386 + $0x9e0] sm:$0xf]
        %v1501 = vld [vmem:[%s386 + $0x9e4] sm:$0xf]
        %v1502 = vld [vmem:[%s386 + $0x9e8] sm:$0xf]
        %v1503 = vld [vmem:[%s386 + $0x9ec] sm:$0xf]
        %v1504 = vld [vmem:[%s386 + $0x9f0] sm:$0xf]
        %v1505 = vld [vmem:[%s386 + $0x9f4] sm:$0xf]
        %v1506 = vld [vmem:[%s386 + $0x9f8] sm:$0xf]
        %v1507 = vld [vmem:[%s386 + $0x9fc] sm:$0xf]
        %v1508 = vld [vmem:[%s386 + $0xa00] sm:$0xf]
        %v1509 = vld [vmem:[%s386 + $0xa04] sm:$0xf]
        %v1510 = vld [vmem:[%s386 + $0xa08] sm:$0xf]
        %v1511 = vld [vmem:[%s386 + $0xa0c] sm:$0xf]
        %v1512 = vld [vmem:[%s386 + $0xa10] sm:$0xf]
        %v1513 = vld [vmem:[%s386 + $0xa14] sm:$0xf]
        %v1514 = vld [vmem:[%s386 + $0xa18] sm:$0xf]
        %v1515 = vld [vmem:[%s386 + $0xa1c] sm:$0xf]
        %v1516 = vld [vmem:[%s386 + $0xa20] sm:$0xf]
        %v1517 = vld [vmem:[%s386 + $0xa24] sm:$0xf]
        %v1518 = vld [vmem:[%s386 + $0xa28] sm:$0xf]
        %v1519 = vld [vmem:[%s386 + $0xa2c] sm:$0xf]
        %v1520 = vld [vmem:[%s386 + $0xa30] sm:$0xf]
        %v1521 = vld [vmem:[%s386 + $0xa34] sm:$0xf]
        %v1522 = vld [vmem:[%s386 + $0xa38] sm:$0xf]
        %v1523 = vld [vmem:[%s386 + $0xa3c] sm:$0xf]
        %v1524 = vld [vmem:[%s386 + $0xa40] sm:$0xf]
        %v1525 = vld [vmem:[%s386 + $0xa44] sm:$0xf]
        %v1526 = vld [vmem:[%s386 + $0xa48] sm:$0xf]
        %v1527 = vld [vmem:[%s386 + $0xa4c] sm:$0xf]
        %v1528 = vld [vmem:[%s386 + $0xa50] sm:$0xf]
        %v1529 = vld [vmem:[%s386 + $0xa54] sm:$0xf]
        %v1530 = vld [vmem:[%s386 + $0xa58] sm:$0xf]
        %v1531 = vld [vmem:[%s386 + $0xa5c] sm:$0xf]
        %v1532 = vld [vmem:[%s386 + $0xa60] sm:$0xf]
        %v1533 = vld [vmem:[%s386 + $0xa64] sm:$0xf]
        %v1534 = vld [vmem:[%s386 + $0xa68] sm:$0xf]
        %v1535 = vld [vmem:[%s386 + $0xa6c] sm:$0xf]
        %v1536 = vld [vmem:[%s386 + $0xa70] sm:$0xf]
        %v1537 = vld [vmem:[%s386 + $0xa74] sm:$0xf]
        %v1538 = vld [vmem:[%s386 + $0xa78] sm:$0xf]
        %v1539 = vld [vmem:[%s386 + $0xa7c] sm:$0xf]
        %v1540 = vld [vmem:[%s386 + $0xa80] sm:$0xf]
        %v1541 = vld [vmem:[%s386 + $0xa84] sm:$0xf]
        %v1542 = vld [vmem:[%s386 + $0xa88] sm:$0xf]
        %v1543 = vld [vmem:[%s386 + $0xa8c] sm:$0xf]
        %v1544 = vld [vmem:[%s386 + $0xa90] sm:$0xf]
        %v1545 = vld [vmem:[%s386 + $0xa94] sm:$0xf]
        %v1546 = vld [vmem:[%s386 + $0xa98] sm:$0xf]
        %v1547 = vld [vmem:[%s386 + $0xa9c] sm:$0xf]
        %v1548 = vld [vmem:[%s386 + $0xaa0] sm:$0xf]
        %v1549 = vld [vmem:[%s386 + $0xaa4] sm:$0xf]
        %v1550 = vld [vmem:[%s386 + $0xaa8] sm:$0xf]
        %v1551 = vld [vmem:[%s386 + $0xaac] sm:$0xf]
        %v1552 = vld [vmem:[%s386 + $0xab0] sm:$0xf]
        %v1553 = vld [vmem:[%s386 + $0xab4] sm:$0xf]
        %v1554 = vld [vmem:[%s386 + $0xab8] sm:$0xf]
        %v1555 = vld [vmem:[%s386 + $0xabc] sm:$0xf]
        %v1556 = vld [vmem:[%s386 + $0xac0] sm:$0xf]
        %v1557 = vld [vmem:[%s386 + $0xac4] sm:$0xf]
        %v1558 = vld [vmem:[%s386 + $0xac8] sm:$0xf]
        %v1559 = vld [vmem:[%s386 + $0xacc] sm:$0xf]
        %v1560 = vld [vmem:[%s386 + $0xad0] sm:$0xf]
        %v1561 = vld [vmem:[%s386 + $0xad4] sm:$0xf]
        %v1562 = vld [vmem:[%s386 + $0xad8] sm:$0xf]
        %v1563 = vld [vmem:[%s386 + $0xadc] sm:$0xf]
        %v1564 = vld [vmem:[%s386 + $0xae0] sm:$0xf]
        %v1565 = vld [vmem:[%s386 + $0xae4] sm:$0xf]
        %v1566 = vld [vmem:[%s386 + $0xae8] sm:$0xf]
        %v1567 = vld [vmem:[%s386 + $0xaec] sm:$0xf]
        %v1568 = vld [vmem:[%s386 + $0xaf0] sm:$0xf]
        %v1569 = vld [vmem:[%s386 + $0xaf4] sm:$0xf]
        %v1570 = vld [vmem:[%s386 + $0xaf8] sm:$0xf]
        %v1571 = vld [vmem:[%s386 + $0xafc] sm:$0xf]
        %v1572 = vld [vmem:[%s386 + $0xb00] sm:$0xf]
        %v1573 = vld [vmem:[%s386 + $0xb04] sm:$0xf]
        %v1574 = vld [vmem:[%s386 + $0xb08] sm:$0xf]
        %v1575 = vld [vmem:[%s386 + $0xb0c] sm:$0xf]
        %v1576 = vld [vmem:[%s386 + $0xb10] sm:$0xf]
        %v1577 = vld [vmem:[%s386 + $0xb14] sm:$0xf]
        %v1578 = vld [vmem:[%s386 + $0xb18] sm:$0xf]
        %v1579 = vld [vmem:[%s386 + $0xb1c] sm:$0xf]
        %v1580 = vld [vmem:[%s386 + $0xb20] sm:$0xf]
        %v1581 = vld [vmem:[%s386 + $0xb24] sm:$0xf]
        %v1582 = vld [vmem:[%s386 + $0xb28] sm:$0xf]
        %v1583 = vld [vmem:[%s386 + $0xb2c] sm:$0xf]
        %v1584 = vld [vmem:[%s386 + $0xb30] sm:$0xf]
        %v1585 = vld [vmem:[%s386 + $0xb34] sm:$0xf]
        %v1586 = vld [vmem:[%s386 + $0xb38] sm:$0xf]
        %v1587 = vld [vmem:[%s386 + $0xb3c] sm:$0xf]
        %v1588 = vld [vmem:[%s386 + $0xb40] sm:$0xf]
        %v1589 = vld [vmem:[%s386 + $0xb44] sm:$0xf]
        %v1590 = vld [vmem:[%s386 + $0xb48] sm:$0xf]
        %v1591 = vld [vmem:[%s386 + $0xb4c] sm:$0xf]
        %v1592 = vld [vmem:[%s386 + $0xb50] sm:$0xf]
        %v1593 = vld [vmem:[%s386 + $0xb54] sm:$0xf]
        %v1594 = vld [vmem:[%s386 + $0xb58] sm:$0xf]
        %v1595 = vld [vmem:[%s386 + $0xb5c] sm:$0xf]
        %v1596 = vld [vmem:[%s386 + $0xb60] sm:$0xf]
        %v1597 = vld [vmem:[%s386 + $0xb64] sm:$0xf]
        %v1598 = vld [vmem:[%s386 + $0xb68] sm:$0xf]
        %v1599 = vld [vmem:[%s386 + $0xb6c] sm:$0xf]
        %v1600 = vld [vmem:[%s386 + $0xb70] sm:$0xf]
        %v1601 = vld [vmem:[%s386 + $0xb74] sm:$0xf]
        %v1602 = vld [vmem:[%s386 + $0xb78] sm:$0xf]
        %v1603 = vld [vmem:[%s386 + $0xb7c] sm:$0xf]
        %v1604 = vld [vmem:[%s386 + $0xb80] sm:$0xf]
        %v1605 = vld [vmem:[%s386 + $0xb84] sm:$0xf]
        %v1606 = vld [vmem:[%s386 + $0xb88] sm:$0xf]
        %v1607 = vld [vmem:[%s386 + $0xb8c] sm:$0xf]
        %v1608 = vld [vmem:[%s386 + $0xb90] sm:$0xf]
        %v1609 = vld [vmem:[%s386 + $0xb94] sm:$0xf]
        %v1610 = vld [vmem:[%s386 + $0xb98] sm:$0xf]
        %v1611 = vld [vmem:[%s386 + $0xb9c] sm:$0xf]
        %v1612 = vld [vmem:[%s386 + $0xba0] sm:$0xf]
        %v1613 = vld [vmem:[%s386 + $0xba4] sm:$0xf]
        %v1614 = vld [vmem:[%s386 + $0xba8] sm:$0xf]
        %v1615 = vld [vmem:[%s386 + $0xbac] sm:$0xf]
        %v1616 = vld [vmem:[%s386 + $0xbb0] sm:$0xf]
        %v1617 = vld [vmem:[%s386 + $0xbb4] sm:$0xf]
        %v1618 = vld [vmem:[%s386 + $0xbb8] sm:$0xf]
        %v1619 = vld [vmem:[%s386 + $0xbbc] sm:$0xf]
        %v1620 = vld [vmem:[%s386 + $0xbc0] sm:$0xf]
        %v1621 = vld [vmem:[%s386 + $0xbc4] sm:$0xf]
        %v1622 = vld [vmem:[%s386 + $0xbc8] sm:$0xf]
        %v1623 = vld [vmem:[%s386 + $0xbcc] sm:$0xf]
        %v1624 = vld [vmem:[%s386 + $0xbd0] sm:$0xf]
        %v1625 = vld [vmem:[%s386 + $0xbd4] sm:$0xf]
        %v1626 = vld [vmem:[%s386 + $0xbd8] sm:$0xf]
        %v1627 = vld [vmem:[%s386 + $0xbdc] sm:$0xf]
        %v1628 = vld [vmem:[%s386 + $0xbe0] sm:$0xf]
        %v1629 = vld [vmem:[%s386 + $0xbe4] sm:$0xf]
        %v1630 = vld [vmem:[%s386 + $0xbe8] sm:$0xf]
        %v1631 = vld [vmem:[%s386 + $0xbec] sm:$0xf]
        %v1632 = vld [vmem:[%s386 + $0xbf0] sm:$0xf]
        %v1633 = vld [vmem:[%s386 + $0xbf4] sm:$0xf]
        %v1634 = vld [vmem:[%s386 + $0xbf8] sm:$0xf]
        %v1635 = vld [vmem:[%s386 + $0xbfc] sm:$0xf]
        %v1636 = vld [vmem:[%s386 + $0xc00] sm:$0xf]
        %v1637 = vld [vmem:[%s386 + $0xc04] sm:$0xf]
        %v1638 = vld [vmem:[%s386 + $0xc08] sm:$0xf]
        %v1639 = vld [vmem:[%s386 + $0xc0c] sm:$0xf]
        %v1640 = vld [vmem:[%s386 + $0xc10] sm:$0xf]
        %v1641 = vld [vmem:[%s386 + $0xc14] sm:$0xf]
        %v1642 = vld [vmem:[%s386 + $0xc18] sm:$0xf]
        %v1643 = vld [vmem:[%s386 + $0xc1c] sm:$0xf]
        %v1644 = vld [vmem:[%s386 + $0xc20] sm:$0xf]
        %v1645 = vld [vmem:[%s386 + $0xc24] sm:$0xf]
        %v1646 = vld [vmem:[%s386 + $0xc28] sm:$0xf]
        %v1647 = vld [vmem:[%s386 + $0xc2c] sm:$0xf]
        %v1648 = vld [vmem:[%s386 + $0xc30] sm:$0xf]
        %v1649 = vld [vmem:[%s386 + $0xc34] sm:$0xf]
        %v1650 = vld [vmem:[%s386 + $0xc38] sm:$0xf]
        %v1651 = vld [vmem:[%s386 + $0xc3c] sm:$0xf]
        %v1652 = vld [vmem:[%s386 + $0xc40] sm:$0xf]
        %v1653 = vld [vmem:[%s386 + $0xc44] sm:$0xf]
        %v1654 = vld [vmem:[%s386 + $0xc48] sm:$0xf]
        %v1655 = vld [vmem:[%s386 + $0xc4c] sm:$0xf]
        %v1656 = vld [vmem:[%s386 + $0xc50] sm:$0xf]
        %v1657 = vld [vmem:[%s386 + $0xc54] sm:$0xf]
        %v1658 = vld [vmem:[%s386 + $0xc58] sm:$0xf]
        %v1659 = vld [vmem:[%s386 + $0xc5c] sm:$0xf]
        %v1660 = vld [vmem:[%s386 + $0xc60] sm:$0xf]
        %v1661 = vld [vmem:[%s386 + $0xc64] sm:$0xf]
        %v1662 = vld [vmem:[%s386 + $0xc68] sm:$0xf]
        %v1663 = vld [vmem:[%s386 + $0xc6c] sm:$0xf]
        %v1664 = vld [vmem:[%s386 + $0xc70] sm:$0xf]
        %v1665 = vld [vmem:[%s386 + $0xc74] sm:$0xf]
        %v1666 = vld [vmem:[%s386 + $0xc78] sm:$0xf]
        %v1667 = vld [vmem:[%s386 + $0xc7c] sm:$0xf]
        %v1668 = vld [vmem:[%s386 + $0xc80] sm:$0xf]
        %v1669 = vld [vmem:[%s386 + $0xc84] sm:$0xf]
        %v1670 = vld [vmem:[%s386 + $0xc88] sm:$0xf]
        %v1671 = vld [vmem:[%s386 + $0xc8c] sm:$0xf]
        %v1672 = vld [vmem:[%s386 + $0xc90] sm:$0xf]
        %v1673 = vld [vmem:[%s386 + $0xc94] sm:$0xf]
        %v1674 = vld [vmem:[%s386 + $0xc98] sm:$0xf]
        %v1675 = vld [vmem:[%s386 + $0xc9c] sm:$0xf]
        %v1676 = vld [vmem:[%s386 + $0xca0] sm:$0xf]
        %v1677 = vld [vmem:[%s386 + $0xca4] sm:$0xf]
        %v1678 = vld [vmem:[%s386 + $0xca8] sm:$0xf]
        %v1679 = vld [vmem:[%s386 + $0xcac] sm:$0xf]
        %v1680 = vld [vmem:[%s386 + $0xcb0] sm:$0xf]
        %v1681 = vld [vmem:[%s386 + $0xcb4] sm:$0xf]
        %v1682 = vld [vmem:[%s386 + $0xcb8] sm:$0xf]
        %v1683 = vld [vmem:[%s386 + $0xcbc] sm:$0xf]
        %v1684 = vld [vmem:[%s386 + $0xcc0] sm:$0xf]
        %v1685 = vld [vmem:[%s386 + $0xcc4] sm:$0xf]
        %v1686 = vld [vmem:[%s386 + $0xcc8] sm:$0xf]
        %v1687 = vld [vmem:[%s386 + $0xccc] sm:$0xf]
        %v1688 = vld [vmem:[%s386 + $0xcd0] sm:$0xf]
        %v1689 = vld [vmem:[%s386 + $0xcd4] sm:$0xf]
        %v1690 = vld [vmem:[%s386 + $0xcd8] sm:$0xf]
        %v1691 = vld [vmem:[%s386 + $0xcdc] sm:$0xf]
        %v1692 = vld [vmem:[%s386 + $0xce0] sm:$0xf]
        %v1693 = vld [vmem:[%s386 + $0xce4] sm:$0xf]
        %v1694 = vld [vmem:[%s386 + $0xce8] sm:$0xf]
        %v1695 = vld [vmem:[%s386 + $0xcec] sm:$0xf]
        %v1696 = vld [vmem:[%s386 + $0xcf0] sm:$0xf]
        %v1697 = vld [vmem:[%s386 + $0xcf4] sm:$0xf]
        %v1698 = vld [vmem:[%s386 + $0xcf8] sm:$0xf]
        %v1699 = vld [vmem:[%s386 + $0xcfc] sm:$0xf]
        %v1700 = vld [vmem:[%s386 + $0xd00] sm:$0xf]
        %v1701 = vld [vmem:[%s386 + $0xd04] sm:$0xf]
        %v1702 = vld [vmem:[%s386 + $0xd08] sm:$0xf]
        %v1703 = vld [vmem:[%s386 + $0xd0c] sm:$0xf]
        %v1704 = vld [vmem:[%s386 + $0xd10] sm:$0xf]
        %v1705 = vld [vmem:[%s386 + $0xd14] sm:$0xf]
        %v1706 = vld [vmem:[%s386 + $0xd18] sm:$0xf]
        %v1707 = vld [vmem:[%s386 + $0xd1c] sm:$0xf]
        %v1708 = vld [vmem:[%s386 + $0xd20] sm:$0xf]
        %v1709 = vld [vmem:[%s386 + $0xd24] sm:$0xf]
        %v1710 = vld [vmem:[%s386 + $0xd28] sm:$0xf]
        %v1711 = vld [vmem:[%s386 + $0xd2c] sm:$0xf]
        %v1712 = vld [vmem:[%s386 + $0xd30] sm:$0xf]
        %v1713 = vld [vmem:[%s386 + $0xd34] sm:$0xf]
        %v1714 = vld [vmem:[%s386 + $0xd38] sm:$0xf]
        %v1715 = vld [vmem:[%s386 + $0xd3c] sm:$0xf]
        %v1716 = vld [vmem:[%s386 + $0xd40] sm:$0xf]
        %v1717 = vld [vmem:[%s386 + $0xd44] sm:$0xf]
        %v1718 = vld [vmem:[%s386 + $0xd48] sm:$0xf]
        %v1719 = vld [vmem:[%s386 + $0xd4c] sm:$0xf]
        %v1720 = vld [vmem:[%s386 + $0xd50] sm:$0xf]
        %v1721 = vld [vmem:[%s386 + $0xd54] sm:$0xf]
        %v1722 = vld [vmem:[%s386 + $0xd58] sm:$0xf]
        %v1723 = vld [vmem:[%s386 + $0xd5c] sm:$0xf]
        %v1724 = vld [vmem:[%s386 + $0xd60] sm:$0xf]
        %v1725 = vld [vmem:[%s386 + $0xd64] sm:$0xf]
        %v1726 = vld [vmem:[%s386 + $0xd68] sm:$0xf]
        %v1727 = vld [vmem:[%s386 + $0xd6c] sm:$0xf]
        %v1728 = vld [vmem:[%s386 + $0xd70] sm:$0xf]
        %v1729 = vld [vmem:[%s386 + $0xd74] sm:$0xf]
        %v1730 = vld [vmem:[%s386 + $0xd78] sm:$0xf]
        %v1731 = vld [vmem:[%s386 + $0xd7c] sm:$0xf]
        %v1732 = vld [vmem:[%s386 + $0xd80] sm:$0xf]
        %v1733 = vld [vmem:[%s386 + $0xd84] sm:$0xf]
        %v1734 = vld [vmem:[%s386 + $0xd88] sm:$0xf]
        %v1735 = vld [vmem:[%s386 + $0xd8c] sm:$0xf]
        %v1736 = vld [vmem:[%s386 + $0xd90] sm:$0xf]
        %v1737 = vld [vmem:[%s386 + $0xd94] sm:$0xf]
        %v1738 = vld [vmem:[%s386 + $0xd98] sm:$0xf]
        %v1739 = vld [vmem:[%s386 + $0xd9c] sm:$0xf]
        %v1740 = vld [vmem:[%s386 + $0xda0] sm:$0xf]
        %v1741 = vld [vmem:[%s386 + $0xda4] sm:$0xf]
        %v1742 = vld [vmem:[%s386 + $0xda8] sm:$0xf]
        %v1743 = vld [vmem:[%s386 + $0xdac] sm:$0xf]
        %v1744 = vld [vmem:[%s386 + $0xdb0] sm:$0xf]
        %v1745 = vld [vmem:[%s386 + $0xdb4] sm:$0xf]
        %v1746 = vld [vmem:[%s386 + $0xdb8] sm:$0xf]
        %v1747 = vld [vmem:[%s386 + $0xdbc] sm:$0xf]
        %v1748 = vld [vmem:[%s386 + $0xdc0] sm:$0xf]
        %v1749 = vld [vmem:[%s386 + $0xdc4] sm:$0xf]
        %v1750 = vld [vmem:[%s386 + $0xdc8] sm:$0xf]
        %v1751 = vld [vmem:[%s386 + $0xdcc] sm:$0xf]
        %v1752 = vld [vmem:[%s386 + $0xdd0] sm:$0xf]
        %v1753 = vld [vmem:[%s386 + $0xdd4] sm:$0xf]
        %v1754 = vld [vmem:[%s386 + $0xdd8] sm:$0xf]
        %v1755 = vld [vmem:[%s386 + $0xddc] sm:$0xf]
        %v1756 = vld [vmem:[%s386 + $0xde0] sm:$0xf]
        %v1757 = vld [vmem:[%s386 + $0xde4] sm:$0xf]
        %v1758 = vld [vmem:[%s386 + $0xde8] sm:$0xf]
        %v1759 = vld [vmem:[%s386 + $0xdec] sm:$0xf]
        %v1760 = vld [vmem:[%s386 + $0xdf0] sm:$0xf]
        %v1761 = vld [vmem:[%s386 + $0xdf4] sm:$0xf]
        %v1762 = vld [vmem:[%s386 + $0xdf8] sm:$0xf]
        %v1763 = vld [vmem:[%s386 + $0xdfc] sm:$0xf]
        %v1764 = vld [vmem:[%s386 + $0xe00] sm:$0xf]
        %v1765 = vld [vmem:[%s386 + $0xe04] sm:$0xf]
        %v1766 = vld [vmem:[%s386 + $0xe08] sm:$0xf]
        %v1767 = vld [vmem:[%s386 + $0xe0c] sm:$0xf]
        %v1768 = vld [vmem:[%s386 + $0xe10] sm:$0xf]
        %v1769 = vld [vmem:[%s386 + $0xe14] sm:$0xf]
        %v1770 = vld [vmem:[%s386 + $0xe18] sm:$0xf]
        %v1771 = vld [vmem:[%s386 + $0xe1c] sm:$0xf]
        %v1772 = vld [vmem:[%s386 + $0xe20] sm:$0xf]
        %v1773 = vld [vmem:[%s386 + $0xe24] sm:$0xf]
        %v1774 = vld [vmem:[%s386 + $0xe28] sm:$0xf]
        %v1775 = vld [vmem:[%s386 + $0xe2c] sm:$0xf]
        %v1776 = vld [vmem:[%s386 + $0xe30] sm:$0xf]
        %v1777 = vld [vmem:[%s386 + $0xe34] sm:$0xf]
        %v1778 = vld [vmem:[%s386 + $0xe38] sm:$0xf]
        %v1779 = vld [vmem:[%s386 + $0xe3c] sm:$0xf]
        %v1780 = vld [vmem:[%s386 + $0xe40] sm:$0xf]
        %v1781 = vld [vmem:[%s386 + $0xe44] sm:$0xf]
        %v1782 = vld [vmem:[%s386 + $0xe48] sm:$0xf]
        %v1783 = vld [vmem:[%s386 + $0xe4c] sm:$0xf]
        %v1784 = vld [vmem:[%s386 + $0xe50] sm:$0xf]
        %v1785 = vld [vmem:[%s386 + $0xe54] sm:$0xf]
        %v1786 = vld [vmem:[%s386 + $0xe58] sm:$0xf]
        %v1787 = vld [vmem:[%s386 + $0xe5c] sm:$0xf]
        %v1788 = vld [vmem:[%s386 + $0xe60] sm:$0xf]
        %v1789 = vld [vmem:[%s386 + $0xe64] sm:$0xf]
        %v1790 = vld [vmem:[%s386 + $0xe68] sm:$0xf]
        %v1791 = vld [vmem:[%s386 + $0xe6c] sm:$0xf]
        %v1792 = vld [vmem:[%s386 + $0xe70] sm:$0xf]
        %v1793 = vld [vmem:[%s386 + $0xe74] sm:$0xf]
        %v1794 = vld [vmem:[%s386 + $0xe78] sm:$0xf]
        %v1795 = vld [vmem:[%s386 + $0xe7c] sm:$0xf]
        %v1796 = vld [vmem:[%s386 + $0xe80] sm:$0xf]
        %v1797 = vld [vmem:[%s386 + $0xe84] sm:$0xf]
        %v1798 = vld [vmem:[%s386 + $0xe88] sm:$0xf]
        %v1799 = vld [vmem:[%s386 + $0xe8c] sm:$0xf]
        %v1800 = vld [vmem:[%s386 + $0xe90] sm:$0xf]
        %v1801 = vld [vmem:[%s386 + $0xe94] sm:$0xf]
        %v1802 = vld [vmem:[%s386 + $0xe98] sm:$0xf]
        %v1803 = vld [vmem:[%s386 + $0xe9c] sm:$0xf]
        %v1804 = vld [vmem:[%s386 + $0xea0] sm:$0xf]
        %v1805 = vld [vmem:[%s386 + $0xea4] sm:$0xf]
        %v1806 = vld [vmem:[%s386 + $0xea8] sm:$0xf]
        %v1807 = vld [vmem:[%s386 + $0xeac] sm:$0xf]
        %v1808 = vld [vmem:[%s386 + $0xeb0] sm:$0xf]
        %v1809 = vld [vmem:[%s386 + $0xeb4] sm:$0xf]
        %v1810 = vld [vmem:[%s386 + $0xeb8] sm:$0xf]
        %v1811 = vld [vmem:[%s386 + $0xebc] sm:$0xf]
        %v1812 = vld [vmem:[%s386 + $0xec0] sm:$0xf]
        %v1813 = vld [vmem:[%s386 + $0xec4] sm:$0xf]
        %v1814 = vld [vmem:[%s386 + $0xec8] sm:$0xf]
        %v1815 = vld [vmem:[%s386 + $0xecc] sm:$0xf]
        %v1816 = vld [vmem:[%s386 + $0xed0] sm:$0xf]
        %v1817 = vld [vmem:[%s386 + $0xed4] sm:$0xf]
        %v1818 = vld [vmem:[%s386 + $0xed8] sm:$0xf]
        %v1819 = vld [vmem:[%s386 + $0xedc] sm:$0xf]
        %v1820 = vld [vmem:[%s386 + $0xee0] sm:$0xf]
        %v1821 = vld [vmem:[%s386 + $0xee4] sm:$0xf]
        %v1822 = vld [vmem:[%s386 + $0xee8] sm:$0xf]
        %v1823 = vld [vmem:[%s386 + $0xeec] sm:$0xf]
        %v1824 = vld [vmem:[%s386 + $0xef0] sm:$0xf]
        %v1825 = vld [vmem:[%s386 + $0xef4] sm:$0xf]
        %v1826 = vld [vmem:[%s386 + $0xef8] sm:$0xf]
        %v1827 = vld [vmem:[%s386 + $0xefc] sm:$0xf]
        %v2788 = vunpack.c.l.b16 %v868
        %v2789 = vunpack.c.l.b16 %v869
        %v2790 = vunpack.c.l.b16 %v870
        %v2791 = vunpack.c.l.b16 %v871
        %v2792 = vunpack.c.l.b16 %v872
        %v2793 = vunpack.c.l.b16 %v873
        %v2794 = vunpack.c.l.b16 %v874
        %v2795 = vunpack.c.l.b16 %v875
        %v2796 = vunpack.c.l.b16 %v876
        %v2797 = vunpack.c.l.b16 %v877
        %v2798 = vunpack.c.l.b16 %v878
        %v2799 = vunpack.c.l.b16 %v879
        %v2800 = vunpack.c.l.b16 %v880
        %v2801 = vunpack.c.l.b16 %v881
        %v2802 = vunpack.c.l.b16 %v882
        %v2803 = vunpack.c.l.b16 %v883
        %v2804 = vunpack.c.l.b16 %v884
        %v2805 = vunpack.c.l.b16 %v885
        %v2806 = vunpack.c.l.b16 %v886
        %v2807 = vunpack.c.l.b16 %v887
        %v2808 = vunpack.c.l.b16 %v888
        %v2809 = vunpack.c.l.b16 %v889
        %v2810 = vunpack.c.l.b16 %v890
        %v2811 = vunpack.c.l.b16 %v891
        %v2812 = vunpack.c.l.b16 %v892
        %v2813 = vunpack.c.l.b16 %v893
        %v2814 = vunpack.c.l.b16 %v894
        %v2815 = vunpack.c.l.b16 %v895
        %v2816 = vunpack.c.l.b16 %v896
        %v2817 = vunpack.c.l.b16 %v897
        %v2818 = vunpack.c.l.b16 %v898
        %v2819 = vunpack.c.l.b16 %v899
        %v2820 = vunpack.c.l.b16 %v900
        %v2821 = vunpack.c.l.b16 %v901
        %v2822 = vunpack.c.l.b16 %v902
        %v2823 = vunpack.c.l.b16 %v903
        %v2824 = vunpack.c.l.b16 %v904
        %v2825 = vunpack.c.l.b16 %v905
        %v2826 = vunpack.c.l.b16 %v906
        %v2827 = vunpack.c.l.b16 %v907
        %v2828 = vunpack.c.l.b16 %v908
        %v2829 = vunpack.c.l.b16 %v909
        %v2830 = vunpack.c.l.b16 %v910
        %v2831 = vunpack.c.l.b16 %v911
        %v2832 = vunpack.c.l.b16 %v912
        %v2833 = vunpack.c.l.b16 %v913
        %v2834 = vunpack.c.l.b16 %v914
        %v2835 = vunpack.c.l.b16 %v915
        %v2836 = vunpack.c.l.b16 %v916
        %v2837 = vunpack.c.l.b16 %v917
        %v2838 = vunpack.c.l.b16 %v918
        %v2839 = vunpack.c.l.b16 %v919
        %v2840 = vunpack.c.l.b16 %v920
        %v2841 = vunpack.c.l.b16 %v921
        %v2842 = vunpack.c.l.b16 %v922
        %v2843 = vunpack.c.l.b16 %v923
        %v2844 = vunpack.c.l.b16 %v924
        %v2845 = vunpack.c.l.b16 %v925
        %v2846 = vunpack.c.l.b16 %v926
        %v2847 = vunpack.c.l.b16 %v927
        %v2848 = vunpack.c.l.b16 %v928
        %v2849 = vunpack.c.l.b16 %v929
        %v2850 = vunpack.c.l.b16 %v930
        %v2851 = vunpack.c.l.b16 %v931
        %v2852 = vunpack.c.l.b16 %v932
        %v2853 = vunpack.c.l.b16 %v933
        %v2854 = vunpack.c.l.b16 %v934
        %v2855 = vunpack.c.l.b16 %v935
        %v2856 = vunpack.c.l.b16 %v936
        %v2857 = vunpack.c.l.b16 %v937
        %v2858 = vunpack.c.l.b16 %v938
        %v2859 = vunpack.c.l.b16 %v939
        %v2860 = vunpack.c.l.b16 %v940
        %v2861 = vunpack.c.l.b16 %v941
        %v2862 = vunpack.c.l.b16 %v942
        %v2863 = vunpack.c.l.b16 %v943
        %v2864 = vunpack.c.l.b16 %v944
        %v2865 = vunpack.c.l.b16 %v945
        %v2866 = vunpack.c.l.b16 %v946
        %v2867 = vunpack.c.l.b16 %v947
        %v2868 = vunpack.c.l.b16 %v948
        %v2869 = vunpack.c.l.b16 %v949
        %v2870 = vunpack.c.l.b16 %v950
        %v2871 = vunpack.c.l.b16 %v951
        %v2872 = vunpack.c.l.b16 %v952
        %v2873 = vunpack.c.l.b16 %v953
        %v2874 = vunpack.c.l.b16 %v954
        %v2875 = vunpack.c.l.b16 %v955
        %v2876 = vunpack.c.l.b16 %v956
        %v2877 = vunpack.c.l.b16 %v957
        %v2878 = vunpack.c.l.b16 %v958
        %v2879 = vunpack.c.l.b16 %v959
        %v2880 = vunpack.c.l.b16 %v960
        %v2881 = vunpack.c.l.b16 %v961
        %v2882 = vunpack.c.l.b16 %v962
        %v2883 = vunpack.c.l.b16 %v963
        %v2884 = vunpack.c.l.b16 %v964
        %v2885 = vunpack.c.l.b16 %v965
        %v2886 = vunpack.c.l.b16 %v966
        %v2887 = vunpack.c.l.b16 %v967
        %v2888 = vunpack.c.l.b16 %v968
        %v2889 = vunpack.c.l.b16 %v969
        %v2890 = vunpack.c.l.b16 %v970
        %v2891 = vunpack.c.l.b16 %v971
        %v2892 = vunpack.c.l.b16 %v972
        %v2893 = vunpack.c.l.b16 %v973
        %v2894 = vunpack.c.l.b16 %v974
        %v2895 = vunpack.c.l.b16 %v975
        %v2896 = vunpack.c.l.b16 %v976
        %v2897 = vunpack.c.l.b16 %v977
        %v2898 = vunpack.c.l.b16 %v978
        %v2899 = vunpack.c.l.b16 %v979
        %v2900 = vunpack.c.l.b16 %v980
        %v2901 = vunpack.c.l.b16 %v981
        %v2902 = vunpack.c.l.b16 %v982
        %v2903 = vunpack.c.l.b16 %v983
        %v2904 = vunpack.c.l.b16 %v984
        %v2905 = vunpack.c.l.b16 %v985
        %v2906 = vunpack.c.l.b16 %v986
        %v2907 = vunpack.c.l.b16 %v987
        %v2908 = vunpack.c.l.b16 %v988
        %v2909 = vunpack.c.l.b16 %v989
        %v2910 = vunpack.c.l.b16 %v990
        %v2911 = vunpack.c.l.b16 %v991
        %v2912 = vunpack.c.l.b16 %v992
        %v2913 = vunpack.c.l.b16 %v993
        %v2914 = vunpack.c.l.b16 %v994
        %v2915 = vunpack.c.l.b16 %v995
        %v2916 = vunpack.c.l.b16 %v996
        %v2917 = vunpack.c.l.b16 %v997
        %v2918 = vunpack.c.l.b16 %v998
        %v2919 = vunpack.c.l.b16 %v999
        %v2920 = vunpack.c.l.b16 %v1000
        %v2921 = vunpack.c.l.b16 %v1001
        %v2922 = vunpack.c.l.b16 %v1002
        %v2923 = vunpack.c.l.b16 %v1003
        %v2924 = vunpack.c.l.b16 %v1004
        %v2925 = vunpack.c.l.b16 %v1005
        %v2926 = vunpack.c.l.b16 %v1006
        %v2927 = vunpack.c.l.b16 %v1007
        %v2928 = vunpack.c.l.b16 %v1008
        %v2929 = vunpack.c.l.b16 %v1009
        %v2930 = vunpack.c.l.b16 %v1010
        %v2931 = vunpack.c.l.b16 %v1011
        %v2932 = vunpack.c.l.b16 %v1012
        %v2933 = vunpack.c.l.b16 %v1013
        %v2934 = vunpack.c.l.b16 %v1014
        %v2935 = vunpack.c.l.b16 %v1015
        %v2936 = vunpack.c.l.b16 %v1016
        %v2937 = vunpack.c.l.b16 %v1017
        %v2938 = vunpack.c.l.b16 %v1018
        %v2939 = vunpack.c.l.b16 %v1019
        %v2940 = vunpack.c.l.b16 %v1020
        %v2941 = vunpack.c.l.b16 %v1021
        %v2942 = vunpack.c.l.b16 %v1022
        %v2943 = vunpack.c.l.b16 %v1023
        %v2944 = vunpack.c.l.b16 %v1024
        %v2945 = vunpack.c.l.b16 %v1025
        %v2946 = vunpack.c.l.b16 %v1026
        %v2947 = vunpack.c.l.b16 %v1027
        %v2948 = vunpack.c.l.b16 %v1028
        %v2949 = vunpack.c.l.b16 %v1029
        %v2950 = vunpack.c.l.b16 %v1030
        %v2951 = vunpack.c.l.b16 %v1031
        %v2952 = vunpack.c.l.b16 %v1032
        %v2953 = vunpack.c.l.b16 %v1033
        %v2954 = vunpack.c.l.b16 %v1034
        %v2955 = vunpack.c.l.b16 %v1035
        %v2956 = vunpack.c.l.b16 %v1036
        %v2957 = vunpack.c.l.b16 %v1037
        %v2958 = vunpack.c.l.b16 %v1038
        %v2959 = vunpack.c.l.b16 %v1039
        %v2960 = vunpack.c.l.b16 %v1040
        %v2961 = vunpack.c.l.b16 %v1041
        %v2962 = vunpack.c.l.b16 %v1042
        %v2963 = vunpack.c.l.b16 %v1043
        %v2964 = vunpack.c.l.b16 %v1044
        %v2965 = vunpack.c.l.b16 %v1045
        %v2966 = vunpack.c.l.b16 %v1046
        %v2967 = vunpack.c.l.b16 %v1047
        %v2968 = vunpack.c.l.b16 %v1048
        %v2969 = vunpack.c.l.b16 %v1049
        %v2970 = vunpack.c.l.b16 %v1050
        %v2971 = vunpack.c.l.b16 %v1051
        %v2972 = vunpack.c.l.b16 %v1052
        %v2973 = vunpack.c.l.b16 %v1053
        %v2974 = vunpack.c.l.b16 %v1054
        %v2975 = vunpack.c.l.b16 %v1055
        %v2976 = vunpack.c.l.b16 %v1056
        %v2977 = vunpack.c.l.b16 %v1057
        %v2978 = vunpack.c.l.b16 %v1058
        %v2979 = vunpack.c.l.b16 %v1059
        %v2980 = vunpack.c.l.b16 %v1060
        %v2981 = vunpack.c.l.b16 %v1061
        %v2982 = vunpack.c.l.b16 %v1062
        %v2983 = vunpack.c.l.b16 %v1063
        %v2984 = vunpack.c.l.b16 %v1064
        %v2985 = vunpack.c.l.b16 %v1065
        %v2986 = vunpack.c.l.b16 %v1066
        %v2987 = vunpack.c.l.b16 %v1067
        %v2988 = vunpack.c.l.b16 %v1068
        %v2989 = vunpack.c.l.b16 %v1069
        %v2990 = vunpack.c.l.b16 %v1070
        %v2991 = vunpack.c.l.b16 %v1071
        %v2992 = vunpack.c.l.b16 %v1072
        %v2993 = vunpack.c.l.b16 %v1073
        %v2994 = vunpack.c.l.b16 %v1074
        %v2995 = vunpack.c.l.b16 %v1075
        %v2996 = vunpack.c.l.b16 %v1076
        %v2997 = vunpack.c.l.b16 %v1077
        %v2998 = vunpack.c.l.b16 %v1078
        %v2999 = vunpack.c.l.b16 %v1079
        %v3000 = vunpack.c.l.b16 %v1080
        %v3001 = vunpack.c.l.b16 %v1081
        %v3002 = vunpack.c.l.b16 %v1082
        %v3003 = vunpack.c.l.b16 %v1083
        %v3004 = vunpack.c.l.b16 %v1084
        %v3005 = vunpack.c.l.b16 %v1085
        %v3006 = vunpack.c.l.b16 %v1086
        %v3007 = vunpack.c.l.b16 %v1087
        %v3008 = vunpack.c.l.b16 %v1088
        %v3009 = vunpack.c.l.b16 %v1089
        %v3010 = vunpack.c.l.b16 %v1090
        %v3011 = vunpack.c.l.b16 %v1091
        %v3012 = vunpack.c.l.b16 %v1092
        %v3013 = vunpack.c.l.b16 %v1093
        %v3014 = vunpack.c.l.b16 %v1094
        %v3015 = vunpack.c.l.b16 %v1095
        %v3016 = vunpack.c.l.b16 %v1096
        %v3017 = vunpack.c.l.b16 %v1097
        %v3018 = vunpack.c.l.b16 %v1098
        %v3019 = vunpack.c.l.b16 %v1099
        %v3020 = vunpack.c.l.b16 %v1100
        %v3021 = vunpack.c.l.b16 %v1101
        %v3022 = vunpack.c.l.b16 %v1102
        %v3023 = vunpack.c.l.b16 %v1103
        %v3024 = vunpack.c.l.b16 %v1104
        %v3025 = vunpack.c.l.b16 %v1105
        %v3026 = vunpack.c.l.b16 %v1106
        %v3027 = vunpack.c.l.b16 %v1107
        %v3028 = vunpack.c.l.b16 %v1108
        %v3029 = vunpack.c.l.b16 %v1109
        %v3030 = vunpack.c.l.b16 %v1110
        %v3031 = vunpack.c.l.b16 %v1111
        %v3032 = vunpack.c.l.b16 %v1112
        %v3033 = vunpack.c.l.b16 %v1113
        %v3034 = vunpack.c.l.b16 %v1114
        %v3035 = vunpack.c.l.b16 %v1115
        %v3036 = vunpack.c.l.b16 %v1116
        %v3037 = vunpack.c.l.b16 %v1117
        %v3038 = vunpack.c.l.b16 %v1118
        %v3039 = vunpack.c.l.b16 %v1119
        %v3040 = vunpack.c.l.b16 %v1120
        %v3041 = vunpack.c.l.b16 %v1121
        %v3042 = vunpack.c.l.b16 %v1122
        %v3043 = vunpack.c.l.b16 %v1123
        %v3044 = vunpack.c.l.b16 %v1124
        %v3045 = vunpack.c.l.b16 %v1125
        %v3046 = vunpack.c.l.b16 %v1126
        %v3047 = vunpack.c.l.b16 %v1127
        %v3048 = vunpack.c.l.b16 %v1128
        %v3049 = vunpack.c.l.b16 %v1129
        %v3050 = vunpack.c.l.b16 %v1130
        %v3051 = vunpack.c.l.b16 %v1131
        %v3052 = vunpack.c.l.b16 %v1132
        %v3053 = vunpack.c.l.b16 %v1133
        %v3054 = vunpack.c.l.b16 %v1134
        %v3055 = vunpack.c.l.b16 %v1135
        %v3056 = vunpack.c.l.b16 %v1136
        %v3057 = vunpack.c.l.b16 %v1137
        %v3058 = vunpack.c.l.b16 %v1138
        %v3059 = vunpack.c.l.b16 %v1139
        %v3060 = vunpack.c.l.b16 %v1140
        %v3061 = vunpack.c.l.b16 %v1141
        %v3062 = vunpack.c.l.b16 %v1142
        %v3063 = vunpack.c.l.b16 %v1143
        %v3064 = vunpack.c.l.b16 %v1144
        %v3065 = vunpack.c.l.b16 %v1145
        %v3066 = vunpack.c.l.b16 %v1146
        %v3067 = vunpack.c.l.b16 %v1147
        %v3068 = vunpack.c.l.b16 %v1148
        %v3069 = vunpack.c.l.b16 %v1149
        %v3070 = vunpack.c.l.b16 %v1150
        %v3071 = vunpack.c.l.b16 %v1151
        %v3072 = vunpack.c.l.b16 %v1152
        %v3073 = vunpack.c.l.b16 %v1153
        %v3074 = vunpack.c.l.b16 %v1154
        %v3075 = vunpack.c.l.b16 %v1155
        %v3076 = vunpack.c.l.b16 %v1156
        %v3077 = vunpack.c.l.b16 %v1157
        %v3078 = vunpack.c.l.b16 %v1158
        %v3079 = vunpack.c.l.b16 %v1159
        %v3080 = vunpack.c.l.b16 %v1160
        %v3081 = vunpack.c.l.b16 %v1161
        %v3082 = vunpack.c.l.b16 %v1162
        %v3083 = vunpack.c.l.b16 %v1163
        %v3084 = vunpack.c.l.b16 %v1164
        %v3085 = vunpack.c.l.b16 %v1165
        %v3086 = vunpack.c.l.b16 %v1166
        %v3087 = vunpack.c.l.b16 %v1167
        %v3088 = vunpack.c.l.b16 %v1168
        %v3089 = vunpack.c.l.b16 %v1169
        %v3090 = vunpack.c.l.b16 %v1170
        %v3091 = vunpack.c.l.b16 %v1171
        %v3092 = vunpack.c.l.b16 %v1172
        %v3093 = vunpack.c.l.b16 %v1173
        %v3094 = vunpack.c.l.b16 %v1174
        %v3095 = vunpack.c.l.b16 %v1175
        %v3096 = vunpack.c.l.b16 %v1176
        %v3097 = vunpack.c.l.b16 %v1177
        %v3098 = vunpack.c.l.b16 %v1178
        %v3099 = vunpack.c.l.b16 %v1179
        %v3100 = vunpack.c.l.b16 %v1180
        %v3101 = vunpack.c.l.b16 %v1181
        %v3102 = vunpack.c.l.b16 %v1182
        %v3103 = vunpack.c.l.b16 %v1183
        %v3104 = vunpack.c.l.b16 %v1184
        %v3105 = vunpack.c.l.b16 %v1185
        %v3106 = vunpack.c.l.b16 %v1186
        %v3107 = vunpack.c.l.b16 %v1187
        %v3108 = vunpack.c.l.b16 %v1188
        %v3109 = vunpack.c.l.b16 %v1189
        %v3110 = vunpack.c.l.b16 %v1190
        %v3111 = vunpack.c.l.b16 %v1191
        %v3112 = vunpack.c.l.b16 %v1192
        %v3113 = vunpack.c.l.b16 %v1193
        %v3114 = vunpack.c.l.b16 %v1194
        %v3115 = vunpack.c.l.b16 %v1195
        %v3116 = vunpack.c.l.b16 %v1196
        %v3117 = vunpack.c.l.b16 %v1197
        %v3118 = vunpack.c.l.b16 %v1198
        %v3119 = vunpack.c.l.b16 %v1199
        %v3120 = vunpack.c.l.b16 %v1200
        %v3121 = vunpack.c.l.b16 %v1201
        %v3122 = vunpack.c.l.b16 %v1202
        %v3123 = vunpack.c.l.b16 %v1203
        %v3124 = vunpack.c.l.b16 %v1204
        %v3125 = vunpack.c.l.b16 %v1205
        %v3126 = vunpack.c.l.b16 %v1206
        %v3127 = vunpack.c.l.b16 %v1207
        %v3128 = vunpack.c.l.b16 %v1208
        %v3129 = vunpack.c.l.b16 %v1209
        %v3130 = vunpack.c.l.b16 %v1210
        %v3131 = vunpack.c.l.b16 %v1211
        %v3132 = vunpack.c.l.b16 %v1212
        %v3133 = vunpack.c.l.b16 %v1213
        %v3134 = vunpack.c.l.b16 %v1214
        %v3135 = vunpack.c.l.b16 %v1215
        %v3136 = vunpack.c.l.b16 %v1216
        %v3137 = vunpack.c.l.b16 %v1217
        %v3138 = vunpack.c.l.b16 %v1218
        %v3139 = vunpack.c.l.b16 %v1219
        %v3140 = vunpack.c.l.b16 %v1220
        %v3141 = vunpack.c.l.b16 %v1221
        %v3142 = vunpack.c.l.b16 %v1222
        %v3143 = vunpack.c.l.b16 %v1223
        %v3144 = vunpack.c.l.b16 %v1224
        %v3145 = vunpack.c.l.b16 %v1225
        %v3146 = vunpack.c.l.b16 %v1226
        %v3147 = vunpack.c.l.b16 %v1227
        %v3148 = vunpack.c.l.b16 %v1228
        %v3149 = vunpack.c.l.b16 %v1229
        %v3150 = vunpack.c.l.b16 %v1230
        %v3151 = vunpack.c.l.b16 %v1231
        %v3152 = vunpack.c.l.b16 %v1232
        %v3153 = vunpack.c.l.b16 %v1233
        %v3154 = vunpack.c.l.b16 %v1234
        %v3155 = vunpack.c.l.b16 %v1235
        %v3156 = vunpack.c.l.b16 %v1236
        %v3157 = vunpack.c.l.b16 %v1237
        %v3158 = vunpack.c.l.b16 %v1238
        %v3159 = vunpack.c.l.b16 %v1239
        %v3160 = vunpack.c.l.b16 %v1240
        %v3161 = vunpack.c.l.b16 %v1241
        %v3162 = vunpack.c.l.b16 %v1242
        %v3163 = vunpack.c.l.b16 %v1243
        %v3164 = vunpack.c.l.b16 %v1244
        %v3165 = vunpack.c.l.b16 %v1245
        %v3166 = vunpack.c.l.b16 %v1246
        %v3167 = vunpack.c.l.b16 %v1247
        %v3168 = vunpack.c.l.b16 %v1248
        %v3169 = vunpack.c.l.b16 %v1249
        %v3170 = vunpack.c.l.b16 %v1250
        %v3171 = vunpack.c.l.b16 %v1251
        %v3172 = vunpack.c.l.b16 %v1252
        %v3173 = vunpack.c.l.b16 %v1253
        %v3174 = vunpack.c.l.b16 %v1254
        %v3175 = vunpack.c.l.b16 %v1255
        %v3176 = vunpack.c.l.b16 %v1256
        %v3177 = vunpack.c.l.b16 %v1257
        %v3178 = vunpack.c.l.b16 %v1258
        %v3179 = vunpack.c.l.b16 %v1259
        %v3180 = vunpack.c.l.b16 %v1260
        %v3181 = vunpack.c.l.b16 %v1261
        %v3182 = vunpack.c.l.b16 %v1262
        %v3183 = vunpack.c.l.b16 %v1263
        %v3184 = vunpack.c.l.b16 %v1264
        %v3185 = vunpack.c.l.b16 %v1265
        %v3186 = vunpack.c.l.b16 %v1266
        %v3187 = vunpack.c.l.b16 %v1267
        %v3188 = vunpack.c.l.b16 %v1268
        %v3189 = vunpack.c.l.b16 %v1269
        %v3190 = vunpack.c.l.b16 %v1270
        %v3191 = vunpack.c.l.b16 %v1271
        %v3192 = vunpack.c.l.b16 %v1272
        %v3193 = vunpack.c.l.b16 %v1273
        %v3194 = vunpack.c.l.b16 %v1274
        %v3195 = vunpack.c.l.b16 %v1275
        %v3196 = vunpack.c.l.b16 %v1276
        %v3197 = vunpack.c.l.b16 %v1277
        %v3198 = vunpack.c.l.b16 %v1278
        %v3199 = vunpack.c.l.b16 %v1279
        %v3200 = vunpack.c.l.b16 %v1280
        %v3201 = vunpack.c.l.b16 %v1281
        %v3202 = vunpack.c.l.b16 %v1282
        %v3203 = vunpack.c.l.b16 %v1283
        %v3204 = vunpack.c.l.b16 %v1284
        %v3205 = vunpack.c.l.b16 %v1285
        %v3206 = vunpack.c.l.b16 %v1286
        %v3207 = vunpack.c.l.b16 %v1287
        %v3208 = vunpack.c.l.b16 %v1288
        %v3209 = vunpack.c.l.b16 %v1289
        %v3210 = vunpack.c.l.b16 %v1290
        %v3211 = vunpack.c.l.b16 %v1291
        %v3212 = vunpack.c.l.b16 %v1292
        %v3213 = vunpack.c.l.b16 %v1293
        %v3214 = vunpack.c.l.b16 %v1294
        %v3215 = vunpack.c.l.b16 %v1295
        %v3216 = vunpack.c.l.b16 %v1296
        %v3217 = vunpack.c.l.b16 %v1297
        %v3218 = vunpack.c.l.b16 %v1298
        %v3219 = vunpack.c.l.b16 %v1299
        %v3220 = vunpack.c.l.b16 %v1300
        %v3221 = vunpack.c.l.b16 %v1301
        %v3222 = vunpack.c.l.b16 %v1302
        %v3223 = vunpack.c.l.b16 %v1303
        %v3224 = vunpack.c.l.b16 %v1304
        %v3225 = vunpack.c.l.b16 %v1305
        %v3226 = vunpack.c.l.b16 %v1306
        %v3227 = vunpack.c.l.b16 %v1307
        %v3228 = vunpack.c.l.b16 %v1308
        %v3229 = vunpack.c.l.b16 %v1309
        %v3230 = vunpack.c.l.b16 %v1310
        %v3231 = vunpack.c.l.b16 %v1311
        %v3232 = vunpack.c.l.b16 %v1312
        %v3233 = vunpack.c.l.b16 %v1313
        %v3234 = vunpack.c.l.b16 %v1314
        %v3235 = vunpack.c.l.b16 %v1315
        %v3236 = vunpack.c.l.b16 %v1316
        %v3237 = vunpack.c.l.b16 %v1317
        %v3238 = vunpack.c.l.b16 %v1318
        %v3239 = vunpack.c.l.b16 %v1319
        %v3240 = vunpack.c.l.b16 %v1320
        %v3241 = vunpack.c.l.b16 %v1321
        %v3242 = vunpack.c.l.b16 %v1322
        %v3243 = vunpack.c.l.b16 %v1323
        %v3244 = vunpack.c.l.b16 %v1324
        %v3245 = vunpack.c.l.b16 %v1325
        %v3246 = vunpack.c.l.b16 %v1326
        %v3247 = vunpack.c.l.b16 %v1327
        %v3248 = vunpack.c.l.b16 %v1328
        %v3249 = vunpack.c.l.b16 %v1329
        %v3250 = vunpack.c.l.b16 %v1330
        %v3251 = vunpack.c.l.b16 %v1331
        %v3252 = vunpack.c.l.b16 %v1332
        %v3253 = vunpack.c.l.b16 %v1333
        %v3254 = vunpack.c.l.b16 %v1334
        %v3255 = vunpack.c.l.b16 %v1335
        %v3256 = vunpack.c.l.b16 %v1336
        %v3257 = vunpack.c.l.b16 %v1337
        %v3258 = vunpack.c.l.b16 %v1338
        %v3259 = vunpack.c.l.b16 %v1339
        %v3260 = vunpack.c.l.b16 %v1340
        %v3261 = vunpack.c.l.b16 %v1341
        %v3262 = vunpack.c.l.b16 %v1342
        %v3263 = vunpack.c.l.b16 %v1343
        %v3264 = vunpack.c.l.b16 %v1344
        %v3265 = vunpack.c.l.b16 %v1345
        %v3266 = vunpack.c.l.b16 %v1346
        %v3267 = vunpack.c.l.b16 %v1347
        %v3268 = vunpack.c.l.b16 %v1348
        %v3269 = vunpack.c.l.b16 %v1349
        %v3270 = vunpack.c.l.b16 %v1350
        %v3271 = vunpack.c.l.b16 %v1351
        %v3272 = vunpack.c.l.b16 %v1352
        %v3273 = vunpack.c.l.b16 %v1353
        %v3274 = vunpack.c.l.b16 %v1354
        %v3275 = vunpack.c.l.b16 %v1355
        %v3276 = vunpack.c.l.b16 %v1356
        %v3277 = vunpack.c.l.b16 %v1357
        %v3278 = vunpack.c.l.b16 %v1358
        %v3279 = vunpack.c.l.b16 %v1359
        %v3280 = vunpack.c.l.b16 %v1360
        %v3281 = vunpack.c.l.b16 %v1361
        %v3282 = vunpack.c.l.b16 %v1362
        %v3283 = vunpack.c.l.b16 %v1363
        %v3284 = vunpack.c.l.b16 %v1364
        %v3285 = vunpack.c.l.b16 %v1365
        %v3286 = vunpack.c.l.b16 %v1366
        %v3287 = vunpack.c.l.b16 %v1367
        %v3288 = vunpack.c.l.b16 %v1368
        %v3289 = vunpack.c.l.b16 %v1369
        %v3290 = vunpack.c.l.b16 %v1370
        %v3291 = vunpack.c.l.b16 %v1371
        %v3292 = vunpack.c.l.b16 %v1372
        %v3293 = vunpack.c.l.b16 %v1373
        %v3294 = vunpack.c.l.b16 %v1374
        %v3295 = vunpack.c.l.b16 %v1375
        %v3296 = vunpack.c.l.b16 %v1376
        %v3297 = vunpack.c.l.b16 %v1377
        %v3298 = vunpack.c.l.b16 %v1378
        %v3299 = vunpack.c.l.b16 %v1379
        %v3300 = vunpack.c.l.b16 %v1380
        %v3301 = vunpack.c.l.b16 %v1381
        %v3302 = vunpack.c.l.b16 %v1382
        %v3303 = vunpack.c.l.b16 %v1383
        %v3304 = vunpack.c.l.b16 %v1384
        %v3305 = vunpack.c.l.b16 %v1385
        %v3306 = vunpack.c.l.b16 %v1386
        %v3307 = vunpack.c.l.b16 %v1387
        %v3308 = vunpack.c.l.b16 %v1388
        %v3309 = vunpack.c.l.b16 %v1389
        %v3310 = vunpack.c.l.b16 %v1390
        %v3311 = vunpack.c.l.b16 %v1391
        %v3312 = vunpack.c.l.b16 %v1392
        %v3313 = vunpack.c.l.b16 %v1393
        %v3314 = vunpack.c.l.b16 %v1394
        %v3315 = vunpack.c.l.b16 %v1395
        %v3316 = vunpack.c.l.b16 %v1396
        %v3317 = vunpack.c.l.b16 %v1397
        %v3318 = vunpack.c.l.b16 %v1398
        %v3319 = vunpack.c.l.b16 %v1399
        %v3320 = vunpack.c.l.b16 %v1400
        %v3321 = vunpack.c.l.b16 %v1401
        %v3322 = vunpack.c.l.b16 %v1402
        %v3323 = vunpack.c.l.b16 %v1403
        %v3324 = vunpack.c.l.b16 %v1404
        %v3325 = vunpack.c.l.b16 %v1405
        %v3326 = vunpack.c.l.b16 %v1406
        %v3327 = vunpack.c.l.b16 %v1407
        %v3328 = vunpack.c.l.b16 %v1408
        %v3329 = vunpack.c.l.b16 %v1409
        %v3330 = vunpack.c.l.b16 %v1410
        %v3331 = vunpack.c.l.b16 %v1411
        %v3332 = vunpack.c.l.b16 %v1412
        %v3333 = vunpack.c.l.b16 %v1413
        %v3334 = vunpack.c.l.b16 %v1414
        %v3335 = vunpack.c.l.b16 %v1415
        %v3336 = vunpack.c.l.b16 %v1416
        %v3337 = vunpack.c.l.b16 %v1417
        %v3338 = vunpack.c.l.b16 %v1418
        %v3339 = vunpack.c.l.b16 %v1419
        %v3340 = vunpack.c.l.b16 %v1420
        %v3341 = vunpack.c.l.b16 %v1421
        %v3342 = vunpack.c.l.b16 %v1422
        %v3343 = vunpack.c.l.b16 %v1423
        %v3344 = vunpack.c.l.b16 %v1424
        %v3345 = vunpack.c.l.b16 %v1425
        %v3346 = vunpack.c.l.b16 %v1426
        %v3347 = vunpack.c.l.b16 %v1427
        %v3348 = vunpack.c.l.b16 %v1428
        %v3349 = vunpack.c.l.b16 %v1429
        %v3350 = vunpack.c.l.b16 %v1430
        %v3351 = vunpack.c.l.b16 %v1431
        %v3352 = vunpack.c.l.b16 %v1432
        %v3353 = vunpack.c.l.b16 %v1433
        %v3354 = vunpack.c.l.b16 %v1434
        %v3355 = vunpack.c.l.b16 %v1435
        %v3356 = vunpack.c.l.b16 %v1436
        %v3357 = vunpack.c.l.b16 %v1437
        %v3358 = vunpack.c.l.b16 %v1438
        %v3359 = vunpack.c.l.b16 %v1439
        %v3360 = vunpack.c.l.b16 %v1440
        %v3361 = vunpack.c.l.b16 %v1441
        %v3362 = vunpack.c.l.b16 %v1442
        %v3363 = vunpack.c.l.b16 %v1443
        %v3364 = vunpack.c.l.b16 %v1444
        %v3365 = vunpack.c.l.b16 %v1445
        %v3366 = vunpack.c.l.b16 %v1446
        %v3367 = vunpack.c.l.b16 %v1447
        %v3368 = vunpack.c.l.b16 %v1448
        %v3369 = vunpack.c.l.b16 %v1449
        %v3370 = vunpack.c.l.b16 %v1450
        %v3371 = vunpack.c.l.b16 %v1451
        %v3372 = vunpack.c.l.b16 %v1452
        %v3373 = vunpack.c.l.b16 %v1453
        %v3374 = vunpack.c.l.b16 %v1454
        %v3375 = vunpack.c.l.b16 %v1455
        %v3376 = vunpack.c.l.b16 %v1456
        %v3377 = vunpack.c.l.b16 %v1457
        %v3378 = vunpack.c.l.b16 %v1458
        %v3379 = vunpack.c.l.b16 %v1459
        %v3380 = vunpack.c.l.b16 %v1460
        %v3381 = vunpack.c.l.b16 %v1461
        %v3382 = vunpack.c.l.b16 %v1462
        %v3383 = vunpack.c.l.b16 %v1463
        %v3384 = vunpack.c.l.b16 %v1464
        %v3385 = vunpack.c.l.b16 %v1465
        %v3386 = vunpack.c.l.b16 %v1466
        %v3387 = vunpack.c.l.b16 %v1467
        %v3388 = vunpack.c.l.b16 %v1468
        %v3389 = vunpack.c.l.b16 %v1469
        %v3390 = vunpack.c.l.b16 %v1470
        %v3391 = vunpack.c.l.b16 %v1471
        %v3392 = vunpack.c.l.b16 %v1472
        %v3393 = vunpack.c.l.b16 %v1473
        %v3394 = vunpack.c.l.b16 %v1474
        %v3395 = vunpack.c.l.b16 %v1475
        %v3396 = vunpack.c.l.b16 %v1476
        %v3397 = vunpack.c.l.b16 %v1477
        %v3398 = vunpack.c.l.b16 %v1478
        %v3399 = vunpack.c.l.b16 %v1479
        %v3400 = vunpack.c.l.b16 %v1480
        %v3401 = vunpack.c.l.b16 %v1481
        %v3402 = vunpack.c.l.b16 %v1482
        %v3403 = vunpack.c.l.b16 %v1483
        %v3404 = vunpack.c.l.b16 %v1484
        %v3405 = vunpack.c.l.b16 %v1485
        %v3406 = vunpack.c.l.b16 %v1486
        %v3407 = vunpack.c.l.b16 %v1487
        %v3408 = vunpack.c.l.b16 %v1488
        %v3409 = vunpack.c.l.b16 %v1489
        %v3410 = vunpack.c.l.b16 %v1490
        %v3411 = vunpack.c.l.b16 %v1491
        %v3412 = vunpack.c.l.b16 %v1492
        %v3413 = vunpack.c.l.b16 %v1493
        %v3414 = vunpack.c.l.b16 %v1494
        %v3415 = vunpack.c.l.b16 %v1495
        %v3416 = vunpack.c.l.b16 %v1496
        %v3417 = vunpack.c.l.b16 %v1497
        %v3418 = vunpack.c.l.b16 %v1498
        %v3419 = vunpack.c.l.b16 %v1499
        %v3420 = vunpack.c.l.b16 %v1500
        %v3421 = vunpack.c.l.b16 %v1501
        %v3422 = vunpack.c.l.b16 %v1502
        %v3423 = vunpack.c.l.b16 %v1503
        %v3424 = vunpack.c.l.b16 %v1504
        %v3425 = vunpack.c.l.b16 %v1505
        %v3426 = vunpack.c.l.b16 %v1506
        %v3427 = vunpack.c.l.b16 %v1507
        %v3428 = vunpack.c.l.b16 %v1508
        %v3429 = vunpack.c.l.b16 %v1509
        %v3430 = vunpack.c.l.b16 %v1510
        %v3431 = vunpack.c.l.b16 %v1511
        %v3432 = vunpack.c.l.b16 %v1512
        %v3433 = vunpack.c.l.b16 %v1513
        %v3434 = vunpack.c.l.b16 %v1514
        %v3435 = vunpack.c.l.b16 %v1515
        %v3436 = vunpack.c.l.b16 %v1516
        %v3437 = vunpack.c.l.b16 %v1517
        %v3438 = vunpack.c.l.b16 %v1518
        %v3439 = vunpack.c.l.b16 %v1519
        %v3440 = vunpack.c.l.b16 %v1520
        %v3441 = vunpack.c.l.b16 %v1521
        %v3442 = vunpack.c.l.b16 %v1522
        %v3443 = vunpack.c.l.b16 %v1523
        %v3444 = vunpack.c.l.b16 %v1524
        %v3445 = vunpack.c.l.b16 %v1525
        %v3446 = vunpack.c.l.b16 %v1526
        %v3447 = vunpack.c.l.b16 %v1527
        %v3448 = vunpack.c.l.b16 %v1528
        %v3449 = vunpack.c.l.b16 %v1529
        %v3450 = vunpack.c.l.b16 %v1530
        %v3451 = vunpack.c.l.b16 %v1531
        %v3452 = vunpack.c.l.b16 %v1532
        %v3453 = vunpack.c.l.b16 %v1533
        %v3454 = vunpack.c.l.b16 %v1534
        %v3455 = vunpack.c.l.b16 %v1535
        %v3456 = vunpack.c.l.b16 %v1536
        %v3457 = vunpack.c.l.b16 %v1537
        %v3458 = vunpack.c.l.b16 %v1538
        %v3459 = vunpack.c.l.b16 %v1539
        %v3460 = vunpack.c.l.b16 %v1540
        %v3461 = vunpack.c.l.b16 %v1541
        %v3462 = vunpack.c.l.b16 %v1542
        %v3463 = vunpack.c.l.b16 %v1543
        %v3464 = vunpack.c.l.b16 %v1544
        %v3465 = vunpack.c.l.b16 %v1545
        %v3466 = vunpack.c.l.b16 %v1546
        %v3467 = vunpack.c.l.b16 %v1547
        %v3468 = vunpack.c.l.b16 %v1548
        %v3469 = vunpack.c.l.b16 %v1549
        %v3470 = vunpack.c.l.b16 %v1550
        %v3471 = vunpack.c.l.b16 %v1551
        %v3472 = vunpack.c.l.b16 %v1552
        %v3473 = vunpack.c.l.b16 %v1553
        %v3474 = vunpack.c.l.b16 %v1554
        %v3475 = vunpack.c.l.b16 %v1555
        %v3476 = vunpack.c.l.b16 %v1556
        %v3477 = vunpack.c.l.b16 %v1557
        %v3478 = vunpack.c.l.b16 %v1558
        %v3479 = vunpack.c.l.b16 %v1559
        %v3480 = vunpack.c.l.b16 %v1560
        %v3481 = vunpack.c.l.b16 %v1561
        %v3482 = vunpack.c.l.b16 %v1562
        %v3483 = vunpack.c.l.b16 %v1563
        %v3484 = vunpack.c.l.b16 %v1564
        %v3485 = vunpack.c.l.b16 %v1565
        %v3486 = vunpack.c.l.b16 %v1566
        %v3487 = vunpack.c.l.b16 %v1567
        %v3488 = vunpack.c.l.b16 %v1568
        %v3489 = vunpack.c.l.b16 %v1569
        %v3490 = vunpack.c.l.b16 %v1570
        %v3491 = vunpack.c.l.b16 %v1571
        %v3492 = vunpack.c.l.b16 %v1572
        %v3493 = vunpack.c.l.b16 %v1573
        %v3494 = vunpack.c.l.b16 %v1574
        %v3495 = vunpack.c.l.b16 %v1575
        %v3496 = vunpack.c.l.b16 %v1576
        %v3497 = vunpack.c.l.b16 %v1577
        %v3498 = vunpack.c.l.b16 %v1578
        %v3499 = vunpack.c.l.b16 %v1579
        %v3500 = vunpack.c.l.b16 %v1580
        %v3501 = vunpack.c.l.b16 %v1581
        %v3502 = vunpack.c.l.b16 %v1582
        %v3503 = vunpack.c.l.b16 %v1583
        %v3504 = vunpack.c.l.b16 %v1584
        %v3505 = vunpack.c.l.b16 %v1585
        %v3506 = vunpack.c.l.b16 %v1586
        %v3507 = vunpack.c.l.b16 %v1587
        %v3508 = vunpack.c.l.b16 %v1588
        %v3509 = vunpack.c.l.b16 %v1589
        %v3510 = vunpack.c.l.b16 %v1590
        %v3511 = vunpack.c.l.b16 %v1591
        %v3512 = vunpack.c.l.b16 %v1592
        %v3513 = vunpack.c.l.b16 %v1593
        %v3514 = vunpack.c.l.b16 %v1594
        %v3515 = vunpack.c.l.b16 %v1595
        %v3516 = vunpack.c.l.b16 %v1596
        %v3517 = vunpack.c.l.b16 %v1597
        %v3518 = vunpack.c.l.b16 %v1598
        %v3519 = vunpack.c.l.b16 %v1599
        %v3520 = vunpack.c.l.b16 %v1600
        %v3521 = vunpack.c.l.b16 %v1601
        %v3522 = vunpack.c.l.b16 %v1602
        %v3523 = vunpack.c.l.b16 %v1603
        %v3524 = vunpack.c.l.b16 %v1604
        %v3525 = vunpack.c.l.b16 %v1605
        %v3526 = vunpack.c.l.b16 %v1606
        %v3527 = vunpack.c.l.b16 %v1607
        %v3528 = vunpack.c.l.b16 %v1608
        %v3529 = vunpack.c.l.b16 %v1609
        %v3530 = vunpack.c.l.b16 %v1610
        %v3531 = vunpack.c.l.b16 %v1611
        %v3532 = vunpack.c.l.b16 %v1612
        %v3533 = vunpack.c.l.b16 %v1613
        %v3534 = vunpack.c.l.b16 %v1614
        %v3535 = vunpack.c.l.b16 %v1615
        %v3536 = vunpack.c.l.b16 %v1616
        %v3537 = vunpack.c.l.b16 %v1617
        %v3538 = vunpack.c.l.b16 %v1618
        %v3539 = vunpack.c.l.b16 %v1619
        %v3540 = vunpack.c.l.b16 %v1620
        %v3541 = vunpack.c.l.b16 %v1621
        %v3542 = vunpack.c.l.b16 %v1622
        %v3543 = vunpack.c.l.b16 %v1623
        %v3544 = vunpack.c.l.b16 %v1624
        %v3545 = vunpack.c.l.b16 %v1625
        %v3546 = vunpack.c.l.b16 %v1626
        %v3547 = vunpack.c.l.b16 %v1627
        %v3548 = vunpack.c.l.b16 %v1628
        %v3549 = vunpack.c.l.b16 %v1629
        %v3550 = vunpack.c.l.b16 %v1630
        %v3551 = vunpack.c.l.b16 %v1631
        %v3552 = vunpack.c.l.b16 %v1632
        %v3553 = vunpack.c.l.b16 %v1633
        %v3554 = vunpack.c.l.b16 %v1634
        %v3555 = vunpack.c.l.b16 %v1635
        %v3556 = vunpack.c.l.b16 %v1636
        %v3557 = vunpack.c.l.b16 %v1637
        %v3558 = vunpack.c.l.b16 %v1638
        %v3559 = vunpack.c.l.b16 %v1639
        %v3560 = vunpack.c.l.b16 %v1640
        %v3561 = vunpack.c.l.b16 %v1641
        %v3562 = vunpack.c.l.b16 %v1642
        %v3563 = vunpack.c.l.b16 %v1643
        %v3564 = vunpack.c.l.b16 %v1644
        %v3565 = vunpack.c.l.b16 %v1645
        %v3566 = vunpack.c.l.b16 %v1646
        %v3567 = vunpack.c.l.b16 %v1647
        %v3568 = vunpack.c.l.b16 %v1648
        %v3569 = vunpack.c.l.b16 %v1649
        %v3570 = vunpack.c.l.b16 %v1650
        %v3571 = vunpack.c.l.b16 %v1651
        %v3572 = vunpack.c.l.b16 %v1652
        %v3573 = vunpack.c.l.b16 %v1653
        %v3574 = vunpack.c.l.b16 %v1654
        %v3575 = vunpack.c.l.b16 %v1655
        %v3576 = vunpack.c.l.b16 %v1656
        %v3577 = vunpack.c.l.b16 %v1657
        %v3578 = vunpack.c.l.b16 %v1658
        %v3579 = vunpack.c.l.b16 %v1659
        %v3580 = vunpack.c.l.b16 %v1660
        %v3581 = vunpack.c.l.b16 %v1661
        %v3582 = vunpack.c.l.b16 %v1662
        %v3583 = vunpack.c.l.b16 %v1663
        %v3584 = vunpack.c.l.b16 %v1664
        %v3585 = vunpack.c.l.b16 %v1665
        %v3586 = vunpack.c.l.b16 %v1666
        %v3587 = vunpack.c.l.b16 %v1667
        %v3588 = vunpack.c.l.b16 %v1668
        %v3589 = vunpack.c.l.b16 %v1669
        %v3590 = vunpack.c.l.b16 %v1670
        %v3591 = vunpack.c.l.b16 %v1671
        %v3592 = vunpack.c.l.b16 %v1672
        %v3593 = vunpack.c.l.b16 %v1673
        %v3594 = vunpack.c.l.b16 %v1674
        %v3595 = vunpack.c.l.b16 %v1675
        %v3596 = vunpack.c.l.b16 %v1676
        %v3597 = vunpack.c.l.b16 %v1677
        %v3598 = vunpack.c.l.b16 %v1678
        %v3599 = vunpack.c.l.b16 %v1679
        %v3600 = vunpack.c.l.b16 %v1680
        %v3601 = vunpack.c.l.b16 %v1681
        %v3602 = vunpack.c.l.b16 %v1682
        %v3603 = vunpack.c.l.b16 %v1683
        %v3604 = vunpack.c.l.b16 %v1684
        %v3605 = vunpack.c.l.b16 %v1685
        %v3606 = vunpack.c.l.b16 %v1686
        %v3607 = vunpack.c.l.b16 %v1687
        %v3608 = vunpack.c.l.b16 %v1688
        %v3609 = vunpack.c.l.b16 %v1689
        %v3610 = vunpack.c.l.b16 %v1690
        %v3611 = vunpack.c.l.b16 %v1691
        %v3612 = vunpack.c.l.b16 %v1692
        %v3613 = vunpack.c.l.b16 %v1693
        %v3614 = vunpack.c.l.b16 %v1694
        %v3615 = vunpack.c.l.b16 %v1695
        %v3616 = vunpack.c.l.b16 %v1696
        %v3617 = vunpack.c.l.b16 %v1697
        %v3618 = vunpack.c.l.b16 %v1698
        %v3619 = vunpack.c.l.b16 %v1699
        %v3620 = vunpack.c.l.b16 %v1700
        %v3621 = vunpack.c.l.b16 %v1701
        %v3622 = vunpack.c.l.b16 %v1702
        %v3623 = vunpack.c.l.b16 %v1703
        %v3624 = vunpack.c.l.b16 %v1704
        %v3625 = vunpack.c.l.b16 %v1705
        %v3626 = vunpack.c.l.b16 %v1706
        %v3627 = vunpack.c.l.b16 %v1707
        %v3628 = vunpack.c.l.b16 %v1708
        %v3629 = vunpack.c.l.b16 %v1709
        %v3630 = vunpack.c.l.b16 %v1710
        %v3631 = vunpack.c.l.b16 %v1711
        %v3632 = vunpack.c.l.b16 %v1712
        %v3633 = vunpack.c.l.b16 %v1713
        %v3634 = vunpack.c.l.b16 %v1714
        %v3635 = vunpack.c.l.b16 %v1715
        %v3636 = vunpack.c.l.b16 %v1716
        %v3637 = vunpack.c.l.b16 %v1717
        %v3638 = vunpack.c.l.b16 %v1718
        %v3639 = vunpack.c.l.b16 %v1719
        %v3640 = vunpack.c.l.b16 %v1720
        %v3641 = vunpack.c.l.b16 %v1721
        %v3642 = vunpack.c.l.b16 %v1722
        %v3643 = vunpack.c.l.b16 %v1723
        %v3644 = vunpack.c.l.b16 %v1724
        %v3645 = vunpack.c.l.b16 %v1725
        %v3646 = vunpack.c.l.b16 %v1726
        %v3647 = vunpack.c.l.b16 %v1727
        %v3648 = vunpack.c.l.b16 %v1728
        %v3649 = vunpack.c.l.b16 %v1729
        %v3650 = vunpack.c.l.b16 %v1730
        %v3651 = vunpack.c.l.b16 %v1731
        %v3652 = vunpack.c.l.b16 %v1732
        %v3653 = vunpack.c.l.b16 %v1733
        %v3654 = vunpack.c.l.b16 %v1734
        %v3655 = vunpack.c.l.b16 %v1735
        %v3656 = vunpack.c.l.b16 %v1736
        %v3657 = vunpack.c.l.b16 %v1737
        %v3658 = vunpack.c.l.b16 %v1738
        %v3659 = vunpack.c.l.b16 %v1739
        %v3660 = vunpack.c.l.b16 %v1740
        %v3661 = vunpack.c.l.b16 %v1741
        %v3662 = vunpack.c.l.b16 %v1742
        %v3663 = vunpack.c.l.b16 %v1743
        %v3664 = vunpack.c.l.b16 %v1744
        %v3665 = vunpack.c.l.b16 %v1745
        %v3666 = vunpack.c.l.b16 %v1746
        %v3667 = vunpack.c.l.b16 %v1747
        %v3668 = vunpack.c.l.b16 %v1748
        %v3669 = vunpack.c.l.b16 %v1749
        %v3670 = vunpack.c.l.b16 %v1750
        %v3671 = vunpack.c.l.b16 %v1751
        %v3672 = vunpack.c.l.b16 %v1752
        %v3673 = vunpack.c.l.b16 %v1753
        %v3674 = vunpack.c.l.b16 %v1754
        %v3675 = vunpack.c.l.b16 %v1755
        %v3676 = vunpack.c.l.b16 %v1756
        %v3677 = vunpack.c.l.b16 %v1757
        %v3678 = vunpack.c.l.b16 %v1758
        %v3679 = vunpack.c.l.b16 %v1759
        %v3680 = vunpack.c.l.b16 %v1760
        %v3681 = vunpack.c.l.b16 %v1761
        %v3682 = vunpack.c.l.b16 %v1762
        %v3683 = vunpack.c.l.b16 %v1763
        %v3684 = vunpack.c.l.b16 %v1764
        %v3685 = vunpack.c.l.b16 %v1765
        %v3686 = vunpack.c.l.b16 %v1766
        %v3687 = vunpack.c.l.b16 %v1767
        %v3688 = vunpack.c.l.b16 %v1768
        %v3689 = vunpack.c.l.b16 %v1769
        %v3690 = vunpack.c.l.b16 %v1770
        %v3691 = vunpack.c.l.b16 %v1771
        %v3692 = vunpack.c.l.b16 %v1772
        %v3693 = vunpack.c.l.b16 %v1773
        %v3694 = vunpack.c.l.b16 %v1774
        %v3695 = vunpack.c.l.b16 %v1775
        %v3696 = vunpack.c.l.b16 %v1776
        %v3697 = vunpack.c.l.b16 %v1777
        %v3698 = vunpack.c.l.b16 %v1778
        %v3699 = vunpack.c.l.b16 %v1779
        %v3700 = vunpack.c.l.b16 %v1780
        %v3701 = vunpack.c.l.b16 %v1781
        %v3702 = vunpack.c.l.b16 %v1782
        %v3703 = vunpack.c.l.b16 %v1783
        %v3704 = vunpack.c.l.b16 %v1784
        %v3705 = vunpack.c.l.b16 %v1785
        %v3706 = vunpack.c.l.b16 %v1786
        %v3707 = vunpack.c.l.b16 %v1787
        %v3708 = vunpack.c.l.b16 %v1788
        %v3709 = vunpack.c.l.b16 %v1789
        %v3710 = vunpack.c.l.b16 %v1790
        %v3711 = vunpack.c.l.b16 %v1791
        %v3712 = vunpack.c.l.b16 %v1792
        %v3713 = vunpack.c.l.b16 %v1793
        %v3714 = vunpack.c.l.b16 %v1794
        %v3715 = vunpack.c.l.b16 %v1795
        %v3716 = vunpack.c.l.b16 %v1796
        %v3717 = vunpack.c.l.b16 %v1797
        %v3718 = vunpack.c.l.b16 %v1798
        %v3719 = vunpack.c.l.b16 %v1799
        %v3720 = vunpack.c.l.b16 %v1800
        %v3721 = vunpack.c.l.b16 %v1801
        %v3722 = vunpack.c.l.b16 %v1802
        %v3723 = vunpack.c.l.b16 %v1803
        %v3724 = vunpack.c.l.b16 %v1804
        %v3725 = vunpack.c.l.b16 %v1805
        %v3726 = vunpack.c.l.b16 %v1806
        %v3727 = vunpack.c.l.b16 %v1807
        %v3728 = vunpack.c.l.b16 %v1808
        %v3729 = vunpack.c.l.b16 %v1809
        %v3730 = vunpack.c.l.b16 %v1810
        %v3731 = vunpack.c.l.b16 %v1811
        %v3732 = vunpack.c.l.b16 %v1812
        %v3733 = vunpack.c.l.b16 %v1813
        %v3734 = vunpack.c.l.b16 %v1814
        %v3735 = vunpack.c.l.b16 %v1815
        %v3736 = vunpack.c.l.b16 %v1816
        %v3737 = vunpack.c.l.b16 %v1817
        %v3738 = vunpack.c.l.b16 %v1818
        %v3739 = vunpack.c.l.b16 %v1819
        %v3740 = vunpack.c.l.b16 %v1820
        %v3741 = vunpack.c.l.b16 %v1821
        %v3742 = vunpack.c.l.b16 %v1822
        %v3743 = vunpack.c.l.b16 %v1823
        %v3744 = vunpack.c.l.b16 %v1824
        %v3745 = vunpack.c.l.b16 %v1825
        %v3746 = vunpack.c.l.b16 %v1826
        %v3747 = vunpack.c.l.b16 %v1827
        %v3748 = vpack.c.b16 %v2789, %v2788
        %v3749 = vpack.c.b16 %v2791, %v2790
        %v3750 = vpack.c.b16 %v2793, %v2792
        %v3751 = vpack.c.b16 %v2795, %v2794
        %v3752 = vpack.c.b16 %v2797, %v2796
        %v3753 = vpack.c.b16 %v2799, %v2798
        %v3754 = vpack.c.b16 %v2801, %v2800
        %v3755 = vpack.c.b16 %v2803, %v2802
        %v3756 = vpack.c.b16 %v2805, %v2804
        %v3757 = vpack.c.b16 %v2807, %v2806
        %v3758 = vpack.c.b16 %v2809, %v2808
        %v3759 = vpack.c.b16 %v2811, %v2810
        %v3760 = vpack.c.b16 %v2813, %v2812
        %v3761 = vpack.c.b16 %v2815, %v2814
        %v3762 = vpack.c.b16 %v2817, %v2816
        %v3763 = vpack.c.b16 %v2819, %v2818
        %v3764 = vpack.c.b16 %v2821, %v2820
        %v3765 = vpack.c.b16 %v2823, %v2822
        %v3766 = vpack.c.b16 %v2825, %v2824
        %v3767 = vpack.c.b16 %v2827, %v2826
        %v3768 = vpack.c.b16 %v2829, %v2828
        %v3769 = vpack.c.b16 %v2831, %v2830
        %v3770 = vpack.c.b16 %v2833, %v2832
        %v3771 = vpack.c.b16 %v2835, %v2834
        %v3772 = vpack.c.b16 %v2837, %v2836
        %v3773 = vpack.c.b16 %v2839, %v2838
        %v3774 = vpack.c.b16 %v2841, %v2840
        %v3775 = vpack.c.b16 %v2843, %v2842
        %v3776 = vpack.c.b16 %v2845, %v2844
        %v3777 = vpack.c.b16 %v2847, %v2846
        %v3778 = vpack.c.b16 %v2849, %v2848
        %v3779 = vpack.c.b16 %v2851, %v2850
        %v3780 = vpack.c.b16 %v2853, %v2852
        %v3781 = vpack.c.b16 %v2855, %v2854
        %v3782 = vpack.c.b16 %v2857, %v2856
        %v3783 = vpack.c.b16 %v2859, %v2858
        %v3784 = vpack.c.b16 %v2861, %v2860
        %v3785 = vpack.c.b16 %v2863, %v2862
        %v3786 = vpack.c.b16 %v2865, %v2864
        %v3787 = vpack.c.b16 %v2867, %v2866
        %v3788 = vpack.c.b16 %v2869, %v2868
        %v3789 = vpack.c.b16 %v2871, %v2870
        %v3790 = vpack.c.b16 %v2873, %v2872
        %v3791 = vpack.c.b16 %v2875, %v2874
        %v3792 = vpack.c.b16 %v2877, %v2876
        %v3793 = vpack.c.b16 %v2879, %v2878
        %v3794 = vpack.c.b16 %v2881, %v2880
        %v3795 = vpack.c.b16 %v2883, %v2882
        %v3796 = vpack.c.b16 %v2885, %v2884
        %v3797 = vpack.c.b16 %v2887, %v2886
        %v3798 = vpack.c.b16 %v2889, %v2888
        %v3799 = vpack.c.b16 %v2891, %v2890
        %v3800 = vpack.c.b16 %v2893, %v2892
        %v3801 = vpack.c.b16 %v2895, %v2894
        %v3802 = vpack.c.b16 %v2897, %v2896
        %v3803 = vpack.c.b16 %v2899, %v2898
        %v3804 = vpack.c.b16 %v2901, %v2900
        %v3805 = vpack.c.b16 %v2903, %v2902
        %v3806 = vpack.c.b16 %v2905, %v2904
        %v3807 = vpack.c.b16 %v2907, %v2906
        %v3808 = vpack.c.b16 %v2909, %v2908
        %v3809 = vpack.c.b16 %v2911, %v2910
        %v3810 = vpack.c.b16 %v2913, %v2912
        %v3811 = vpack.c.b16 %v2915, %v2914
        %v3812 = vpack.c.b16 %v2917, %v2916
        %v3813 = vpack.c.b16 %v2919, %v2918
        %v3814 = vpack.c.b16 %v2921, %v2920
        %v3815 = vpack.c.b16 %v2923, %v2922
        %v3816 = vpack.c.b16 %v2925, %v2924
        %v3817 = vpack.c.b16 %v2927, %v2926
        %v3818 = vpack.c.b16 %v2929, %v2928
        %v3819 = vpack.c.b16 %v2931, %v2930
        %v3820 = vpack.c.b16 %v2933, %v2932
        %v3821 = vpack.c.b16 %v2935, %v2934
        %v3822 = vpack.c.b16 %v2937, %v2936
        %v3823 = vpack.c.b16 %v2939, %v2938
        %v3824 = vpack.c.b16 %v2941, %v2940
        %v3825 = vpack.c.b16 %v2943, %v2942
        %v3826 = vpack.c.b16 %v2945, %v2944
        %v3827 = vpack.c.b16 %v2947, %v2946
        %v3828 = vpack.c.b16 %v2949, %v2948
        %v3829 = vpack.c.b16 %v2951, %v2950
        %v3830 = vpack.c.b16 %v2953, %v2952
        %v3831 = vpack.c.b16 %v2955, %v2954
        %v3832 = vpack.c.b16 %v2957, %v2956
        %v3833 = vpack.c.b16 %v2959, %v2958
        %v3834 = vpack.c.b16 %v2961, %v2960
        %v3835 = vpack.c.b16 %v2963, %v2962
        %v3836 = vpack.c.b16 %v2965, %v2964
        %v3837 = vpack.c.b16 %v2967, %v2966
        %v3838 = vpack.c.b16 %v2969, %v2968
        %v3839 = vpack.c.b16 %v2971, %v2970
        %v3840 = vpack.c.b16 %v2973, %v2972
        %v3841 = vpack.c.b16 %v2975, %v2974
        %v3842 = vpack.c.b16 %v2977, %v2976
        %v3843 = vpack.c.b16 %v2979, %v2978
        %v3844 = vpack.c.b16 %v2981, %v2980
        %v3845 = vpack.c.b16 %v2983, %v2982
        %v3846 = vpack.c.b16 %v2985, %v2984
        %v3847 = vpack.c.b16 %v2987, %v2986
        %v3848 = vpack.c.b16 %v2989, %v2988
        %v3849 = vpack.c.b16 %v2991, %v2990
        %v3850 = vpack.c.b16 %v2993, %v2992
        %v3851 = vpack.c.b16 %v2995, %v2994
        %v3852 = vpack.c.b16 %v2997, %v2996
        %v3853 = vpack.c.b16 %v2999, %v2998
        %v3854 = vpack.c.b16 %v3001, %v3000
        %v3855 = vpack.c.b16 %v3003, %v3002
        %v3856 = vpack.c.b16 %v3005, %v3004
        %v3857 = vpack.c.b16 %v3007, %v3006
        %v3858 = vpack.c.b16 %v3009, %v3008
        %v3859 = vpack.c.b16 %v3011, %v3010
        %v3860 = vpack.c.b16 %v3013, %v3012
        %v3861 = vpack.c.b16 %v3015, %v3014
        %v3862 = vpack.c.b16 %v3017, %v3016
        %v3863 = vpack.c.b16 %v3019, %v3018
        %v3864 = vpack.c.b16 %v3021, %v3020
        %v3865 = vpack.c.b16 %v3023, %v3022
        %v3866 = vpack.c.b16 %v3025, %v3024
        %v3867 = vpack.c.b16 %v3027, %v3026
        %v3868 = vpack.c.b16 %v3029, %v3028
        %v3869 = vpack.c.b16 %v3031, %v3030
        %v3870 = vpack.c.b16 %v3033, %v3032
        %v3871 = vpack.c.b16 %v3035, %v3034
        %v3872 = vpack.c.b16 %v3037, %v3036
        %v3873 = vpack.c.b16 %v3039, %v3038
        %v3874 = vpack.c.b16 %v3041, %v3040
        %v3875 = vpack.c.b16 %v3043, %v3042
        %v3876 = vpack.c.b16 %v3045, %v3044
        %v3877 = vpack.c.b16 %v3047, %v3046
        %v3878 = vpack.c.b16 %v3049, %v3048
        %v3879 = vpack.c.b16 %v3051, %v3050
        %v3880 = vpack.c.b16 %v3053, %v3052
        %v3881 = vpack.c.b16 %v3055, %v3054
        %v3882 = vpack.c.b16 %v3057, %v3056
        %v3883 = vpack.c.b16 %v3059, %v3058
        %v3884 = vpack.c.b16 %v3061, %v3060
        %v3885 = vpack.c.b16 %v3063, %v3062
        %v3886 = vpack.c.b16 %v3065, %v3064
        %v3887 = vpack.c.b16 %v3067, %v3066
        %v3888 = vpack.c.b16 %v3069, %v3068
        %v3889 = vpack.c.b16 %v3071, %v3070
        %v3890 = vpack.c.b16 %v3073, %v3072
        %v3891 = vpack.c.b16 %v3075, %v3074
        %v3892 = vpack.c.b16 %v3077, %v3076
        %v3893 = vpack.c.b16 %v3079, %v3078
        %v3894 = vpack.c.b16 %v3081, %v3080
        %v3895 = vpack.c.b16 %v3083, %v3082
        %v3896 = vpack.c.b16 %v3085, %v3084
        %v3897 = vpack.c.b16 %v3087, %v3086
        %v3898 = vpack.c.b16 %v3089, %v3088
        %v3899 = vpack.c.b16 %v3091, %v3090
        %v3900 = vpack.c.b16 %v3093, %v3092
        %v3901 = vpack.c.b16 %v3095, %v3094
        %v3902 = vpack.c.b16 %v3097, %v3096
        %v3903 = vpack.c.b16 %v3099, %v3098
        %v3904 = vpack.c.b16 %v3101, %v3100
        %v3905 = vpack.c.b16 %v3103, %v3102
        %v3906 = vpack.c.b16 %v3105, %v3104
        %v3907 = vpack.c.b16 %v3107, %v3106
        %v3908 = vpack.c.b16 %v3109, %v3108
        %v3909 = vpack.c.b16 %v3111, %v3110
        %v3910 = vpack.c.b16 %v3113, %v3112
        %v3911 = vpack.c.b16 %v3115, %v3114
        %v3912 = vpack.c.b16 %v3117, %v3116
        %v3913 = vpack.c.b16 %v3119, %v3118
        %v3914 = vpack.c.b16 %v3121, %v3120
        %v3915 = vpack.c.b16 %v3123, %v3122
        %v3916 = vpack.c.b16 %v3125, %v3124
        %v3917 = vpack.c.b16 %v3127, %v3126
        %v3918 = vpack.c.b16 %v3129, %v3128
        %v3919 = vpack.c.b16 %v3131, %v3130
        %v3920 = vpack.c.b16 %v3133, %v3132
        %v3921 = vpack.c.b16 %v3135, %v3134
        %v3922 = vpack.c.b16 %v3137, %v3136
        %v3923 = vpack.c.b16 %v3139, %v3138
        %v3924 = vpack.c.b16 %v3141, %v3140
        %v3925 = vpack.c.b16 %v3143, %v3142
        %v3926 = vpack.c.b16 %v3145, %v3144
        %v3927 = vpack.c.b16 %v3147, %v3146
        %v3928 = vpack.c.b16 %v3149, %v3148
        %v3929 = vpack.c.b16 %v3151, %v3150
        %v3930 = vpack.c.b16 %v3153, %v3152
        %v3931 = vpack.c.b16 %v3155, %v3154
        %v3932 = vpack.c.b16 %v3157, %v3156
        %v3933 = vpack.c.b16 %v3159, %v3158
        %v3934 = vpack.c.b16 %v3161, %v3160
        %v3935 = vpack.c.b16 %v3163, %v3162
        %v3936 = vpack.c.b16 %v3165, %v3164
        %v3937 = vpack.c.b16 %v3167, %v3166
        %v3938 = vpack.c.b16 %v3169, %v3168
        %v3939 = vpack.c.b16 %v3171, %v3170
        %v3940 = vpack.c.b16 %v3173, %v3172
        %v3941 = vpack.c.b16 %v3175, %v3174
        %v3942 = vpack.c.b16 %v3177, %v3176
        %v3943 = vpack.c.b16 %v3179, %v3178
        %v3944 = vpack.c.b16 %v3181, %v3180
        %v3945 = vpack.c.b16 %v3183, %v3182
        %v3946 = vpack.c.b16 %v3185, %v3184
        %v3947 = vpack.c.b16 %v3187, %v3186
        %v3948 = vpack.c.b16 %v3189, %v3188
        %v3949 = vpack.c.b16 %v3191, %v3190
        %v3950 = vpack.c.b16 %v3193, %v3192
        %v3951 = vpack.c.b16 %v3195, %v3194
        %v3952 = vpack.c.b16 %v3197, %v3196
        %v3953 = vpack.c.b16 %v3199, %v3198
        %v3954 = vpack.c.b16 %v3201, %v3200
        %v3955 = vpack.c.b16 %v3203, %v3202
        %v3956 = vpack.c.b16 %v3205, %v3204
        %v3957 = vpack.c.b16 %v3207, %v3206
        %v3958 = vpack.c.b16 %v3209, %v3208
        %v3959 = vpack.c.b16 %v3211, %v3210
        %v3960 = vpack.c.b16 %v3213, %v3212
        %v3961 = vpack.c.b16 %v3215, %v3214
        %v3962 = vpack.c.b16 %v3217, %v3216
        %v3963 = vpack.c.b16 %v3219, %v3218
        %v3964 = vpack.c.b16 %v3221, %v3220
        %v3965 = vpack.c.b16 %v3223, %v3222
        %v3966 = vpack.c.b16 %v3225, %v3224
        %v3967 = vpack.c.b16 %v3227, %v3226
        %v3968 = vpack.c.b16 %v3229, %v3228
        %v3969 = vpack.c.b16 %v3231, %v3230
        %v3970 = vpack.c.b16 %v3233, %v3232
        %v3971 = vpack.c.b16 %v3235, %v3234
        %v3972 = vpack.c.b16 %v3237, %v3236
        %v3973 = vpack.c.b16 %v3239, %v3238
        %v3974 = vpack.c.b16 %v3241, %v3240
        %v3975 = vpack.c.b16 %v3243, %v3242
        %v3976 = vpack.c.b16 %v3245, %v3244
        %v3977 = vpack.c.b16 %v3247, %v3246
        %v3978 = vpack.c.b16 %v3249, %v3248
        %v3979 = vpack.c.b16 %v3251, %v3250
        %v3980 = vpack.c.b16 %v3253, %v3252
        %v3981 = vpack.c.b16 %v3255, %v3254
        %v3982 = vpack.c.b16 %v3257, %v3256
        %v3983 = vpack.c.b16 %v3259, %v3258
        %v3984 = vpack.c.b16 %v3261, %v3260
        %v3985 = vpack.c.b16 %v3263, %v3262
        %v3986 = vpack.c.b16 %v3265, %v3264
        %v3987 = vpack.c.b16 %v3267, %v3266
        %v3988 = vpack.c.b16 %v3269, %v3268
        %v3989 = vpack.c.b16 %v3271, %v3270
        %v3990 = vpack.c.b16 %v3273, %v3272
        %v3991 = vpack.c.b16 %v3275, %v3274
        %v3992 = vpack.c.b16 %v3277, %v3276
        %v3993 = vpack.c.b16 %v3279, %v3278
        %v3994 = vpack.c.b16 %v3281, %v3280
        %v3995 = vpack.c.b16 %v3283, %v3282
        %v3996 = vpack.c.b16 %v3285, %v3284
        %v3997 = vpack.c.b16 %v3287, %v3286
        %v3998 = vpack.c.b16 %v3289, %v3288
        %v3999 = vpack.c.b16 %v3291, %v3290
        %v4000 = vpack.c.b16 %v3293, %v3292
        %v4001 = vpack.c.b16 %v3295, %v3294
        %v4002 = vpack.c.b16 %v3297, %v3296
        %v4003 = vpack.c.b16 %v3299, %v3298
        %v4004 = vpack.c.b16 %v3301, %v3300
        %v4005 = vpack.c.b16 %v3303, %v3302
        %v4006 = vpack.c.b16 %v3305, %v3304
        %v4007 = vpack.c.b16 %v3307, %v3306
        %v4008 = vpack.c.b16 %v3309, %v3308
        %v4009 = vpack.c.b16 %v3311, %v3310
        %v4010 = vpack.c.b16 %v3313, %v3312
        %v4011 = vpack.c.b16 %v3315, %v3314
        %v4012 = vpack.c.b16 %v3317, %v3316
        %v4013 = vpack.c.b16 %v3319, %v3318
        %v4014 = vpack.c.b16 %v3321, %v3320
        %v4015 = vpack.c.b16 %v3323, %v3322
        %v4016 = vpack.c.b16 %v3325, %v3324
        %v4017 = vpack.c.b16 %v3327, %v3326
        %v4018 = vpack.c.b16 %v3329, %v3328
        %v4019 = vpack.c.b16 %v3331, %v3330
        %v4020 = vpack.c.b16 %v3333, %v3332
        %v4021 = vpack.c.b16 %v3335, %v3334
        %v4022 = vpack.c.b16 %v3337, %v3336
        %v4023 = vpack.c.b16 %v3339, %v3338
        %v4024 = vpack.c.b16 %v3341, %v3340
        %v4025 = vpack.c.b16 %v3343, %v3342
        %v4026 = vpack.c.b16 %v3345, %v3344
        %v4027 = vpack.c.b16 %v3347, %v3346
        %v4028 = vpack.c.b16 %v3349, %v3348
        %v4029 = vpack.c.b16 %v3351, %v3350
        %v4030 = vpack.c.b16 %v3353, %v3352
        %v4031 = vpack.c.b16 %v3355, %v3354
        %v4032 = vpack.c.b16 %v3357, %v3356
        %v4033 = vpack.c.b16 %v3359, %v3358
        %v4034 = vpack.c.b16 %v3361, %v3360
        %v4035 = vpack.c.b16 %v3363, %v3362
        %v4036 = vpack.c.b16 %v3365, %v3364
        %v4037 = vpack.c.b16 %v3367, %v3366
        %v4038 = vpack.c.b16 %v3369, %v3368
        %v4039 = vpack.c.b16 %v3371, %v3370
        %v4040 = vpack.c.b16 %v3373, %v3372
        %v4041 = vpack.c.b16 %v3375, %v3374
        %v4042 = vpack.c.b16 %v3377, %v3376
        %v4043 = vpack.c.b16 %v3379, %v3378
        %v4044 = vpack.c.b16 %v3381, %v3380
        %v4045 = vpack.c.b16 %v3383, %v3382
        %v4046 = vpack.c.b16 %v3385, %v3384
        %v4047 = vpack.c.b16 %v3387, %v3386
        %v4048 = vpack.c.b16 %v3389, %v3388
        %v4049 = vpack.c.b16 %v3391, %v3390
        %v4050 = vpack.c.b16 %v3393, %v3392
        %v4051 = vpack.c.b16 %v3395, %v3394
        %v4052 = vpack.c.b16 %v3397, %v3396
        %v4053 = vpack.c.b16 %v3399, %v3398
        %v4054 = vpack.c.b16 %v3401, %v3400
        %v4055 = vpack.c.b16 %v3403, %v3402
        %v4056 = vpack.c.b16 %v3405, %v3404
        %v4057 = vpack.c.b16 %v3407, %v3406
        %v4058 = vpack.c.b16 %v3409, %v3408
        %v4059 = vpack.c.b16 %v3411, %v3410
        %v4060 = vpack.c.b16 %v3413, %v3412
        %v4061 = vpack.c.b16 %v3415, %v3414
        %v4062 = vpack.c.b16 %v3417, %v3416
        %v4063 = vpack.c.b16 %v3419, %v3418
        %v4064 = vpack.c.b16 %v3421, %v3420
        %v4065 = vpack.c.b16 %v3423, %v3422
        %v4066 = vpack.c.b16 %v3425, %v3424
        %v4067 = vpack.c.b16 %v3427, %v3426
        %v4068 = vpack.c.b16 %v3429, %v3428
        %v4069 = vpack.c.b16 %v3431, %v3430
        %v4070 = vpack.c.b16 %v3433, %v3432
        %v4071 = vpack.c.b16 %v3435, %v3434
        %v4072 = vpack.c.b16 %v3437, %v3436
        %v4073 = vpack.c.b16 %v3439, %v3438
        %v4074 = vpack.c.b16 %v3441, %v3440
        %v4075 = vpack.c.b16 %v3443, %v3442
        %v4076 = vpack.c.b16 %v3445, %v3444
        %v4077 = vpack.c.b16 %v3447, %v3446
        %v4078 = vpack.c.b16 %v3449, %v3448
        %v4079 = vpack.c.b16 %v3451, %v3450
        %v4080 = vpack.c.b16 %v3453, %v3452
        %v4081 = vpack.c.b16 %v3455, %v3454
        %v4082 = vpack.c.b16 %v3457, %v3456
        %v4083 = vpack.c.b16 %v3459, %v3458
        %v4084 = vpack.c.b16 %v3461, %v3460
        %v4085 = vpack.c.b16 %v3463, %v3462
        %v4086 = vpack.c.b16 %v3465, %v3464
        %v4087 = vpack.c.b16 %v3467, %v3466
        %v4088 = vpack.c.b16 %v3469, %v3468
        %v4089 = vpack.c.b16 %v3471, %v3470
        %v4090 = vpack.c.b16 %v3473, %v3472
        %v4091 = vpack.c.b16 %v3475, %v3474
        %v4092 = vpack.c.b16 %v3477, %v3476
        %v4093 = vpack.c.b16 %v3479, %v3478
        %v4094 = vpack.c.b16 %v3481, %v3480
        %v4095 = vpack.c.b16 %v3483, %v3482
        %v4096 = vpack.c.b16 %v3485, %v3484
        %v4097 = vpack.c.b16 %v3487, %v3486
        %v4098 = vpack.c.b16 %v3489, %v3488
        %v4099 = vpack.c.b16 %v3491, %v3490
        %v4100 = vpack.c.b16 %v3493, %v3492
        %v4101 = vpack.c.b16 %v3495, %v3494
        %v4102 = vpack.c.b16 %v3497, %v3496
        %v4103 = vpack.c.b16 %v3499, %v3498
        %v4104 = vpack.c.b16 %v3501, %v3500
        %v4105 = vpack.c.b16 %v3503, %v3502
        %v4106 = vpack.c.b16 %v3505, %v3504
        %v4107 = vpack.c.b16 %v3507, %v3506
        %v4108 = vpack.c.b16 %v3509, %v3508
        %v4109 = vpack.c.b16 %v3511, %v3510
        %v4110 = vpack.c.b16 %v3513, %v3512
        %v4111 = vpack.c.b16 %v3515, %v3514
        %v4112 = vpack.c.b16 %v3517, %v3516
        %v4113 = vpack.c.b16 %v3519, %v3518
        %v4114 = vpack.c.b16 %v3521, %v3520
        %v4115 = vpack.c.b16 %v3523, %v3522
        %v4116 = vpack.c.b16 %v3525, %v3524
        %v4117 = vpack.c.b16 %v3527, %v3526
        %v4118 = vpack.c.b16 %v3529, %v3528
        %v4119 = vpack.c.b16 %v3531, %v3530
        %v4120 = vpack.c.b16 %v3533, %v3532
        %v4121 = vpack.c.b16 %v3535, %v3534
        %v4122 = vpack.c.b16 %v3537, %v3536
        %v4123 = vpack.c.b16 %v3539, %v3538
        %v4124 = vpack.c.b16 %v3541, %v3540
        %v4125 = vpack.c.b16 %v3543, %v3542
        %v4126 = vpack.c.b16 %v3545, %v3544
        %v4127 = vpack.c.b16 %v3547, %v3546
        %v4128 = vpack.c.b16 %v3549, %v3548
        %v4129 = vpack.c.b16 %v3551, %v3550
        %v4130 = vpack.c.b16 %v3553, %v3552
        %v4131 = vpack.c.b16 %v3555, %v3554
        %v4132 = vpack.c.b16 %v3557, %v3556
        %v4133 = vpack.c.b16 %v3559, %v3558
        %v4134 = vpack.c.b16 %v3561, %v3560
        %v4135 = vpack.c.b16 %v3563, %v3562
        %v4136 = vpack.c.b16 %v3565, %v3564
        %v4137 = vpack.c.b16 %v3567, %v3566
        %v4138 = vpack.c.b16 %v3569, %v3568
        %v4139 = vpack.c.b16 %v3571, %v3570
        %v4140 = vpack.c.b16 %v3573, %v3572
        %v4141 = vpack.c.b16 %v3575, %v3574
        %v4142 = vpack.c.b16 %v3577, %v3576
        %v4143 = vpack.c.b16 %v3579, %v3578
        %v4144 = vpack.c.b16 %v3581, %v3580
        %v4145 = vpack.c.b16 %v3583, %v3582
        %v4146 = vpack.c.b16 %v3585, %v3584
        %v4147 = vpack.c.b16 %v3587, %v3586
        %v4148 = vpack.c.b16 %v3589, %v3588
        %v4149 = vpack.c.b16 %v3591, %v3590
        %v4150 = vpack.c.b16 %v3593, %v3592
        %v4151 = vpack.c.b16 %v3595, %v3594
        %v4152 = vpack.c.b16 %v3597, %v3596
        %v4153 = vpack.c.b16 %v3599, %v3598
        %v4154 = vpack.c.b16 %v3601, %v3600
        %v4155 = vpack.c.b16 %v3603, %v3602
        %v4156 = vpack.c.b16 %v3605, %v3604
        %v4157 = vpack.c.b16 %v3607, %v3606
        %v4158 = vpack.c.b16 %v3609, %v3608
        %v4159 = vpack.c.b16 %v3611, %v3610
        %v4160 = vpack.c.b16 %v3613, %v3612
        %v4161 = vpack.c.b16 %v3615, %v3614
        %v4162 = vpack.c.b16 %v3617, %v3616
        %v4163 = vpack.c.b16 %v3619, %v3618
        %v4164 = vpack.c.b16 %v3621, %v3620
        %v4165 = vpack.c.b16 %v3623, %v3622
        %v4166 = vpack.c.b16 %v3625, %v3624
        %v4167 = vpack.c.b16 %v3627, %v3626
        %v4168 = vpack.c.b16 %v3629, %v3628
        %v4169 = vpack.c.b16 %v3631, %v3630
        %v4170 = vpack.c.b16 %v3633, %v3632
        %v4171 = vpack.c.b16 %v3635, %v3634
        %v4172 = vpack.c.b16 %v3637, %v3636
        %v4173 = vpack.c.b16 %v3639, %v3638
        %v4174 = vpack.c.b16 %v3641, %v3640
        %v4175 = vpack.c.b16 %v3643, %v3642
        %v4176 = vpack.c.b16 %v3645, %v3644
        %v4177 = vpack.c.b16 %v3647, %v3646
        %v4178 = vpack.c.b16 %v3649, %v3648
        %v4179 = vpack.c.b16 %v3651, %v3650
        %v4180 = vpack.c.b16 %v3653, %v3652
        %v4181 = vpack.c.b16 %v3655, %v3654
        %v4182 = vpack.c.b16 %v3657, %v3656
        %v4183 = vpack.c.b16 %v3659, %v3658
        %v4184 = vpack.c.b16 %v3661, %v3660
        %v4185 = vpack.c.b16 %v3663, %v3662
        %v4186 = vpack.c.b16 %v3665, %v3664
        %v4187 = vpack.c.b16 %v3667, %v3666
        %v4188 = vpack.c.b16 %v3669, %v3668
        %v4189 = vpack.c.b16 %v3671, %v3670
        %v4190 = vpack.c.b16 %v3673, %v3672
        %v4191 = vpack.c.b16 %v3675, %v3674
        %v4192 = vpack.c.b16 %v3677, %v3676
        %v4193 = vpack.c.b16 %v3679, %v3678
        %v4194 = vpack.c.b16 %v3681, %v3680
        %v4195 = vpack.c.b16 %v3683, %v3682
        %v4196 = vpack.c.b16 %v3685, %v3684
        %v4197 = vpack.c.b16 %v3687, %v3686
        %v4198 = vpack.c.b16 %v3689, %v3688
        %v4199 = vpack.c.b16 %v3691, %v3690
        %v4200 = vpack.c.b16 %v3693, %v3692
        %v4201 = vpack.c.b16 %v3695, %v3694
        %v4202 = vpack.c.b16 %v3697, %v3696
        %v4203 = vpack.c.b16 %v3699, %v3698
        %v4204 = vpack.c.b16 %v3701, %v3700
        %v4205 = vpack.c.b16 %v3703, %v3702
        %v4206 = vpack.c.b16 %v3705, %v3704
        %v4207 = vpack.c.b16 %v3707, %v3706
        %v4208 = vpack.c.b16 %v3709, %v3708
        %v4209 = vpack.c.b16 %v3711, %v3710
        %v4210 = vpack.c.b16 %v3713, %v3712
        %v4211 = vpack.c.b16 %v3715, %v3714
        %v4212 = vpack.c.b16 %v3717, %v3716
        %v4213 = vpack.c.b16 %v3719, %v3718
        %v4214 = vpack.c.b16 %v3721, %v3720
        %v4215 = vpack.c.b16 %v3723, %v3722
        %v4216 = vpack.c.b16 %v3725, %v3724
        %v4217 = vpack.c.b16 %v3727, %v3726
        %v4218 = vpack.c.b16 %v3729, %v3728
        %v4219 = vpack.c.b16 %v3731, %v3730
        %v4220 = vpack.c.b16 %v3733, %v3732
        %v4221 = vpack.c.b16 %v3735, %v3734
        %v4222 = vpack.c.b16 %v3737, %v3736
        %v4223 = vpack.c.b16 %v3739, %v3738
        %v4224 = vpack.c.b16 %v3741, %v3740
        %v4225 = vpack.c.b16 %v3743, %v3742
        %v4226 = vpack.c.b16 %v3745, %v3744
        %v4227 = vpack.c.b16 %v3747, %v3746
        %4708 = vmatprep.subr.bf16.mxu0 0
        %4709 = vmatpush1.bf16.msra.mxu0 %v3748
        %4710 = vmatprep.subr.bf16.mxu0 0
        %4711 = vmatpush1.bf16.msra.mxu0 %v3749
        %4712 = vmatprep.subr.bf16.mxu0 0
        %4713 = vmatpush1.bf16.msra.mxu0 %v3750
        %4714 = vmatprep.subr.bf16.mxu0 0
        %4715 = vmatpush1.bf16.msra.mxu0 %v3751
        %4716 = vmatprep.subr.bf16.mxu0 0
        %4717 = vmatpush1.bf16.msra.mxu0 %v3752
        %4718 = vmatprep.subr.bf16.mxu0 0
        %4719 = vmatpush1.bf16.msra.mxu0 %v3753
        %4720 = vmatprep.subr.bf16.mxu0 0
        %4721 = vmatpush1.bf16.msra.mxu0 %v3754
        %4722 = vmatprep.subr.bf16.mxu0 0
        %4723 = vmatpush1.bf16.msra.mxu0 %v3755
        %4724 = vmatprep.subr.bf16.mxu0 0
        %4725 = vmatpush1.bf16.msra.mxu0 %v3756
        %4726 = vmatprep.subr.bf16.mxu0 0
        %4727 = vmatpush1.bf16.msra.mxu0 %v3757
        %4728 = vmatprep.subr.bf16.mxu0 0
        %4729 = vmatpush1.bf16.msra.mxu0 %v3758
        %4730 = vmatprep.subr.bf16.mxu0 0
        %4731 = vmatpush1.bf16.msra.mxu0 %v3759
        %4732 = vmatprep.subr.bf16.mxu0 0
        %4733 = vmatpush1.bf16.msra.mxu0 %v3760
        %4734 = vmatprep.subr.bf16.mxu0 0
        %4735 = vmatpush1.bf16.msra.mxu0 %v3761
        %4736 = vmatprep.subr.bf16.mxu0 0
        %4737 = vmatpush1.bf16.msra.mxu0 %v3762
        %4738 = vmatprep.subr.bf16.mxu0 0
        %4739 = vmatpush1.bf16.msra.mxu0 %v3763
        %4740 = vmatprep.mubr.bf16.mxu0 %v809
        %4741 = vmatmul.mubr.bf16.gmra.mrb[0].mxu0 %v808
        %v4742 = vpop.f32.mrb[0].mxu0
        %v4743 = vadd.f32 0.0, %v4742
        %v4744 = vpop.f32.mrb[0].mxu0
        %v4745 = vpop.f32.mrb[0].mxu0
        %v4746 = vpop.f32.mrb[0].mxu0
        %4747 = vdwg.mxu0
        %4748 = vmatprep.subr.bf16.mxu0 0
        %4749 = vmatpush1.bf16.msra.mxu0 %v3764
        %4750 = vmatprep.subr.bf16.mxu0 0
        %4751 = vmatpush1.bf16.msra.mxu0 %v3765
        %4752 = vmatprep.subr.bf16.mxu0 0
        %4753 = vmatpush1.bf16.msra.mxu0 %v3766
        %4754 = vmatprep.subr.bf16.mxu0 0
        %4755 = vmatpush1.bf16.msra.mxu0 %v3767
        %4756 = vmatprep.subr.bf16.mxu0 0
        %4757 = vmatpush1.bf16.msra.mxu0 %v3768
        %4758 = vmatprep.subr.bf16.mxu0 0
        %4759 = vmatpush1.bf16.msra.mxu0 %v3769
        %4760 = vmatprep.subr.bf16.mxu0 0
        %4761 = vmatpush1.bf16.msra.mxu0 %v3770
        %4762 = vmatprep.subr.bf16.mxu0 0
        %4763 = vmatpush1.bf16.msra.mxu0 %v3771
        %4764 = vmatprep.subr.bf16.mxu0 0
        %4765 = vmatpush1.bf16.msra.mxu0 %v3772
        %4766 = vmatprep.subr.bf16.mxu0 0
        %4767 = vmatpush1.bf16.msra.mxu0 %v3773
        %4768 = vmatprep.subr.bf16.mxu0 0
        %4769 = vmatpush1.bf16.msra.mxu0 %v3774
        %4770 = vmatprep.subr.bf16.mxu0 0
        %4771 = vmatpush1.bf16.msra.mxu0 %v3775
        %4772 = vmatprep.subr.bf16.mxu0 0
        %4773 = vmatpush1.bf16.msra.mxu0 %v3776
        %4774 = vmatprep.subr.bf16.mxu0 0
        %4775 = vmatpush1.bf16.msra.mxu0 %v3777
        %4776 = vmatprep.subr.bf16.mxu0 0
        %4777 = vmatpush1.bf16.msra.mxu0 %v3778
        %4778 = vmatprep.subr.bf16.mxu0 0
        %4779 = vmatpush1.bf16.msra.mxu0 %v3779
        %4780 = vmatprep.mubr.bf16.mxu0 %v811
        %4781 = vmatmul.mubr.bf16.gmra.mrb[0].mxu0 %v810
        %v4782 = vpop.f32.mrb[0].mxu0
        %v4783 = vadd.f32 %v4743, %v4782
        %v4784 = vpop.f32.mrb[0].mxu0
        %v4785 = vpop.f32.mrb[0].mxu0
        %v4786 = vpop.f32.mrb[0].mxu0
        %4787 = vdwg.mxu0
        %4788 = vmatprep.subr.bf16.mxu0 0
        %4789 = vmatpush1.bf16.msra.mxu0 %v3780
        %4790 = vmatprep.subr.bf16.mxu0 0
        %4791 = vmatpush1.bf16.msra.mxu0 %v3781
        %4792 = vmatprep.subr.bf16.mxu0 0
        %4793 = vmatpush1.bf16.msra.mxu0 %v3782
        %4794 = vmatprep.subr.bf16.mxu0 0
        %4795 = vmatpush1.bf16.msra.mxu0 %v3783
        %4796 = vmatprep.subr.bf16.mxu0 0
        %4797 = vmatpush1.bf16.msra.mxu0 %v3784
        %4798 = vmatprep.subr.bf16.mxu0 0
        %4799 = vmatpush1.bf16.msra.mxu0 %v3785
        %4800 = vmatprep.subr.bf16.mxu0 0
        %4801 = vmatpush1.bf16.msra.mxu0 %v3786
        %4802 = vmatprep.subr.bf16.mxu0 0
        %4803 = vmatpush1.bf16.msra.mxu0 %v3787
        %4804 = vmatprep.subr.bf16.mxu0 0
        %4805 = vmatpush1.bf16.msra.mxu0 %v3788
        %4806 = vmatprep.subr.bf16.mxu0 0
        %4807 = vmatpush1.bf16.msra.mxu0 %v3789
        %4808 = vmatprep.subr.bf16.mxu0 0
        %4809 = vmatpush1.bf16.msra.mxu0 %v3790
        %4810 = vmatprep.subr.bf16.mxu0 0
        %4811 = vmatpush1.bf16.msra.mxu0 %v3791
        %4812 = vmatprep.subr.bf16.mxu0 0
        %4813 = vmatpush1.bf16.msra.mxu0 %v3792
        %4814 = vmatprep.subr.bf16.mxu0 0
        %4815 = vmatpush1.bf16.msra.mxu0 %v3793
        %4816 = vmatprep.subr.bf16.mxu0 0
        %4817 = vmatpush1.bf16.msra.mxu0 %v3794
        %4818 = vmatprep.subr.bf16.mxu0 0
        %4819 = vmatpush1.bf16.msra.mxu0 %v3795
        %4820 = vmatprep.mubr.bf16.mxu0 %v813
        %4821 = vmatmul.mubr.bf16.gmra.mrb[0].mxu0 %v812
        %v4822 = vpop.f32.mrb[0].mxu0
        %v4823 = vadd.f32 %v4783, %v4822
        %v4824 = vpop.f32.mrb[0].mxu0
        %v4825 = vpop.f32.mrb[0].mxu0
        %v4826 = vpop.f32.mrb[0].mxu0
        %4827 = vdwg.mxu0
        %4828 = vmatprep.subr.bf16.mxu0 0
        %4829 = vmatpush1.bf16.msra.mxu0 %v3796
        %4830 = vmatprep.subr.bf16.mxu0 0
        %4831 = vmatpush1.bf16.msra.mxu0 %v3797
        %4832 = vmatprep.subr.bf16.mxu0 0
        %4833 = vmatpush1.bf16.msra.mxu0 %v3798
        %4834 = vmatprep.subr.bf16.mxu0 0
        %4835 = vmatpush1.bf16.msra.mxu0 %v3799
        %4836 = vmatprep.subr.bf16.mxu0 0
        %4837 = vmatpush1.bf16.msra.mxu0 %v3800
        %4838 = vmatprep.subr.bf16.mxu0 0
        %4839 = vmatpush1.bf16.msra.mxu0 %v3801
        %4840 = vmatprep.subr.bf16.mxu0 0
        %4841 = vmatpush1.bf16.msra.mxu0 %v3802
        %4842 = vmatprep.subr.bf16.mxu0 0
        %4843 = vmatpush1.bf16.msra.mxu0 %v3803
        %4844 = vmatprep.subr.bf16.mxu0 0
        %4845 = vmatpush1.bf16.msra.mxu0 %v3804
        %4846 = vmatprep.subr.bf16.mxu0 0
        %4847 = vmatpush1.bf16.msra.mxu0 %v3805
        %4848 = vmatprep.subr.bf16.mxu0 0
        %4849 = vmatpush1.bf16.msra.mxu0 %v3806
        %4850 = vmatprep.subr.bf16.mxu0 0
        %4851 = vmatpush1.bf16.msra.mxu0 %v3807
        %4852 = vmatprep.subr.bf16.mxu0 0
        %4853 = vmatpush1.bf16.msra.mxu0 %v3808
        %4854 = vmatprep.subr.bf16.mxu0 0
        %4855 = vmatpush1.bf16.msra.mxu0 %v3809
        %4856 = vmatprep.subr.bf16.mxu0 0
        %4857 = vmatpush1.bf16.msra.mxu0 %v3810
        %4858 = vmatprep.subr.bf16.mxu0 0
        %4859 = vmatpush1.bf16.msra.mxu0 %v3811
        %4860 = vmatprep.mubr.bf16.mxu0 %v815
        %4861 = vmatmul.mubr.bf16.gmra.mrb[0].mxu0 %v814
        %v4862 = vpop.f32.mrb[0].mxu0
        %v4863 = vadd.f32 %v4823, %v4862
        %v4864 = vpop.f32.mrb[0].mxu0
        %v4865 = vpop.f32.mrb[0].mxu0
        %v4866 = vpop.f32.mrb[0].mxu0
        %4867 = vdwg.mxu0
        %4868 = vmatprep.subr.bf16.mxu0 0
        %4869 = vmatpush1.bf16.msra.mxu0 %v3812
        %4870 = vmatprep.subr.bf16.mxu0 0
        %4871 = vmatpush1.bf16.msra.mxu0 %v3813
        %4872 = vmatprep.subr.bf16.mxu0 0
        %4873 = vmatpush1.bf16.msra.mxu0 %v3814
        %4874 = vmatprep.subr.bf16.mxu0 0
        %4875 = vmatpush1.bf16.msra.mxu0 %v3815
        %4876 = vmatprep.subr.bf16.mxu0 0
        %4877 = vmatpush1.bf16.msra.mxu0 %v3816
        %4878 = vmatprep.subr.bf16.mxu0 0
        %4879 = vmatpush1.bf16.msra.mxu0 %v3817
        %4880 = vmatprep.subr.bf16.mxu0 0
        %4881 = vmatpush1.bf16.msra.mxu0 %v3818
        %4882 = vmatprep.subr.bf16.mxu0 0
        %4883 = vmatpush1.bf16.msra.mxu0 %v3819
        %4884 = vmatprep.subr.bf16.mxu0 0
        %4885 = vmatpush1.bf16.msra.mxu0 %v3820
        %4886 = vmatprep.subr.bf16.mxu0 0
        %4887 = vmatpush1.bf16.msra.mxu0 %v3821
        %4888 = vmatprep.subr.bf16.mxu0 0
        %4889 = vmatpush1.bf16.msra.mxu0 %v3822
        %4890 = vmatprep.subr.bf16.mxu0 0
        %4891 = vmatpush1.bf16.msra.mxu0 %v3823
        %4892 = vmatprep.subr.bf16.mxu0 0
        %4893 = vmatpush1.bf16.msra.mxu0 %v3824
        %4894 = vmatprep.subr.bf16.mxu0 0
        %4895 = vmatpush1.bf16.msra.mxu0 %v3825
        %4896 = vmatprep.subr.bf16.mxu0 0
        %4897 = vmatpush1.bf16.msra.mxu0 %v3826
        %4898 = vmatprep.subr.bf16.mxu0 0
        %4899 = vmatpush1.bf16.msra.mxu0 %v3827
        %4900 = vmatprep.mubr.bf16.mxu0 %v817
        %4901 = vmatmul.mubr.bf16.gmra.mrb[0].mxu0 %v816
        %v4902 = vpop.f32.mrb[0].mxu0
        %v4903 = vadd.f32 %v4863, %v4902
        %v4904 = vpop.f32.mrb[0].mxu0
        %v4905 = vpop.f32.mrb[0].mxu0
        %v4906 = vpop.f32.mrb[0].mxu0
        %4907 = vdwg.mxu0
        %4908 = vmatprep.subr.bf16.mxu0 0
        %4909 = vmatpush1.bf16.msra.mxu0 %v3828
        %4910 = vmatprep.subr.bf16.mxu0 0
        %4911 = vmatpush1.bf16.msra.mxu0 %v3829
        %4912 = vmatprep.subr.bf16.mxu0 0
        %4913 = vmatpush1.bf16.msra.mxu0 %v3830
        %4914 = vmatprep.subr.bf16.mxu0 0
        %4915 = vmatpush1.bf16.msra.mxu0 %v3831
        %4916 = vmatprep.subr.bf16.mxu0 0
        %4917 = vmatpush1.bf16.msra.mxu0 %v3832
        %4918 = vmatprep.subr.bf16.mxu0 0
        %4919 = vmatpush1.bf16.msra.mxu0 %v3833
        %4920 = vmatprep.subr.bf16.mxu0 0
        %4921 = vmatpush1.bf16.msra.mxu0 %v3834
        %4922 = vmatprep.subr.bf16.mxu0 0
        %4923 = vmatpush1.bf16.msra.mxu0 %v3835
        %4924 = vmatprep.subr.bf16.mxu0 0
        %4925 = vmatpush1.bf16.msra.mxu0 %v3836
        %4926 = vmatprep.subr.bf16.mxu0 0
        %4927 = vmatpush1.bf16.msra.mxu0 %v3837
        %4928 = vmatprep.subr.bf16.mxu0 0
        %4929 = vmatpush1.bf16.msra.mxu0 %v3838
        %4930 = vmatprep.subr.bf16.mxu0 0
        %4931 = vmatpush1.bf16.msra.mxu0 %v3839
        %4932 = vmatprep.subr.bf16.mxu0 0
        %4933 = vmatpush1.bf16.msra.mxu0 %v3840
        %4934 = vmatprep.subr.bf16.mxu0 0
        %4935 = vmatpush1.bf16.msra.mxu0 %v3841
        %4936 = vmatprep.subr.bf16.mxu0 0
        %4937 = vmatpush1.bf16.msra.mxu0 %v3842
        %4938 = vmatprep.subr.bf16.mxu0 0
        %4939 = vmatpush1.bf16.msra.mxu0 %v3843
        %4940 = vmatprep.mubr.bf16.mxu0 %v819
        %4941 = vmatmul.mubr.bf16.gmra.mrb[0].mxu0 %v818
        %v4942 = vpop.f32.mrb[0].mxu0
        %v4943 = vadd.f32 %v4903, %v4942
        %v4944 = vpop.f32.mrb[0].mxu0
        %v4945 = vpop.f32.mrb[0].mxu0
        %v4946 = vpop.f32.mrb[0].mxu0
        %4947 = vdwg.mxu0
        %4948 = vmatprep.subr.bf16.mxu0 0
        %4949 = vmatpush1.bf16.msra.mxu0 %v3844
        %4950 = vmatprep.subr.bf16.mxu0 0
        %4951 = vmatpush1.bf16.msra.mxu0 %v3845
        %4952 = vmatprep.subr.bf16.mxu0 0
        %4953 = vmatpush1.bf16.msra.mxu0 %v3846
        %4954 = vmatprep.subr.bf16.mxu0 0
        %4955 = vmatpush1.bf16.msra.mxu0 %v3847
        %4956 = vmatprep.subr.bf16.mxu0 0
        %4957 = vmatpush1.bf16.msra.mxu0 %v3848
        %4958 = vmatprep.subr.bf16.mxu0 0
        %4959 = vmatpush1.bf16.msra.mxu0 %v3849
        %4960 = vmatprep.subr.bf16.mxu0 0
        %4961 = vmatpush1.bf16.msra.mxu0 %v3850
        %4962 = vmatprep.subr.bf16.mxu0 0
        %4963 = vmatpush1.bf16.msra.mxu0 %v3851
        %4964 = vmatprep.subr.bf16.mxu0 0
        %4965 = vmatpush1.bf16.msra.mxu0 %v3852
        %4966 = vmatprep.subr.bf16.mxu0 0
        %4967 = vmatpush1.bf16.msra.mxu0 %v3853
        %4968 = vmatprep.subr.bf16.mxu0 0
        %4969 = vmatpush1.bf16.msra.mxu0 %v3854
        %4970 = vmatprep.subr.bf16.mxu0 0
        %4971 = vmatpush1.bf16.msra.mxu0 %v3855
        %4972 = vmatprep.subr.bf16.mxu0 0
        %4973 = vmatpush1.bf16.msra.mxu0 %v3856
        %4974 = vmatprep.subr.bf16.mxu0 0
        %4975 = vmatpush1.bf16.msra.mxu0 %v3857
        %4976 = vmatprep.subr.bf16.mxu0 0
        %4977 = vmatpush1.bf16.msra.mxu0 %v3858
        %4978 = vmatprep.subr.bf16.mxu0 0
        %4979 = vmatpush1.bf16.msra.mxu0 %v3859
        %4980 = vmatprep.mubr.bf16.mxu0 %v821
        %4981 = vmatmul.mubr.bf16.gmra.mrb[0].mxu0 %v820
        %v4982 = vpop.f32.mrb[0].mxu0
        %v4983 = vadd.f32 %v4943, %v4982
        %v4984 = vpop.f32.mrb[0].mxu0
        %v4985 = vpop.f32.mrb[0].mxu0
        %v4986 = vpop.f32.mrb[0].mxu0
        %4987 = vdwg.mxu0
        %4988 = vmatprep.subr.bf16.mxu0 0
        %4989 = vmatpush1.bf16.msra.mxu0 %v3860
        %4990 = vmatprep.subr.bf16.mxu0 0
        %4991 = vmatpush1.bf16.msra.mxu0 %v3861
        %4992 = vmatprep.subr.bf16.mxu0 0
        %4993 = vmatpush1.bf16.msra.mxu0 %v3862
        %4994 = vmatprep.subr.bf16.mxu0 0
        %4995 = vmatpush1.bf16.msra.mxu0 %v3863
        %4996 = vmatprep.subr.bf16.mxu0 0
        %4997 = vmatpush1.bf16.msra.mxu0 %v3864
        %4998 = vmatprep.subr.bf16.mxu0 0
        %4999 = vmatpush1.bf16.msra.mxu0 %v3865
        %5000 = vmatprep.subr.bf16.mxu0 0
        %5001 = vmatpush1.bf16.msra.mxu0 %v3866
        %5002 = vmatprep.subr.bf16.mxu0 0
        %5003 = vmatpush1.bf16.msra.mxu0 %v3867
        %5004 = vmatprep.subr.bf16.mxu0 0
        %5005 = vmatpush1.bf16.msra.mxu0 %v3868
        %5006 = vmatprep.subr.bf16.mxu0 0
        %5007 = vmatpush1.bf16.msra.mxu0 %v3869
        %5008 = vmatprep.subr.bf16.mxu0 0
        %5009 = vmatpush1.bf16.msra.mxu0 %v3870
        %5010 = vmatprep.subr.bf16.mxu0 0
        %5011 = vmatpush1.bf16.msra.mxu0 %v3871
        %5012 = vmatprep.subr.bf16.mxu0 0
        %5013 = vmatpush1.bf16.msra.mxu0 %v3872
        %5014 = vmatprep.subr.bf16.mxu0 0
        %5015 = vmatpush1.bf16.msra.mxu0 %v3873
        %5016 = vmatprep.subr.bf16.mxu0 0
        %5017 = vmatpush1.bf16.msra.mxu0 %v3874
        %5018 = vmatprep.subr.bf16.mxu0 0
        %5019 = vmatpush1.bf16.msra.mxu0 %v3875
        %5020 = vmatprep.mubr.bf16.mxu0 %v823
        %5021 = vmatmul.mubr.bf16.gmra.mrb[0].mxu0 %v822
        %v5022 = vpop.f32.mrb[0].mxu0
        %v5023 = vadd.f32 %v4983, %v5022
        %v5024 = vpop.f32.mrb[0].mxu0
        %v5025 = vpop.f32.mrb[0].mxu0
        %v5026 = vpop.f32.mrb[0].mxu0
        %5027 = vdwg.mxu0
        %5028 = vmatprep.subr.bf16.mxu0 0
        %5029 = vmatpush1.bf16.msra.mxu0 %v3876
        %5030 = vmatprep.subr.bf16.mxu0 0
        %5031 = vmatpush1.bf16.msra.mxu0 %v3877
        %5032 = vmatprep.subr.bf16.mxu0 0
        %5033 = vmatpush1.bf16.msra.mxu0 %v3878
        %5034 = vmatprep.subr.bf16.mxu0 0
        %5035 = vmatpush1.bf16.msra.mxu0 %v3879
        %5036 = vmatprep.subr.bf16.mxu0 0
        %5037 = vmatpush1.bf16.msra.mxu0 %v3880
        %5038 = vmatprep.subr.bf16.mxu0 0
        %5039 = vmatpush1.bf16.msra.mxu0 %v3881
        %5040 = vmatprep.subr.bf16.mxu0 0
        %5041 = vmatpush1.bf16.msra.mxu0 %v3882
        %5042 = vmatprep.subr.bf16.mxu0 0
        %5043 = vmatpush1.bf16.msra.mxu0 %v3883
        %5044 = vmatprep.subr.bf16.mxu0 0
        %5045 = vmatpush1.bf16.msra.mxu0 %v3884
        %5046 = vmatprep.subr.bf16.mxu0 0
        %5047 = vmatpush1.bf16.msra.mxu0 %v3885
        %5048 = vmatprep.subr.bf16.mxu0 0
        %5049 = vmatpush1.bf16.msra.mxu0 %v3886
        %5050 = vmatprep.subr.bf16.mxu0 0
        %5051 = vmatpush1.bf16.msra.mxu0 %v3887
        %5052 = vmatprep.subr.bf16.mxu0 0
        %5053 = vmatpush1.bf16.msra.mxu0 %v3888
        %5054 = vmatprep.subr.bf16.mxu0 0
        %5055 = vmatpush1.bf16.msra.mxu0 %v3889
        %5056 = vmatprep.subr.bf16.mxu0 0
        %5057 = vmatpush1.bf16.msra.mxu0 %v3890
        %5058 = vmatprep.subr.bf16.mxu0 0
        %5059 = vmatpush1.bf16.msra.mxu0 %v3891
        %5060 = vmatprep.mubr.bf16.mxu0 %v825
        %5061 = vmatmul.mubr.bf16.gmra.mrb[0].mxu0 %v824
        %v5062 = vpop.f32.mrb[0].mxu0
        %v5063 = vadd.f32 %v5023, %v5062
        %v5064 = vpop.f32.mrb[0].mxu0
        %v5065 = vpop.f32.mrb[0].mxu0
        %v5066 = vpop.f32.mrb[0].mxu0
        %5067 = vdwg.mxu0
        %5068 = vmatprep.subr.bf16.mxu0 0
        %5069 = vmatpush1.bf16.msra.mxu0 %v3892
        %5070 = vmatprep.subr.bf16.mxu0 0
        %5071 = vmatpush1.bf16.msra.mxu0 %v3893
        %5072 = vmatprep.subr.bf16.mxu0 0
        %5073 = vmatpush1.bf16.msra.mxu0 %v3894
        %5074 = vmatprep.subr.bf16.mxu0 0
        %5075 = vmatpush1.bf16.msra.mxu0 %v3895
        %5076 = vmatprep.subr.bf16.mxu0 0
        %5077 = vmatpush1.bf16.msra.mxu0 %v3896
        %5078 = vmatprep.subr.bf16.mxu0 0
        %5079 = vmatpush1.bf16.msra.mxu0 %v3897
        %5080 = vmatprep.subr.bf16.mxu0 0
        %5081 = vmatpush1.bf16.msra.mxu0 %v3898
        %5082 = vmatprep.subr.bf16.mxu0 0
        %5083 = vmatpush1.bf16.msra.mxu0 %v3899
        %5084 = vmatprep.subr.bf16.mxu0 0
        %5085 = vmatpush1.bf16.msra.mxu0 %v3900
        %5086 = vmatprep.subr.bf16.mxu0 0
        %5087 = vmatpush1.bf16.msra.mxu0 %v3901
        %5088 = vmatprep.subr.bf16.mxu0 0
        %5089 = vmatpush1.bf16.msra.mxu0 %v3902
        %5090 = vmatprep.subr.bf16.mxu0 0
        %5091 = vmatpush1.bf16.msra.mxu0 %v3903
        %5092 = vmatprep.subr.bf16.mxu0 0
        %5093 = vmatpush1.bf16.msra.mxu0 %v3904
        %5094 = vmatprep.subr.bf16.mxu0 0
        %5095 = vmatpush1.bf16.msra.mxu0 %v3905
        %5096 = vmatprep.subr.bf16.mxu0 0
        %5097 = vmatpush1.bf16.msra.mxu0 %v3906
        %5098 = vmatprep.subr.bf16.mxu0 0
        %5099 = vmatpush1.bf16.msra.mxu0 %v3907
        %5100 = vmatprep.mubr.bf16.mxu0 %v827
        %5101 = vmatmul.mubr.bf16.gmra.mrb[0].mxu0 %v826
        %v5102 = vpop.f32.mrb[0].mxu0
        %v5103 = vadd.f32 %v5063, %v5102
        %v5104 = vpop.f32.mrb[0].mxu0
        %v5105 = vpop.f32.mrb[0].mxu0
        %v5106 = vpop.f32.mrb[0].mxu0
        %5107 = vdwg.mxu0
        %5108 = vmatprep.subr.bf16.mxu0 0
        %5109 = vmatpush1.bf16.msra.mxu0 %v3908
        %5110 = vmatprep.subr.bf16.mxu0 0
        %5111 = vmatpush1.bf16.msra.mxu0 %v3909
        %5112 = vmatprep.subr.bf16.mxu0 0
        %5113 = vmatpush1.bf16.msra.mxu0 %v3910
        %5114 = vmatprep.subr.bf16.mxu0 0
        %5115 = vmatpush1.bf16.msra.mxu0 %v3911
        %5116 = vmatprep.subr.bf16.mxu0 0
        %5117 = vmatpush1.bf16.msra.mxu0 %v3912
        %5118 = vmatprep.subr.bf16.mxu0 0
        %5119 = vmatpush1.bf16.msra.mxu0 %v3913
        %5120 = vmatprep.subr.bf16.mxu0 0
        %5121 = vmatpush1.bf16.msra.mxu0 %v3914
        %5122 = vmatprep.subr.bf16.mxu0 0
        %5123 = vmatpush1.bf16.msra.mxu0 %v3915
        %5124 = vmatprep.subr.bf16.mxu0 0
        %5125 = vmatpush1.bf16.msra.mxu0 %v3916
        %5126 = vmatprep.subr.bf16.mxu0 0
        %5127 = vmatpush1.bf16.msra.mxu0 %v3917
        %5128 = vmatprep.subr.bf16.mxu0 0
        %5129 = vmatpush1.bf16.msra.mxu0 %v3918
        %5130 = vmatprep.subr.bf16.mxu0 0
        %5131 = vmatpush1.bf16.msra.mxu0 %v3919
        %5132 = vmatprep.subr.bf16.mxu0 0
        %5133 = vmatpush1.bf16.msra.mxu0 %v3920
        %5134 = vmatprep.subr.bf16.mxu0 0
        %5135 = vmatpush1.bf16.msra.mxu0 %v3921
        %5136 = vmatprep.subr.bf16.mxu0 0
        %5137 = vmatpush1.bf16.msra.mxu0 %v3922
        %5138 = vmatprep.subr.bf16.mxu0 0
        %5139 = vmatpush1.bf16.msra.mxu0 %v3923
        %5140 = vmatprep.mubr.bf16.mxu0 %v829
        %5141 = vmatmul.mubr.bf16.gmra.mrb[0].mxu0 %v828
        %v5142 = vpop.f32.mrb[0].mxu0
        %v5143 = vadd.f32 %v5103, %v5142
        %v5144 = vpop.f32.mrb[0].mxu0
        %v5145 = vpop.f32.mrb[0].mxu0
        %v5146 = vpop.f32.mrb[0].mxu0
        %5147 = vdwg.mxu0
        %5148 = vmatprep.subr.bf16.mxu0 0
        %5149 = vmatpush1.bf16.msra.mxu0 %v3924
        %5150 = vmatprep.subr.bf16.mxu0 0
        %5151 = vmatpush1.bf16.msra.mxu0 %v3925
        %5152 = vmatprep.subr.bf16.mxu0 0
        %5153 = vmatpush1.bf16.msra.mxu0 %v3926
        %5154 = vmatprep.subr.bf16.mxu0 0
        %5155 = vmatpush1.bf16.msra.mxu0 %v3927
        %5156 = vmatprep.subr.bf16.mxu0 0
        %5157 = vmatpush1.bf16.msra.mxu0 %v3928
        %5158 = vmatprep.subr.bf16.mxu0 0
        %5159 = vmatpush1.bf16.msra.mxu0 %v3929
        %5160 = vmatprep.subr.bf16.mxu0 0
        %5161 = vmatpush1.bf16.msra.mxu0 %v3930
        %5162 = vmatprep.subr.bf16.mxu0 0
        %5163 = vmatpush1.bf16.msra.mxu0 %v3931
        %5164 = vmatprep.subr.bf16.mxu0 0
        %5165 = vmatpush1.bf16.msra.mxu0 %v3932
        %5166 = vmatprep.subr.bf16.mxu0 0
        %5167 = vmatpush1.bf16.msra.mxu0 %v3933
        %5168 = vmatprep.subr.bf16.mxu0 0
        %5169 = vmatpush1.bf16.msra.mxu0 %v3934
        %5170 = vmatprep.subr.bf16.mxu0 0
        %5171 = vmatpush1.bf16.msra.mxu0 %v3935
        %5172 = vmatprep.subr.bf16.mxu0 0
        %5173 = vmatpush1.bf16.msra.mxu0 %v3936
        %5174 = vmatprep.subr.bf16.mxu0 0
        %5175 = vmatpush1.bf16.msra.mxu0 %v3937
        %5176 = vmatprep.subr.bf16.mxu0 0
        %5177 = vmatpush1.bf16.msra.mxu0 %v3938
        %5178 = vmatprep.subr.bf16.mxu0 0
        %5179 = vmatpush1.bf16.msra.mxu0 %v3939
        %5180 = vmatprep.mubr.bf16.mxu0 %v831
        %5181 = vmatmul.mubr.bf16.gmra.mrb[0].mxu0 %v830
        %v5182 = vpop.f32.mrb[0].mxu0
        %v5183 = vadd.f32 %v5143, %v5182
        %v5184 = vpop.f32.mrb[0].mxu0
        %v5185 = vpop.f32.mrb[0].mxu0
        %v5186 = vpop.f32.mrb[0].mxu0
        %5187 = vdwg.mxu0
        %5188 = vmatprep.subr.bf16.mxu0 0
        %5189 = vmatpush1.bf16.msra.mxu0 %v3940
        %5190 = vmatprep.subr.bf16.mxu0 0
        %5191 = vmatpush1.bf16.msra.mxu0 %v3941
        %5192 = vmatprep.subr.bf16.mxu0 0
        %5193 = vmatpush1.bf16.msra.mxu0 %v3942
        %5194 = vmatprep.subr.bf16.mxu0 0
        %5195 = vmatpush1.bf16.msra.mxu0 %v3943
        %5196 = vmatprep.subr.bf16.mxu0 0
        %5197 = vmatpush1.bf16.msra.mxu0 %v3944
        %5198 = vmatprep.subr.bf16.mxu0 0
        %5199 = vmatpush1.bf16.msra.mxu0 %v3945
        %5200 = vmatprep.subr.bf16.mxu0 0
        %5201 = vmatpush1.bf16.msra.mxu0 %v3946
        %5202 = vmatprep.subr.bf16.mxu0 0
        %5203 = vmatpush1.bf16.msra.mxu0 %v3947
        %5204 = vmatprep.subr.bf16.mxu0 0
        %5205 = vmatpush1.bf16.msra.mxu0 %v3948
        %5206 = vmatprep.subr.bf16.mxu0 0
        %5207 = vmatpush1.bf16.msra.mxu0 %v3949
        %5208 = vmatprep.subr.bf16.mxu0 0
        %5209 = vmatpush1.bf16.msra.mxu0 %v3950
        %5210 = vmatprep.subr.bf16.mxu0 0
        %5211 = vmatpush1.bf16.msra.mxu0 %v3951
        %5212 = vmatprep.subr.bf16.mxu0 0
        %5213 = vmatpush1.bf16.msra.mxu0 %v3952
        %5214 = vmatprep.subr.bf16.mxu0 0
        %5215 = vmatpush1.bf16.msra.mxu0 %v3953
        %5216 = vmatprep.subr.bf16.mxu0 0
        %5217 = vmatpush1.bf16.msra.mxu0 %v3954
        %5218 = vmatprep.subr.bf16.mxu0 0
        %5219 = vmatpush1.bf16.msra.mxu0 %v3955
        %5220 = vmatprep.mubr.bf16.mxu0 %v833
        %5221 = vmatmul.mubr.bf16.gmra.mrb[0].mxu0 %v832
        %v5222 = vpop.f32.mrb[0].mxu0
        %v5223 = vadd.f32 %v5183, %v5222
        %v5224 = vpop.f32.mrb[0].mxu0
        %v5225 = vpop.f32.mrb[0].mxu0
        %v5226 = vpop.f32.mrb[0].mxu0
        %5227 = vdwg.mxu0
        %5228 = vmatprep.subr.bf16.mxu0 0
        %5229 = vmatpush1.bf16.msra.mxu0 %v3956
        %5230 = vmatprep.subr.bf16.mxu0 0
        %5231 = vmatpush1.bf16.msra.mxu0 %v3957
        %5232 = vmatprep.subr.bf16.mxu0 0
        %5233 = vmatpush1.bf16.msra.mxu0 %v3958
        %5234 = vmatprep.subr.bf16.mxu0 0
        %5235 = vmatpush1.bf16.msra.mxu0 %v3959
        %5236 = vmatprep.subr.bf16.mxu0 0
        %5237 = vmatpush1.bf16.msra.mxu0 %v3960
        %5238 = vmatprep.subr.bf16.mxu0 0
        %5239 = vmatpush1.bf16.msra.mxu0 %v3961
        %5240 = vmatprep.subr.bf16.mxu0 0
        %5241 = vmatpush1.bf16.msra.mxu0 %v3962
        %5242 = vmatprep.subr.bf16.mxu0 0
        %5243 = vmatpush1.bf16.msra.mxu0 %v3963
        %5244 = vmatprep.subr.bf16.mxu0 0
        %5245 = vmatpush1.bf16.msra.mxu0 %v3964
        %5246 = vmatprep.subr.bf16.mxu0 0
        %5247 = vmatpush1.bf16.msra.mxu0 %v3965
        %5248 = vmatprep.subr.bf16.mxu0 0
        %5249 = vmatpush1.bf16.msra.mxu0 %v3966
        %5250 = vmatprep.subr.bf16.mxu0 0
        %5251 = vmatpush1.bf16.msra.mxu0 %v3967
        %5252 = vmatprep.subr.bf16.mxu0 0
        %5253 = vmatpush1.bf16.msra.mxu0 %v3968
        %5254 = vmatprep.subr.bf16.mxu0 0
        %5255 = vmatpush1.bf16.msra.mxu0 %v3969
        %5256 = vmatprep.subr.bf16.mxu0 0
        %5257 = vmatpush1.bf16.msra.mxu0 %v3970
        %5258 = vmatprep.subr.bf16.mxu0 0
        %5259 = vmatpush1.bf16.msra.mxu0 %v3971
        %5260 = vmatprep.mubr.bf16.mxu0 %v835
        %5261 = vmatmul.mubr.bf16.gmra.mrb[0].mxu0 %v834
        %v5262 = vpop.f32.mrb[0].mxu0
        %v5263 = vadd.f32 %v5223, %v5262
        %v5264 = vpop.f32.mrb[0].mxu0
        %v5265 = vpop.f32.mrb[0].mxu0
        %v5266 = vpop.f32.mrb[0].mxu0
        %5267 = vdwg.mxu0
        %5268 = vmatprep.subr.bf16.mxu0 0
        %5269 = vmatpush1.bf16.msra.mxu0 %v3972
        %5270 = vmatprep.subr.bf16.mxu0 0
        %5271 = vmatpush1.bf16.msra.mxu0 %v3973
        %5272 = vmatprep.subr.bf16.mxu0 0
        %5273 = vmatpush1.bf16.msra.mxu0 %v3974
        %5274 = vmatprep.subr.bf16.mxu0 0
        %5275 = vmatpush1.bf16.msra.mxu0 %v3975
        %5276 = vmatprep.subr.bf16.mxu0 0
        %5277 = vmatpush1.bf16.msra.mxu0 %v3976
        %5278 = vmatprep.subr.bf16.mxu0 0
        %5279 = vmatpush1.bf16.msra.mxu0 %v3977
        %5280 = vmatprep.subr.bf16.mxu0 0
        %5281 = vmatpush1.bf16.msra.mxu0 %v3978
        %5282 = vmatprep.subr.bf16.mxu0 0
        %5283 = vmatpush1.bf16.msra.mxu0 %v3979
        %5284 = vmatprep.subr.bf16.mxu0 0
        %5285 = vmatpush1.bf16.msra.mxu0 %v3980
        %5286 = vmatprep.subr.bf16.mxu0 0
        %5287 = vmatpush1.bf16.msra.mxu0 %v3981
        %5288 = vmatprep.subr.bf16.mxu0 0
        %5289 = vmatpush1.bf16.msra.mxu0 %v3982
        %5290 = vmatprep.subr.bf16.mxu0 0
        %5291 = vmatpush1.bf16.msra.mxu0 %v3983
        %5292 = vmatprep.subr.bf16.mxu0 0
        %5293 = vmatpush1.bf16.msra.mxu0 %v3984
        %5294 = vmatprep.subr.bf16.mxu0 0
        %5295 = vmatpush1.bf16.msra.mxu0 %v3985
        %5296 = vmatprep.subr.bf16.mxu0 0
        %5297 = vmatpush1.bf16.msra.mxu0 %v3986
        %5298 = vmatprep.subr.bf16.mxu0 0
        %5299 = vmatpush1.bf16.msra.mxu0 %v3987
        %5300 = vmatprep.mubr.bf16.mxu0 %v837
        %5301 = vmatmul.mubr.bf16.gmra.mrb[0].mxu0 %v836
        %v5302 = vpop.f32.mrb[0].mxu0
        %v5303 = vadd.f32 %v5263, %v5302
        %v5304 = vpop.f32.mrb[0].mxu0
        %v5305 = vpop.f32.mrb[0].mxu0
        %v5306 = vpop.f32.mrb[0].mxu0
        %5307 = vdwg.mxu0
        %5308 = vmatprep.subr.bf16.mxu0 0
        %5309 = vmatpush1.bf16.msra.mxu0 %v3988
        %5310 = vmatprep.subr.bf16.mxu0 0
        %5311 = vmatpush1.bf16.msra.mxu0 %v3989
        %5312 = vmatprep.subr.bf16.mxu0 0
        %5313 = vmatpush1.bf16.msra.mxu0 %v3990
        %5314 = vmatprep.subr.bf16.mxu0 0
        %5315 = vmatpush1.bf16.msra.mxu0 %v3991
        %5316 = vmatprep.subr.bf16.mxu0 0
        %5317 = vmatpush1.bf16.msra.mxu0 %v3992
        %5318 = vmatprep.subr.bf16.mxu0 0
        %5319 = vmatpush1.bf16.msra.mxu0 %v3993
        %5320 = vmatprep.subr.bf16.mxu0 0
        %5321 = vmatpush1.bf16.msra.mxu0 %v3994
        %5322 = vmatprep.subr.bf16.mxu0 0
        %5323 = vmatpush1.bf16.msra.mxu0 %v3995
        %5324 = vmatprep.subr.bf16.mxu0 0
        %5325 = vmatpush1.bf16.msra.mxu0 %v3996
        %5326 = vmatprep.subr.bf16.mxu0 0
        %5327 = vmatpush1.bf16.msra.mxu0 %v3997
        %5328 = vmatprep.subr.bf16.mxu0 0
        %5329 = vmatpush1.bf16.msra.mxu0 %v3998
        %5330 = vmatprep.subr.bf16.mxu0 0
        %5331 = vmatpush1.bf16.msra.mxu0 %v3999
        %5332 = vmatprep.subr.bf16.mxu0 0
        %5333 = vmatpush1.bf16.msra.mxu0 %v4000
        %5334 = vmatprep.subr.bf16.mxu0 0
        %5335 = vmatpush1.bf16.msra.mxu0 %v4001
        %5336 = vmatprep.subr.bf16.mxu0 0
        %5337 = vmatpush1.bf16.msra.mxu0 %v4002
        %5338 = vmatprep.subr.bf16.mxu0 0
        %5339 = vmatpush1.bf16.msra.mxu0 %v4003
        %5340 = vmatprep.mubr.bf16.mxu0 %v839
        %5341 = vmatmul.mubr.bf16.gmra.mrb[0].mxu0 %v838
        %v5342 = vpop.f32.mrb[0].mxu0
        %v5343 = vadd.f32 %v5303, %v5342
        %v5344 = vpop.f32.mrb[0].mxu0
        %v5345 = vpop.f32.mrb[0].mxu0
        %v5346 = vpop.f32.mrb[0].mxu0
        %5347 = vdwg.mxu0
        %5348 = vmatprep.subr.bf16.mxu0 0
        %5349 = vmatpush1.bf16.msra.mxu0 %v4004
        %5350 = vmatprep.subr.bf16.mxu0 0
        %5351 = vmatpush1.bf16.msra.mxu0 %v4005
        %5352 = vmatprep.subr.bf16.mxu0 0
        %5353 = vmatpush1.bf16.msra.mxu0 %v4006
        %5354 = vmatprep.subr.bf16.mxu0 0
        %5355 = vmatpush1.bf16.msra.mxu0 %v4007
        %5356 = vmatprep.subr.bf16.mxu0 0
        %5357 = vmatpush1.bf16.msra.mxu0 %v4008
        %5358 = vmatprep.subr.bf16.mxu0 0
        %5359 = vmatpush1.bf16.msra.mxu0 %v4009
        %5360 = vmatprep.subr.bf16.mxu0 0
        %5361 = vmatpush1.bf16.msra.mxu0 %v4010
        %5362 = vmatprep.subr.bf16.mxu0 0
        %5363 = vmatpush1.bf16.msra.mxu0 %v4011
        %5364 = vmatprep.subr.bf16.mxu0 0
        %5365 = vmatpush1.bf16.msra.mxu0 %v4012
        %5366 = vmatprep.subr.bf16.mxu0 0
        %5367 = vmatpush1.bf16.msra.mxu0 %v4013
        %5368 = vmatprep.subr.bf16.mxu0 0
        %5369 = vmatpush1.bf16.msra.mxu0 %v4014
        %5370 = vmatprep.subr.bf16.mxu0 0
        %5371 = vmatpush1.bf16.msra.mxu0 %v4015
        %5372 = vmatprep.subr.bf16.mxu0 0
        %5373 = vmatpush1.bf16.msra.mxu0 %v4016
        %5374 = vmatprep.subr.bf16.mxu0 0
        %5375 = vmatpush1.bf16.msra.mxu0 %v4017
        %5376 = vmatprep.subr.bf16.mxu0 0
        %5377 = vmatpush1.bf16.msra.mxu0 %v4018
        %5378 = vmatprep.subr.bf16.mxu0 0
        %5379 = vmatpush1.bf16.msra.mxu0 %v4019
        %5380 = vmatprep.mubr.bf16.mxu0 %v841
        %5381 = vmatmul.mubr.bf16.gmra.mrb[0].mxu0 %v840
        %v5382 = vpop.f32.mrb[0].mxu0
        %v5383 = vadd.f32 %v5343, %v5382
        %v5384 = vpop.f32.mrb[0].mxu0
        %v5385 = vpop.f32.mrb[0].mxu0
        %v5386 = vpop.f32.mrb[0].mxu0
        %5387 = vdwg.mxu0
        %5388 = vmatprep.subr.bf16.mxu0 0
        %5389 = vmatpush1.bf16.msra.mxu0 %v4020
        %5390 = vmatprep.subr.bf16.mxu0 0
        %5391 = vmatpush1.bf16.msra.mxu0 %v4021
        %5392 = vmatprep.subr.bf16.mxu0 0
        %5393 = vmatpush1.bf16.msra.mxu0 %v4022
        %5394 = vmatprep.subr.bf16.mxu0 0
        %5395 = vmatpush1.bf16.msra.mxu0 %v4023
        %5396 = vmatprep.subr.bf16.mxu0 0
        %5397 = vmatpush1.bf16.msra.mxu0 %v4024
        %5398 = vmatprep.subr.bf16.mxu0 0
        %5399 = vmatpush1.bf16.msra.mxu0 %v4025
        %5400 = vmatprep.subr.bf16.mxu0 0
        %5401 = vmatpush1.bf16.msra.mxu0 %v4026
        %5402 = vmatprep.subr.bf16.mxu0 0
        %5403 = vmatpush1.bf16.msra.mxu0 %v4027
        %5404 = vmatprep.subr.bf16.mxu0 0
        %5405 = vmatpush1.bf16.msra.mxu0 %v4028
        %5406 = vmatprep.subr.bf16.mxu0 0
        %5407 = vmatpush1.bf16.msra.mxu0 %v4029
        %5408 = vmatprep.subr.bf16.mxu0 0
        %5409 = vmatpush1.bf16.msra.mxu0 %v4030
        %5410 = vmatprep.subr.bf16.mxu0 0
        %5411 = vmatpush1.bf16.msra.mxu0 %v4031
        %5412 = vmatprep.subr.bf16.mxu0 0
        %5413 = vmatpush1.bf16.msra.mxu0 %v4032
        %5414 = vmatprep.subr.bf16.mxu0 0
        %5415 = vmatpush1.bf16.msra.mxu0 %v4033
        %5416 = vmatprep.subr.bf16.mxu0 0
        %5417 = vmatpush1.bf16.msra.mxu0 %v4034
        %5418 = vmatprep.subr.bf16.mxu0 0
        %5419 = vmatpush1.bf16.msra.mxu0 %v4035
        %5420 = vmatprep.mubr.bf16.mxu0 %v843
        %5421 = vmatmul.mubr.bf16.gmra.mrb[0].mxu0 %v842
        %v5422 = vpop.f32.mrb[0].mxu0
        %v5423 = vadd.f32 %v5383, %v5422
        %v5424 = vpop.f32.mrb[0].mxu0
        %v5425 = vpop.f32.mrb[0].mxu0
        %v5426 = vpop.f32.mrb[0].mxu0
        %5427 = vdwg.mxu0
        %5428 = vmatprep.subr.bf16.mxu0 0
        %5429 = vmatpush1.bf16.msra.mxu0 %v4036
        %5430 = vmatprep.subr.bf16.mxu0 0
        %5431 = vmatpush1.bf16.msra.mxu0 %v4037
        %5432 = vmatprep.subr.bf16.mxu0 0
        %5433 = vmatpush1.bf16.msra.mxu0 %v4038
        %5434 = vmatprep.subr.bf16.mxu0 0
        %5435 = vmatpush1.bf16.msra.mxu0 %v4039
        %5436 = vmatprep.subr.bf16.mxu0 0
        %5437 = vmatpush1.bf16.msra.mxu0 %v4040
        %5438 = vmatprep.subr.bf16.mxu0 0
        %5439 = vmatpush1.bf16.msra.mxu0 %v4041
        %5440 = vmatprep.subr.bf16.mxu0 0
        %5441 = vmatpush1.bf16.msra.mxu0 %v4042
        %5442 = vmatprep.subr.bf16.mxu0 0
        %5443 = vmatpush1.bf16.msra.mxu0 %v4043
        %5444 = vmatprep.subr.bf16.mxu0 0
        %5445 = vmatpush1.bf16.msra.mxu0 %v4044
        %5446 = vmatprep.subr.bf16.mxu0 0
        %5447 = vmatpush1.bf16.msra.mxu0 %v4045
        %5448 = vmatprep.subr.bf16.mxu0 0
        %5449 = vmatpush1.bf16.msra.mxu0 %v4046
        %5450 = vmatprep.subr.bf16.mxu0 0
        %5451 = vmatpush1.bf16.msra.mxu0 %v4047
        %5452 = vmatprep.subr.bf16.mxu0 0
        %5453 = vmatpush1.bf16.msra.mxu0 %v4048
        %5454 = vmatprep.subr.bf16.mxu0 0
        %5455 = vmatpush1.bf16.msra.mxu0 %v4049
        %5456 = vmatprep.subr.bf16.mxu0 0
        %5457 = vmatpush1.bf16.msra.mxu0 %v4050
        %5458 = vmatprep.subr.bf16.mxu0 0
        %5459 = vmatpush1.bf16.msra.mxu0 %v4051
        %5460 = vmatprep.mubr.bf16.mxu0 %v845
        %5461 = vmatmul.mubr.bf16.gmra.mrb[0].mxu0 %v844
        %v5462 = vpop.f32.mrb[0].mxu0
        %v5463 = vadd.f32 %v5423, %v5462
        %v5464 = vpop.f32.mrb[0].mxu0
        %v5465 = vpop.f32.mrb[0].mxu0
        %v5466 = vpop.f32.mrb[0].mxu0
        %5467 = vdwg.mxu0
        %5468 = vmatprep.subr.bf16.mxu0 0
        %5469 = vmatpush1.bf16.msra.mxu0 %v4052
        %5470 = vmatprep.subr.bf16.mxu0 0
        %5471 = vmatpush1.bf16.msra.mxu0 %v4053
        %5472 = vmatprep.subr.bf16.mxu0 0
        %5473 = vmatpush1.bf16.msra.mxu0 %v4054
        %5474 = vmatprep.subr.bf16.mxu0 0
        %5475 = vmatpush1.bf16.msra.mxu0 %v4055
        %5476 = vmatprep.subr.bf16.mxu0 0
        %5477 = vmatpush1.bf16.msra.mxu0 %v4056
        %5478 = vmatprep.subr.bf16.mxu0 0
        %5479 = vmatpush1.bf16.msra.mxu0 %v4057
        %5480 = vmatprep.subr.bf16.mxu0 0
        %5481 = vmatpush1.bf16.msra.mxu0 %v4058
        %5482 = vmatprep.subr.bf16.mxu0 0
        %5483 = vmatpush1.bf16.msra.mxu0 %v4059
        %5484 = vmatprep.subr.bf16.mxu0 0
        %5485 = vmatpush1.bf16.msra.mxu0 %v4060
        %5486 = vmatprep.subr.bf16.mxu0 0
        %5487 = vmatpush1.bf16.msra.mxu0 %v4061
        %5488 = vmatprep.subr.bf16.mxu0 0
        %5489 = vmatpush1.bf16.msra.mxu0 %v4062
        %5490 = vmatprep.subr.bf16.mxu0 0
        %5491 = vmatpush1.bf16.msra.mxu0 %v4063
        %5492 = vmatprep.subr.bf16.mxu0 0
        %5493 = vmatpush1.bf16.msra.mxu0 %v4064
        %5494 = vmatprep.subr.bf16.mxu0 0
        %5495 = vmatpush1.bf16.msra.mxu0 %v4065
        %5496 = vmatprep.subr.bf16.mxu0 0
        %5497 = vmatpush1.bf16.msra.mxu0 %v4066
        %5498 = vmatprep.subr.bf16.mxu0 0
        %5499 = vmatpush1.bf16.msra.mxu0 %v4067
        %5500 = vmatprep.mubr.bf16.mxu0 %v847
        %5501 = vmatmul.mubr.bf16.gmra.mrb[0].mxu0 %v846
        %v5502 = vpop.f32.mrb[0].mxu0
        %v5503 = vadd.f32 %v5463, %v5502
        %v5504 = vpop.f32.mrb[0].mxu0
        %v5505 = vpop.f32.mrb[0].mxu0
        %v5506 = vpop.f32.mrb[0].mxu0
        %5507 = vdwg.mxu0
        %5508 = vmatprep.subr.bf16.mxu0 0
        %5509 = vmatpush1.bf16.msra.mxu0 %v4068
        %5510 = vmatprep.subr.bf16.mxu0 0
        %5511 = vmatpush1.bf16.msra.mxu0 %v4069
        %5512 = vmatprep.subr.bf16.mxu0 0
        %5513 = vmatpush1.bf16.msra.mxu0 %v4070
        %5514 = vmatprep.subr.bf16.mxu0 0
        %5515 = vmatpush1.bf16.msra.mxu0 %v4071
        %5516 = vmatprep.subr.bf16.mxu0 0
        %5517 = vmatpush1.bf16.msra.mxu0 %v4072
        %5518 = vmatprep.subr.bf16.mxu0 0
        %5519 = vmatpush1.bf16.msra.mxu0 %v4073
        %5520 = vmatprep.subr.bf16.mxu0 0
        %5521 = vmatpush1.bf16.msra.mxu0 %v4074
        %5522 = vmatprep.subr.bf16.mxu0 0
        %5523 = vmatpush1.bf16.msra.mxu0 %v4075
        %5524 = vmatprep.subr.bf16.mxu0 0
        %5525 = vmatpush1.bf16.msra.mxu0 %v4076
        %5526 = vmatprep.subr.bf16.mxu0 0
        %5527 = vmatpush1.bf16.msra.mxu0 %v4077
        %5528 = vmatprep.subr.bf16.mxu0 0
        %5529 = vmatpush1.bf16.msra.mxu0 %v4078
        %5530 = vmatprep.subr.bf16.mxu0 0
        %5531 = vmatpush1.bf16.msra.mxu0 %v4079
        %5532 = vmatprep.subr.bf16.mxu0 0
        %5533 = vmatpush1.bf16.msra.mxu0 %v4080
        %5534 = vmatprep.subr.bf16.mxu0 0
        %5535 = vmatpush1.bf16.msra.mxu0 %v4081
        %5536 = vmatprep.subr.bf16.mxu0 0
        %5537 = vmatpush1.bf16.msra.mxu0 %v4082
        %5538 = vmatprep.subr.bf16.mxu0 0
        %5539 = vmatpush1.bf16.msra.mxu0 %v4083
        %5540 = vmatprep.mubr.bf16.mxu0 %v849
        %5541 = vmatmul.mubr.bf16.gmra.mrb[0].mxu0 %v848
        %v5542 = vpop.f32.mrb[0].mxu0
        %v5543 = vadd.f32 %v5503, %v5542
        %v5544 = vpop.f32.mrb[0].mxu0
        %v5545 = vpop.f32.mrb[0].mxu0
        %v5546 = vpop.f32.mrb[0].mxu0
        %5547 = vdwg.mxu0
        %5548 = vmatprep.subr.bf16.mxu0 0
        %5549 = vmatpush1.bf16.msra.mxu0 %v4084
        %5550 = vmatprep.subr.bf16.mxu0 0
        %5551 = vmatpush1.bf16.msra.mxu0 %v4085
        %5552 = vmatprep.subr.bf16.mxu0 0
        %5553 = vmatpush1.bf16.msra.mxu0 %v4086
        %5554 = vmatprep.subr.bf16.mxu0 0
        %5555 = vmatpush1.bf16.msra.mxu0 %v4087
        %5556 = vmatprep.subr.bf16.mxu0 0
        %5557 = vmatpush1.bf16.msra.mxu0 %v4088
        %5558 = vmatprep.subr.bf16.mxu0 0
        %5559 = vmatpush1.bf16.msra.mxu0 %v4089
        %5560 = vmatprep.subr.bf16.mxu0 0
        %5561 = vmatpush1.bf16.msra.mxu0 %v4090
        %5562 = vmatprep.subr.bf16.mxu0 0
        %5563 = vmatpush1.bf16.msra.mxu0 %v4091
        %5564 = vmatprep.subr.bf16.mxu0 0
        %5565 = vmatpush1.bf16.msra.mxu0 %v4092
        %5566 = vmatprep.subr.bf16.mxu0 0
        %5567 = vmatpush1.bf16.msra.mxu0 %v4093
        %5568 = vmatprep.subr.bf16.mxu0 0
        %5569 = vmatpush1.bf16.msra.mxu0 %v4094
        %5570 = vmatprep.subr.bf16.mxu0 0
        %5571 = vmatpush1.bf16.msra.mxu0 %v4095
        %5572 = vmatprep.subr.bf16.mxu0 0
        %5573 = vmatpush1.bf16.msra.mxu0 %v4096
        %5574 = vmatprep.subr.bf16.mxu0 0
        %5575 = vmatpush1.bf16.msra.mxu0 %v4097
        %5576 = vmatprep.subr.bf16.mxu0 0
        %5577 = vmatpush1.bf16.msra.mxu0 %v4098
        %5578 = vmatprep.subr.bf16.mxu0 0
        %5579 = vmatpush1.bf16.msra.mxu0 %v4099
        %5580 = vmatprep.mubr.bf16.mxu0 %v851
        %5581 = vmatmul.mubr.bf16.gmra.mrb[0].mxu0 %v850
        %v5582 = vpop.f32.mrb[0].mxu0
        %v5583 = vadd.f32 %v5543, %v5582
        %v5584 = vpop.f32.mrb[0].mxu0
        %v5585 = vpop.f32.mrb[0].mxu0
        %v5586 = vpop.f32.mrb[0].mxu0
        %5587 = vdwg.mxu0
        %5588 = vmatprep.subr.bf16.mxu0 0
        %5589 = vmatpush1.bf16.msra.mxu0 %v4100
        %5590 = vmatprep.subr.bf16.mxu0 0
        %5591 = vmatpush1.bf16.msra.mxu0 %v4101
        %5592 = vmatprep.subr.bf16.mxu0 0
        %5593 = vmatpush1.bf16.msra.mxu0 %v4102
        %5594 = vmatprep.subr.bf16.mxu0 0
        %5595 = vmatpush1.bf16.msra.mxu0 %v4103
        %5596 = vmatprep.subr.bf16.mxu0 0
        %5597 = vmatpush1.bf16.msra.mxu0 %v4104
        %5598 = vmatprep.subr.bf16.mxu0 0
        %5599 = vmatpush1.bf16.msra.mxu0 %v4105
        %5600 = vmatprep.subr.bf16.mxu0 0
        %5601 = vmatpush1.bf16.msra.mxu0 %v4106
        %5602 = vmatprep.subr.bf16.mxu0 0
        %5603 = vmatpush1.bf16.msra.mxu0 %v4107
        %5604 = vmatprep.subr.bf16.mxu0 0
        %5605 = vmatpush1.bf16.msra.mxu0 %v4108
        %5606 = vmatprep.subr.bf16.mxu0 0
        %5607 = vmatpush1.bf16.msra.mxu0 %v4109
        %5608 = vmatprep.subr.bf16.mxu0 0
        %5609 = vmatpush1.bf16.msra.mxu0 %v4110
        %5610 = vmatprep.subr.bf16.mxu0 0
        %5611 = vmatpush1.bf16.msra.mxu0 %v4111
        %5612 = vmatprep.subr.bf16.mxu0 0
        %5613 = vmatpush1.bf16.msra.mxu0 %v4112
        %5614 = vmatprep.subr.bf16.mxu0 0
        %5615 = vmatpush1.bf16.msra.mxu0 %v4113
        %5616 = vmatprep.subr.bf16.mxu0 0
        %5617 = vmatpush1.bf16.msra.mxu0 %v4114
        %5618 = vmatprep.subr.bf16.mxu0 0
        %5619 = vmatpush1.bf16.msra.mxu0 %v4115
        %5620 = vmatprep.mubr.bf16.mxu0 %v853
        %5621 = vmatmul.mubr.bf16.gmra.mrb[0].mxu0 %v852
        %v5622 = vpop.f32.mrb[0].mxu0
        %v5623 = vadd.f32 %v5583, %v5622
        %v5624 = vpop.f32.mrb[0].mxu0
        %v5625 = vpop.f32.mrb[0].mxu0
        %v5626 = vpop.f32.mrb[0].mxu0
        %5627 = vdwg.mxu0
        %5628 = vmatprep.subr.bf16.mxu0 0
        %5629 = vmatpush1.bf16.msra.mxu0 %v4116
        %5630 = vmatprep.subr.bf16.mxu0 0
        %5631 = vmatpush1.bf16.msra.mxu0 %v4117
        %5632 = vmatprep.subr.bf16.mxu0 0
        %5633 = vmatpush1.bf16.msra.mxu0 %v4118
        %5634 = vmatprep.subr.bf16.mxu0 0
        %5635 = vmatpush1.bf16.msra.mxu0 %v4119
        %5636 = vmatprep.subr.bf16.mxu0 0
        %5637 = vmatpush1.bf16.msra.mxu0 %v4120
        %5638 = vmatprep.subr.bf16.mxu0 0
        %5639 = vmatpush1.bf16.msra.mxu0 %v4121
        %5640 = vmatprep.subr.bf16.mxu0 0
        %5641 = vmatpush1.bf16.msra.mxu0 %v4122
        %5642 = vmatprep.subr.bf16.mxu0 0
        %5643 = vmatpush1.bf16.msra.mxu0 %v4123
        %5644 = vmatprep.subr.bf16.mxu0 0
        %5645 = vmatpush1.bf16.msra.mxu0 %v4124
        %5646 = vmatprep.subr.bf16.mxu0 0
        %5647 = vmatpush1.bf16.msra.mxu0 %v4125
        %5648 = vmatprep.subr.bf16.mxu0 0
        %5649 = vmatpush1.bf16.msra.mxu0 %v4126
        %5650 = vmatprep.subr.bf16.mxu0 0
        %5651 = vmatpush1.bf16.msra.mxu0 %v4127
        %5652 = vmatprep.subr.bf16.mxu0 0
        %5653 = vmatpush1.bf16.msra.mxu0 %v4128
        %5654 = vmatprep.subr.bf16.mxu0 0
        %5655 = vmatpush1.bf16.msra.mxu0 %v4129
        %5656 = vmatprep.subr.bf16.mxu0 0
        %5657 = vmatpush1.bf16.msra.mxu0 %v4130
        %5658 = vmatprep.subr.bf16.mxu0 0
        %5659 = vmatpush1.bf16.msra.mxu0 %v4131
        %5660 = vmatprep.mubr.bf16.mxu0 %v855
        %5661 = vmatmul.mubr.bf16.gmra.mrb[0].mxu0 %v854
        %v5662 = vpop.f32.mrb[0].mxu0
        %v5663 = vadd.f32 %v5623, %v5662
        %v5664 = vpop.f32.mrb[0].mxu0
        %v5665 = vpop.f32.mrb[0].mxu0
        %v5666 = vpop.f32.mrb[0].mxu0
        %5667 = vdwg.mxu0
        %5668 = vmatprep.subr.bf16.mxu0 0
        %5669 = vmatpush1.bf16.msra.mxu0 %v4132
        %5670 = vmatprep.subr.bf16.mxu0 0
        %5671 = vmatpush1.bf16.msra.mxu0 %v4133
        %5672 = vmatprep.subr.bf16.mxu0 0
        %5673 = vmatpush1.bf16.msra.mxu0 %v4134
        %5674 = vmatprep.subr.bf16.mxu0 0
        %5675 = vmatpush1.bf16.msra.mxu0 %v4135
        %5676 = vmatprep.subr.bf16.mxu0 0
        %5677 = vmatpush1.bf16.msra.mxu0 %v4136
        %5678 = vmatprep.subr.bf16.mxu0 0
        %5679 = vmatpush1.bf16.msra.mxu0 %v4137
        %5680 = vmatprep.subr.bf16.mxu0 0
        %5681 = vmatpush1.bf16.msra.mxu0 %v4138
        %5682 = vmatprep.subr.bf16.mxu0 0
        %5683 = vmatpush1.bf16.msra.mxu0 %v4139
        %5684 = vmatprep.subr.bf16.mxu0 0
        %5685 = vmatpush1.bf16.msra.mxu0 %v4140
        %5686 = vmatprep.subr.bf16.mxu0 0
        %5687 = vmatpush1.bf16.msra.mxu0 %v4141
        %5688 = vmatprep.subr.bf16.mxu0 0
        %5689 = vmatpush1.bf16.msra.mxu0 %v4142
        %5690 = vmatprep.subr.bf16.mxu0 0
        %5691 = vmatpush1.bf16.msra.mxu0 %v4143
        %5692 = vmatprep.subr.bf16.mxu0 0
        %5693 = vmatpush1.bf16.msra.mxu0 %v4144
        %5694 = vmatprep.subr.bf16.mxu0 0
        %5695 = vmatpush1.bf16.msra.mxu0 %v4145
        %5696 = vmatprep.subr.bf16.mxu0 0
        %5697 = vmatpush1.bf16.msra.mxu0 %v4146
        %5698 = vmatprep.subr.bf16.mxu0 0
        %5699 = vmatpush1.bf16.msra.mxu0 %v4147
        %5700 = vmatprep.mubr.bf16.mxu0 %v857
        %5701 = vmatmul.mubr.bf16.gmra.mrb[0].mxu0 %v856
        %v5702 = vpop.f32.mrb[0].mxu0
        %v5703 = vadd.f32 %v5663, %v5702
        %v5704 = vpop.f32.mrb[0].mxu0
        %v5705 = vpop.f32.mrb[0].mxu0
        %v5706 = vpop.f32.mrb[0].mxu0
        %5707 = vdwg.mxu0
        %5708 = vmatprep.subr.bf16.mxu0 0
        %5709 = vmatpush1.bf16.msra.mxu0 %v4148
        %5710 = vmatprep.subr.bf16.mxu0 0
        %5711 = vmatpush1.bf16.msra.mxu0 %v4149
        %5712 = vmatprep.subr.bf16.mxu0 0
        %5713 = vmatpush1.bf16.msra.mxu0 %v4150
        %5714 = vmatprep.subr.bf16.mxu0 0
        %5715 = vmatpush1.bf16.msra.mxu0 %v4151
        %5716 = vmatprep.subr.bf16.mxu0 0
        %5717 = vmatpush1.bf16.msra.mxu0 %v4152
        %5718 = vmatprep.subr.bf16.mxu0 0
        %5719 = vmatpush1.bf16.msra.mxu0 %v4153
        %5720 = vmatprep.subr.bf16.mxu0 0
        %5721 = vmatpush1.bf16.msra.mxu0 %v4154
        %5722 = vmatprep.subr.bf16.mxu0 0
        %5723 = vmatpush1.bf16.msra.mxu0 %v4155
        %5724 = vmatprep.subr.bf16.mxu0 0
        %5725 = vmatpush1.bf16.msra.mxu0 %v4156
        %5726 = vmatprep.subr.bf16.mxu0 0
        %5727 = vmatpush1.bf16.msra.mxu0 %v4157
        %5728 = vmatprep.subr.bf16.mxu0 0
        %5729 = vmatpush1.bf16.msra.mxu0 %v4158
        %5730 = vmatprep.subr.bf16.mxu0 0
        %5731 = vmatpush1.bf16.msra.mxu0 %v4159
        %5732 = vmatprep.subr.bf16.mxu0 0
        %5733 = vmatpush1.bf16.msra.mxu0 %v4160
        %5734 = vmatprep.subr.bf16.mxu0 0
        %5735 = vmatpush1.bf16.msra.mxu0 %v4161
        %5736 = vmatprep.subr.bf16.mxu0 0
        %5737 = vmatpush1.bf16.msra.mxu0 %v4162
        %5738 = vmatprep.subr.bf16.mxu0 0
        %5739 = vmatpush1.bf16.msra.mxu0 %v4163
        %5740 = vmatprep.mubr.bf16.mxu0 %v859
        %5741 = vmatmul.mubr.bf16.gmra.mrb[0].mxu0 %v858
        %v5742 = vpop.f32.mrb[0].mxu0
        %v5743 = vadd.f32 %v5703, %v5742
        %v5744 = vpop.f32.mrb[0].mxu0
        %v5745 = vpop.f32.mrb[0].mxu0
        %v5746 = vpop.f32.mrb[0].mxu0
        %5747 = vdwg.mxu0
        %5748 = vmatprep.subr.bf16.mxu0 0
        %5749 = vmatpush1.bf16.msra.mxu0 %v4164
        %5750 = vmatprep.subr.bf16.mxu0 0
        %5751 = vmatpush1.bf16.msra.mxu0 %v4165
        %5752 = vmatprep.subr.bf16.mxu0 0
        %5753 = vmatpush1.bf16.msra.mxu0 %v4166
        %5754 = vmatprep.subr.bf16.mxu0 0
        %5755 = vmatpush1.bf16.msra.mxu0 %v4167
        %5756 = vmatprep.subr.bf16.mxu0 0
        %5757 = vmatpush1.bf16.msra.mxu0 %v4168
        %5758 = vmatprep.subr.bf16.mxu0 0
        %5759 = vmatpush1.bf16.msra.mxu0 %v4169
        %5760 = vmatprep.subr.bf16.mxu0 0
        %5761 = vmatpush1.bf16.msra.mxu0 %v4170
        %5762 = vmatprep.subr.bf16.mxu0 0
        %5763 = vmatpush1.bf16.msra.mxu0 %v4171
        %5764 = vmatprep.subr.bf16.mxu0 0
        %5765 = vmatpush1.bf16.msra.mxu0 %v4172
        %5766 = vmatprep.subr.bf16.mxu0 0
        %5767 = vmatpush1.bf16.msra.mxu0 %v4173
        %5768 = vmatprep.subr.bf16.mxu0 0
        %5769 = vmatpush1.bf16.msra.mxu0 %v4174
        %5770 = vmatprep.subr.bf16.mxu0 0
        %5771 = vmatpush1.bf16.msra.mxu0 %v4175
        %5772 = vmatprep.subr.bf16.mxu0 0
        %5773 = vmatpush1.bf16.msra.mxu0 %v4176
        %5774 = vmatprep.subr.bf16.mxu0 0
        %5775 = vmatpush1.bf16.msra.mxu0 %v4177
        %5776 = vmatprep.subr.bf16.mxu0 0
        %5777 = vmatpush1.bf16.msra.mxu0 %v4178
        %5778 = vmatprep.subr.bf16.mxu0 0
        %5779 = vmatpush1.bf16.msra.mxu0 %v4179
        %5780 = vmatprep.mubr.bf16.mxu0 %v861
        %5781 = vmatmul.mubr.bf16.gmra.mrb[0].mxu0 %v860
        %v5782 = vpop.f32.mrb[0].mxu0
        %v5783 = vadd.f32 %v5743, %v5782
        %v5784 = vpop.f32.mrb[0].mxu0
        %v5785 = vpop.f32.mrb[0].mxu0
        %v5786 = vpop.f32.mrb[0].mxu0
        %5787 = vdwg.mxu0
        %5788 = vmatprep.subr.bf16.mxu0 0
        %5789 = vmatpush1.bf16.msra.mxu0 %v4180
        %5790 = vmatprep.subr.bf16.mxu0 0
        %5791 = vmatpush1.bf16.msra.mxu0 %v4181
        %5792 = vmatprep.subr.bf16.mxu0 0
        %5793 = vmatpush1.bf16.msra.mxu0 %v4182
        %5794 = vmatprep.subr.bf16.mxu0 0
        %5795 = vmatpush1.bf16.msra.mxu0 %v4183
        %5796 = vmatprep.subr.bf16.mxu0 0
        %5797 = vmatpush1.bf16.msra.mxu0 %v4184
        %5798 = vmatprep.subr.bf16.mxu0 0
        %5799 = vmatpush1.bf16.msra.mxu0 %v4185
        %5800 = vmatprep.subr.bf16.mxu0 0
        %5801 = vmatpush1.bf16.msra.mxu0 %v4186
        %5802 = vmatprep.subr.bf16.mxu0 0
        %5803 = vmatpush1.bf16.msra.mxu0 %v4187
        %5804 = vmatprep.subr.bf16.mxu0 0
        %5805 = vmatpush1.bf16.msra.mxu0 %v4188
        %5806 = vmatprep.subr.bf16.mxu0 0
        %5807 = vmatpush1.bf16.msra.mxu0 %v4189
        %5808 = vmatprep.subr.bf16.mxu0 0
        %5809 = vmatpush1.bf16.msra.mxu0 %v4190
        %5810 = vmatprep.subr.bf16.mxu0 0
        %5811 = vmatpush1.bf16.msra.mxu0 %v4191
        %5812 = vmatprep.subr.bf16.mxu0 0
        %5813 = vmatpush1.bf16.msra.mxu0 %v4192
        %5814 = vmatprep.subr.bf16.mxu0 0
        %5815 = vmatpush1.bf16.msra.mxu0 %v4193
        %5816 = vmatprep.subr.bf16.mxu0 0
        %5817 = vmatpush1.bf16.msra.mxu0 %v4194
        %5818 = vmatprep.subr.bf16.mxu0 0
        %5819 = vmatpush1.bf16.msra.mxu0 %v4195
        %5820 = vmatprep.mubr.bf16.mxu0 %v863
        %5821 = vmatmul.mubr.bf16.gmra.mrb[0].mxu0 %v862
        %v5822 = vpop.f32.mrb[0].mxu0
        %v5823 = vadd.f32 %v5783, %v5822
        %v5824 = vpop.f32.mrb[0].mxu0
        %v5825 = vpop.f32.mrb[0].mxu0
        %v5826 = vpop.f32.mrb[0].mxu0
        %5827 = vdwg.mxu0
        %5828 = vmatprep.subr.bf16.mxu0 0
        %5829 = vmatpush1.bf16.msra.mxu0 %v4196
        %5830 = vmatprep.subr.bf16.mxu0 0
        %5831 = vmatpush1.bf16.msra.mxu0 %v4197
        %5832 = vmatprep.subr.bf16.mxu0 0
        %5833 = vmatpush1.bf16.msra.mxu0 %v4198
        %5834 = vmatprep.subr.bf16.mxu0 0
        %5835 = vmatpush1.bf16.msra.mxu0 %v4199
        %5836 = vmatprep.subr.bf16.mxu0 0
        %5837 = vmatpush1.bf16.msra.mxu0 %v4200
        %5838 = vmatprep.subr.bf16.mxu0 0
        %5839 = vmatpush1.bf16.msra.mxu0 %v4201
        %5840 = vmatprep.subr.bf16.mxu0 0
        %5841 = vmatpush1.bf16.msra.mxu0 %v4202
        %5842 = vmatprep.subr.bf16.mxu0 0
        %5843 = vmatpush1.bf16.msra.mxu0 %v4203
        %5844 = vmatprep.subr.bf16.mxu0 0
        %5845 = vmatpush1.bf16.msra.mxu0 %v4204
        %5846 = vmatprep.subr.bf16.mxu0 0
        %5847 = vmatpush1.bf16.msra.mxu0 %v4205
        %5848 = vmatprep.subr.bf16.mxu0 0
        %5849 = vmatpush1.bf16.msra.mxu0 %v4206
        %5850 = vmatprep.subr.bf16.mxu0 0
        %5851 = vmatpush1.bf16.msra.mxu0 %v4207
        %5852 = vmatprep.subr.bf16.mxu0 0
        %5853 = vmatpush1.bf16.msra.mxu0 %v4208
        %5854 = vmatprep.subr.bf16.mxu0 0
        %5855 = vmatpush1.bf16.msra.mxu0 %v4209
        %5856 = vmatprep.subr.bf16.mxu0 0
        %5857 = vmatpush1.bf16.msra.mxu0 %v4210
        %5858 = vmatprep.subr.bf16.mxu0 0
        %5859 = vmatpush1.bf16.msra.mxu0 %v4211
        %5860 = vmatprep.mubr.bf16.mxu0 %v865
        %5861 = vmatmul.mubr.bf16.gmra.mrb[0].mxu0 %v864
        %v5862 = vpop.f32.mrb[0].mxu0
        %v5863 = vadd.f32 %v5823, %v5862
        %v5864 = vpop.f32.mrb[0].mxu0
        %v5865 = vpop.f32.mrb[0].mxu0
        %v5866 = vpop.f32.mrb[0].mxu0
        %5867 = vdwg.mxu0
        %5868 = vmatprep.subr.bf16.mxu0 0
        %5869 = vmatpush1.bf16.msra.mxu0 %v4212
        %5870 = vmatprep.subr.bf16.mxu0 0
        %5871 = vmatpush1.bf16.msra.mxu0 %v4213
        %5872 = vmatprep.subr.bf16.mxu0 0
        %5873 = vmatpush1.bf16.msra.mxu0 %v4214
        %5874 = vmatprep.subr.bf16.mxu0 0
        %5875 = vmatpush1.bf16.msra.mxu0 %v4215
        %5876 = vmatprep.subr.bf16.mxu0 0
        %5877 = vmatpush1.bf16.msra.mxu0 %v4216
        %5878 = vmatprep.subr.bf16.mxu0 0
        %5879 = vmatpush1.bf16.msra.mxu0 %v4217
        %5880 = vmatprep.subr.bf16.mxu0 0
        %5881 = vmatpush1.bf16.msra.mxu0 %v4218
        %5882 = vmatprep.subr.bf16.mxu0 0
        %5883 = vmatpush1.bf16.msra.mxu0 %v4219
        %5884 = vmatprep.subr.bf16.mxu0 0
        %5885 = vmatpush1.bf16.msra.mxu0 %v4220
        %5886 = vmatprep.subr.bf16.mxu0 0
        %5887 = vmatpush1.bf16.msra.mxu0 %v4221
        %5888 = vmatprep.subr.bf16.mxu0 0
        %5889 = vmatpush1.bf16.msra.mxu0 %v4222
        %5890 = vmatprep.subr.bf16.mxu0 0
        %5891 = vmatpush1.bf16.msra.mxu0 %v4223
        %5892 = vmatprep.subr.bf16.mxu0 0
        %5893 = vmatpush1.bf16.msra.mxu0 %v4224
        %5894 = vmatprep.subr.bf16.mxu0 0
        %5895 = vmatpush1.bf16.msra.mxu0 %v4225
        %5896 = vmatprep.subr.bf16.mxu0 0
        %5897 = vmatpush1.bf16.msra.mxu0 %v4226
        %5898 = vmatprep.subr.bf16.mxu0 0
        %5899 = vmatpush1.bf16.msra.mxu0 %v4227
        %5900 = vmatprep.mubr.bf16.mxu0 %v867
        %5901 = vmatmul.mubr.bf16.gmra.mrb[0].mxu0 %v866
        %v5902 = vpop.f32.mrb[0].mxu0
        %v5903 = vadd.f32 %v5863, %v5902
        %v5904 = vpop.f32.mrb[0].mxu0
        %v5905 = vpop.f32.mrb[0].mxu0
        %v5906 = vpop.f32.mrb[0].mxu0
        %5907 = vdwg.mxu0
        %v5908 = vadd.f32 %v462, %v5903
        %5909 = vst [vmem:[#allocation16] sm:$0x3] %v5908
        %p5910 = scmp.eq.s32.totalorder %s28, 3
        // Predicated region
        $region93: #{_mlp_forward_fused.1} parent=55 // pred_check
          %p5911 = pneg %p5910
        $region94: #{_mlp_forward_fused.1} parent=55 // pred_check_branch
          %5913 = sbr.rel (%p5911) target = $region96
        $region95: #{_mlp_forward_fused.1} parent=55 // pred_region
          %v5914 = vld [vmem:[#allocation16] sm:$0x3]
          %v5915 = vld [vmem:[#allocation5] sm:$0x1]
          %v5917 = vlaneseq
          %v5918 = vshrl.u32 %v5917, 7
          %v5919 = vsub.s32 0, %v5918
          %v5920 = vrot.slane %v5915, %v5919
          %v5922 = vadd.f32 %v5914, %v5920
          %v5923 = vtanh.pop %v5922
          %v5924 = vld [vmem:[#allocation7] sm:$0xff]
          %v5925 = vld [vmem:[#allocation7 + $0x8] sm:$0xff]
          %v5926 = vld [vmem:[#allocation7 + $0x10] sm:$0xff]
          %v5927 = vld [vmem:[#allocation7 + $0x18] sm:$0xff]
          %v5928 = vld [vmem:[#allocation7 + $0x20] sm:$0xff]
          %v5929 = vld [vmem:[#allocation7 + $0x28] sm:$0xff]
          %v5930 = vld [vmem:[#allocation7 + $0x30] sm:$0xff]
          %v5931 = vld [vmem:[#allocation7 + $0x38] sm:$0xff]
          %v5932 = vld [vmem:[#allocation7 + $0x40] sm:$0xff]
          %v5933 = vld [vmem:[#allocation7 + $0x48] sm:$0xff]
          %v5934 = vld [vmem:[#allocation7 + $0x50] sm:$0xff]
          %v5935 = vld [vmem:[#allocation7 + $0x58] sm:$0xff]
          %v5936 = vld [vmem:[#allocation7 + $0x60] sm:$0xff]
          %v5937 = vld [vmem:[#allocation7 + $0x68] sm:$0xff]
          %v5938 = vld [vmem:[#allocation7 + $0x70] sm:$0xff]
          %v5939 = vld [vmem:[#allocation7 + $0x78] sm:$0xff]
          %v5940 = vld [vmem:[#allocation8] sm:$0x1]
          %v5942 = vlaneseq
          %v5943 = vshrl.u32 %v5942, 7
          %v5944 = vsub.s32 0, %v5943
          %v5945 = vrot.slane %v5940, %v5944
          %5947 = vmatprep.subr.mxu0 0.0
          %5948 = vmatpush1.msra.mxu0 %v5924
          %5949 = vmatprep.subr.mxu0 0.0
          %5950 = vmatpush1.msra.mxu0 %v5925
          %5951 = vmatprep.subr.mxu0 0.0
          %5952 = vmatpush1.msra.mxu0 %v5926
          %5953 = vmatprep.subr.mxu0 0.0
          %5954 = vmatpush1.msra.mxu0 %v5927
          %5955 = vmatprep.subr.mxu0 0.0
          %5956 = vmatpush1.msra.mxu0 %v5928
          %5957 = vmatprep.subr.mxu0 0.0
          %5958 = vmatpush1.msra.mxu0 %v5929
          %5959 = vmatprep.subr.mxu0 0.0
          %5960 = vmatpush1.msra.mxu0 %v5930
          %5961 = vmatprep.subr.mxu0 0.0
          %5962 = vmatpush1.msra.mxu0 %v5931
          %5963 = vmatprep.subr.mxu0 0.0
          %5964 = vmatpush1.msra.mxu0 %v5932
          %5965 = vmatprep.subr.mxu0 0.0
          %5966 = vmatpush1.msra.mxu0 %v5933
          %5967 = vmatprep.subr.mxu0 0.0
          %5968 = vmatpush1.msra.mxu0 %v5934
          %5969 = vmatprep.subr.mxu0 0.0
          %5970 = vmatpush1.msra.mxu0 %v5935
          %5971 = vmatprep.subr.mxu0 0.0
          %5972 = vmatpush1.msra.mxu0 %v5936
          %5973 = vmatprep.subr.mxu0 0.0
          %5974 = vmatpush1.msra.mxu0 %v5937
          %5975 = vmatprep.subr.mxu0 0.0
          %5976 = vmatpush1.msra.mxu0 %v5938
          %5977 = vmatprep.subr.mxu0 0.0
          %5978 = vmatpush1.msra.mxu0 %v5939
          %5979 = vmatprep.subr.mxu0 0.0
          %5980 = vmatpush1.msra.mxu0 0.0
          %5981 = vmatprep.subr.mxu0 0.0
          %5982 = vmatpush1.msra.mxu0 0.0
          %5983 = vmatprep.subr.mxu0 0.0
          %5984 = vmatpush1.msra.mxu0 0.0
          %5985 = vmatprep.subr.mxu0 0.0
          %5986 = vmatpush1.msra.mxu0 0.0
          %5987 = vmatprep.subr.mxu0 0.0
          %5988 = vmatpush1.msra.mxu0 0.0
          %5989 = vmatprep.subr.mxu0 0.0
          %5990 = vmatpush1.msra.mxu0 0.0
          %5991 = vmatprep.subr.mxu0 0.0
          %5992 = vmatpush1.msra.mxu0 0.0
          %5993 = vmatprep.subr.mxu0 0.0
          %5994 = vmatpush1.msra.mxu0 0.0
          %5995 = vmatprep.subr.mxu0 0.0
          %5996 = vmatpush1.msra.mxu0 0.0
          %5997 = vmatprep.subr.mxu0 0.0
          %5998 = vmatpush1.msra.mxu0 0.0
          %5999 = vmatprep.subr.mxu0 0.0
          %6000 = vmatpush1.msra.mxu0 0.0
          %6001 = vmatprep.subr.mxu0 0.0
          %6002 = vmatpush1.msra.mxu0 0.0
          %6003 = vmatprep.subr.mxu0 0.0
          %6004 = vmatpush1.msra.mxu0 0.0
          %6005 = vmatprep.subr.mxu0 0.0
          %6006 = vmatpush1.msra.mxu0 0.0
          %6007 = vmatprep.subr.mxu0 0.0
          %6008 = vmatpush1.msra.mxu0 0.0
          %6009 = vmatprep.subr.mxu0 0.0
          %6010 = vmatpush1.msra.mxu0 0.0
          %6011 = vmatprep.mubr.f32.mxu0 0.0
          %6012 = vmatmul.mubr.f32.gmra.mrb[0].mxu0 %v5923
          %v6013 = vpop.f32.mrb[0].mxu0
          %v6014 = vadd.f32 %v5945, %v6013
          %v6015 = vpop.f32.mrb[0].mxu0
          %6016 = vdwg.mxu0
          %v6017 = vtanh.pop %v6014
          %v6018 = vld [vmem:[#allocation10] sm:$0xff]
          %v6019 = vld [vmem:[#allocation10 + $0x8] sm:$0xff]
          %v6020 = vld [vmem:[#allocation10 + $0x10] sm:$0xff]
          %v6021 = vld [vmem:[#allocation10 + $0x18] sm:$0xff]
          %v6022 = vld [vmem:[#allocation10 + $0x20] sm:$0xff]
          %v6023 = vld [vmem:[#allocation10 + $0x28] sm:$0xff]
          %v6024 = vld [vmem:[#allocation10 + $0x30] sm:$0xff]
          %v6025 = vld [vmem:[#allocation10 + $0x38] sm:$0xff]
          %v6026 = vld [vmem:[#allocation10 + $0x40] sm:$0xff]
          %v6027 = vld [vmem:[#allocation10 + $0x48] sm:$0xff]
          %v6028 = vld [vmem:[#allocation10 + $0x50] sm:$0xff]
          %v6029 = vld [vmem:[#allocation10 + $0x58] sm:$0xff]
          %v6030 = vld [vmem:[#allocation10 + $0x60] sm:$0xff]
          %v6031 = vld [vmem:[#allocation10 + $0x68] sm:$0xff]
          %v6032 = vld [vmem:[#allocation10 + $0x70] sm:$0xff]
          %v6033 = vld [vmem:[#allocation10 + $0x78] sm:$0xff]
          %v6034 = vld [vmem:[#allocation11] sm:$0x1]
          %v6036 = vlaneseq
          %v6037 = vshrl.u32 %v6036, 7
          %v6038 = vsub.s32 0, %v6037
          %v6039 = vrot.slane %v6034, %v6038
          %6041 = vmatprep.subr.mxu0 0.0
          %6042 = vmatpush1.msra.mxu0 %v6018
          %6043 = vmatprep.subr.mxu0 0.0
          %6044 = vmatpush1.msra.mxu0 %v6019
          %6045 = vmatprep.subr.mxu0 0.0
          %6046 = vmatpush1.msra.mxu0 %v6020
          %6047 = vmatprep.subr.mxu0 0.0
          %6048 = vmatpush1.msra.mxu0 %v6021
          %6049 = vmatprep.subr.mxu0 0.0
          %6050 = vmatpush1.msra.mxu0 %v6022
          %6051 = vmatprep.subr.mxu0 0.0
          %6052 = vmatpush1.msra.mxu0 %v6023
          %6053 = vmatprep.subr.mxu0 0.0
          %6054 = vmatpush1.msra.mxu0 %v6024
          %6055 = vmatprep.subr.mxu0 0.0
          %6056 = vmatpush1.msra.mxu0 %v6025
          %6057 = vmatprep.subr.mxu0 0.0
          %6058 = vmatpush1.msra.mxu0 %v6026
          %6059 = vmatprep.subr.mxu0 0.0
          %6060 = vmatpush1.msra.mxu0 %v6027
          %6061 = vmatprep.subr.mxu0 0.0
          %6062 = vmatpush1.msra.mxu0 %v6028
          %6063 = vmatprep.subr.mxu0 0.0
          %6064 = vmatpush1.msra.mxu0 %v6029
          %6065 = vmatprep.subr.mxu0 0.0
          %6066 = vmatpush1.msra.mxu0 %v6030
          %6067 = vmatprep.subr.mxu0 0.0
          %6068 = vmatpush1.msra.mxu0 %v6031
          %6069 = vmatprep.subr.mxu0 0.0
          %6070 = vmatpush1.msra.mxu0 %v6032
          %6071 = vmatprep.subr.mxu0 0.0
          %6072 = vmatpush1.msra.mxu0 %v6033
          %6073 = vmatprep.subr.mxu0 0.0
          %6074 = vmatpush1.msra.mxu0 0.0
          %6075 = vmatprep.subr.mxu0 0.0
          %6076 = vmatpush1.msra.mxu0 0.0
          %6077 = vmatprep.subr.mxu0 0.0
          %6078 = vmatpush1.msra.mxu0 0.0
          %6079 = vmatprep.subr.mxu0 0.0
          %6080 = vmatpush1.msra.mxu0 0.0
          %6081 = vmatprep.subr.mxu0 0.0
          %6082 = vmatpush1.msra.mxu0 0.0
          %6083 = vmatprep.subr.mxu0 0.0
          %6084 = vmatpush1.msra.mxu0 0.0
          %6085 = vmatprep.subr.mxu0 0.0
          %6086 = vmatpush1.msra.mxu0 0.0
          %6087 = vmatprep.subr.mxu0 0.0
          %6088 = vmatpush1.msra.mxu0 0.0
          %6089 = vmatprep.subr.mxu0 0.0
          %6090 = vmatpush1.msra.mxu0 0.0
          %6091 = vmatprep.subr.mxu0 0.0
          %6092 = vmatpush1.msra.mxu0 0.0
          %6093 = vmatprep.subr.mxu0 0.0
          %6094 = vmatpush1.msra.mxu0 0.0
          %6095 = vmatprep.subr.mxu0 0.0
          %6096 = vmatpush1.msra.mxu0 0.0
          %6097 = vmatprep.subr.mxu0 0.0
          %6098 = vmatpush1.msra.mxu0 0.0
          %6099 = vmatprep.subr.mxu0 0.0
          %6100 = vmatpush1.msra.mxu0 0.0
          %6101 = vmatprep.subr.mxu0 0.0
          %6102 = vmatpush1.msra.mxu0 0.0
          %6103 = vmatprep.subr.mxu0 0.0
          %6104 = vmatpush1.msra.mxu0 0.0
          %6105 = vmatprep.mubr.f32.mxu0 0.0
          %6106 = vmatmul.mubr.f32.gmra.mrb[0].mxu0 %v6017
          %v6107 = vpop.f32.mrb[0].mxu0
          %v6108 = vadd.f32 %v6039, %v6107
          %v6109 = vpop.f32.mrb[0].mxu0
          %6110 = vdwg.mxu0
          %v6111 = vtanh.pop %v6108
          %v6112 = vld [vmem:[#allocation13] sm:$0xff]
          %v6113 = vld [vmem:[#allocation13 + $0x8] sm:$0xff]
          %v6114 = vld [vmem:[#allocation13 + $0x10] sm:$0xff]
          %v6115 = vld [vmem:[#allocation13 + $0x18] sm:$0xff]
          %v6116 = vld [vmem:[#allocation13 + $0x20] sm:$0xff]
          %v6117 = vld [vmem:[#allocation13 + $0x28] sm:$0xff]
          %v6118 = vld [vmem:[#allocation13 + $0x30] sm:$0xff]
          %v6119 = vld [vmem:[#allocation13 + $0x38] sm:$0xff]
          %v6120 = vld [vmem:[#allocation13 + $0x40] sm:$0xff]
          %v6121 = vld [vmem:[#allocation13 + $0x48] sm:$0xff]
          %v6122 = vld [vmem:[#allocation13 + $0x50] sm:$0xff]
          %v6123 = vld [vmem:[#allocation13 + $0x58] sm:$0xff]
          %v6124 = vld [vmem:[#allocation13 + $0x60] sm:$0xff]
          %v6125 = vld [vmem:[#allocation13 + $0x68] sm:$0xff]
          %v6126 = vld [vmem:[#allocation13 + $0x70] sm:$0xff]
          %v6127 = vld [vmem:[#allocation13 + $0x78] sm:$0xff]
          %v6128 = vld [vmem:[#allocation14] sm:$0x1]
          %v6130 = vlaneseq
          %v6131 = vshrl.u32 %v6130, 7
          %v6132 = vsub.s32 0, %v6131
          %v6133 = vrot.slane %v6128, %v6132
          %6135 = vmatprep.subr.mxu0 0.0
          %6136 = vmatpush1.msra.mxu0 %v6112
          %6137 = vmatprep.subr.mxu0 0.0
          %6138 = vmatpush1.msra.mxu0 %v6113
          %6139 = vmatprep.subr.mxu0 0.0
          %6140 = vmatpush1.msra.mxu0 %v6114
          %6141 = vmatprep.subr.mxu0 0.0
          %6142 = vmatpush1.msra.mxu0 %v6115
          %6143 = vmatprep.subr.mxu0 0.0
          %6144 = vmatpush1.msra.mxu0 %v6116
          %6145 = vmatprep.subr.mxu0 0.0
          %6146 = vmatpush1.msra.mxu0 %v6117
          %6147 = vmatprep.subr.mxu0 0.0
          %6148 = vmatpush1.msra.mxu0 %v6118
          %6149 = vmatprep.subr.mxu0 0.0
          %6150 = vmatpush1.msra.mxu0 %v6119
          %6151 = vmatprep.subr.mxu0 0.0
          %6152 = vmatpush1.msra.mxu0 %v6120
          %6153 = vmatprep.subr.mxu0 0.0
          %6154 = vmatpush1.msra.mxu0 %v6121
          %6155 = vmatprep.subr.mxu0 0.0
          %6156 = vmatpush1.msra.mxu0 %v6122
          %6157 = vmatprep.subr.mxu0 0.0
          %6158 = vmatpush1.msra.mxu0 %v6123
          %6159 = vmatprep.subr.mxu0 0.0
          %6160 = vmatpush1.msra.mxu0 %v6124
          %6161 = vmatprep.subr.mxu0 0.0
          %6162 = vmatpush1.msra.mxu0 %v6125
          %6163 = vmatprep.subr.mxu0 0.0
          %6164 = vmatpush1.msra.mxu0 %v6126
          %6165 = vmatprep.subr.mxu0 0.0
          %6166 = vmatpush1.msra.mxu0 %v6127
          %6167 = vmatprep.subr.mxu0 0.0
          %6168 = vmatpush1.msra.mxu0 0.0
          %6169 = vmatprep.subr.mxu0 0.0
          %6170 = vmatpush1.msra.mxu0 0.0
          %6171 = vmatprep.subr.mxu0 0.0
          %6172 = vmatpush1.msra.mxu0 0.0
          %6173 = vmatprep.subr.mxu0 0.0
          %6174 = vmatpush1.msra.mxu0 0.0
          %6175 = vmatprep.subr.mxu0 0.0
          %6176 = vmatpush1.msra.mxu0 0.0
          %6177 = vmatprep.subr.mxu0 0.0
          %6178 = vmatpush1.msra.mxu0 0.0
          %6179 = vmatprep.subr.mxu0 0.0
          %6180 = vmatpush1.msra.mxu0 0.0
          %6181 = vmatprep.subr.mxu0 0.0
          %6182 = vmatpush1.msra.mxu0 0.0
          %6183 = vmatprep.subr.mxu0 0.0
          %6184 = vmatpush1.msra.mxu0 0.0
          %6185 = vmatprep.subr.mxu0 0.0
          %6186 = vmatpush1.msra.mxu0 0.0
          %6187 = vmatprep.subr.mxu0 0.0
          %6188 = vmatpush1.msra.mxu0 0.0
          %6189 = vmatprep.subr.mxu0 0.0
          %6190 = vmatpush1.msra.mxu0 0.0
          %6191 = vmatprep.subr.mxu0 0.0
          %6192 = vmatpush1.msra.mxu0 0.0
          %6193 = vmatprep.subr.mxu0 0.0
          %6194 = vmatpush1.msra.mxu0 0.0
          %6195 = vmatprep.subr.mxu0 0.0
          %6196 = vmatpush1.msra.mxu0 0.0
          %6197 = vmatprep.subr.mxu0 0.0
          %6198 = vmatpush1.msra.mxu0 0.0
          %6199 = vmatprep.mubr.f32.mxu0 0.0
          %6200 = vmatmul.mubr.f32.gmra.mrb[0].mxu0 %v6111
          %v6201 = vpop.f32.mrb[0].mxu0
          %v6202 = vadd.f32 %v6133, %v6201
          %v6203 = vpop.f32.mrb[0].mxu0
          %6204 = vdwg.mxu0
          %6205 = vst [vmem:[#allocation16] sm:$0x3] %v6202
        $region96: #{_mlp_forward_fused.1} parent=55 // pred_fallthru
          _
        // Predicated region
        $region97: #{_mlp_forward_fused.1} parent=55 // pred_check
          %p6206 = pneg %p240
        $region98: #{_mlp_forward_fused.1} parent=55 // pred_check_branch
          %6208 = sbr.rel (%p6206) target = $region100
        $region99: #{_mlp_forward_fused.1} parent=55 // pred_region
          %s6210 = ssub.s32 32, 32
          %6211 = vsyncadd [#allocation4], %s6210
          %s6213 = sshll.u32 [#allocation16], 4
          %s6214 = int_to_ptr.vmem [resolvable:$true] %s6213
          %6216 = dma.vmem_to_hbm [thread:$0]  %s6214, 32, %s9, [#allocation4]
        $region100: #{_mlp_forward_fused.1} parent=55 // pred_fallthru
          _
        // Predicated region
        $region101: #{_mlp_forward_fused.1} parent=55 // pred_check
          %p6217 = pneg %p240
        $region102: #{_mlp_forward_fused.1} parent=55 // pred_check_branch
          %6219 = sbr.rel (%p6217) target = $region104
        $region103: #{_mlp_forward_fused.1} parent=55 // pred_region
          %6220 = dma.done [#allocation4], 32
        $region104: #{_mlp_forward_fused.1} parent=55 // pred_fallthru
          _
      $region56: #{_mlp_forward_fused.1} parent=5 // pred_fallthru
        _
      %p6221 = scmp.le.s32.totalorder 2, %s23
      // Predicated region
      $region105: #{_mlp_forward_fused.1} parent=5 // pred_check
        %p6222 = pneg %p6221
      $region106: #{_mlp_forward_fused.1} parent=5 // pred_check_branch
        %6224 = sbr.rel (%p6222) target = $region108
      $region107: #{_mlp_forward_fused.1} parent=5 // pred_region
        %s6225 = ssub.s32 %s23, 2
      $region108: #{_mlp_forward_fused.1} parent=5 // pred_fallthru
        _
    $region6: #{_mlp_forward_fused.1} parent=1 // loop_footer
      %s27 = sadd.s32 1, %s23
    $region7: #{_mlp_forward_fused.1} parent=1 // loop_footer_branch
      %22 = sbr.rel target = $region3
    $region8: #{_mlp_forward_fused.1} parent=1 // loop_exit
      _
    %6226 = vsyncpa [#allocation3], 1
    %s6227 = scalar_lea.sflag [#allocation3], 1
    %6228 = vsyncpa %s6227, 1
    %6229 = vsyncpa [#allocation6], 1
    %6230 = vsyncpa [#allocation9], 1
    %6231 = vsyncpa [#allocation12], 1
    %6232 = vsyncpa [#allocation15], 1
    %6233 = vsyncpa [#allocation4], 1
    %s6234 = scalar_lea.sflag [#allocation4], 1
    %6235 = vsyncpa %s6234, 1

</llo_original>
